<compile_context>
chip_gen: v7x
topology: tpu7x:2x2x1
jax: 0.10.0
libtpu: 0.0.40
codegen_flags: <defaults>
</compile_context>

<pallas_src>
import jax
import jax.numpy as jnp
from jax.experimental import pallas as pl
from jax.experimental.pallas import tpu as pltpu

EPS = 1e-5      # PyTorch BatchNorm1d default eps
LANE = 128      # TPU lane width — keep every activation tile lane-dense


def _leaky_relu(x, slope=0.1):   # module uses nn.LeakyReLU(0.1) explicitly
    return jnp.where(x > 0, x, slope * x)


def _relu(x):
    return jnp.maximum(x, 0.0)


# ----------------------------- Pallas kernel ------------------------------- #

def _mm(a_f32, w_bf16, b_f32):
    # MXU matmul: bf16 operands, f32 accumulation; bias / elementwise stay f32.
    return jnp.dot(a_f32.astype(jnp.bfloat16), w_bf16,
                   preferred_element_type=jnp.float32) + b_f32


WEIGHT_KEYS = (
    "emb_w", "emb_b",
    "res1_w1", "res1_b1", "res1_w2", "res1_b2",
    "res2_w1", "res2_b1", "res2_w2", "res2_b2",
    "res3_w1", "res3_b1", "res3_w2", "res3_b2",
    "bot_w1", "bot_b1", "bot_w2", "bot_b2", "bot_w3", "bot_b3",
    "pred_w1", "pred_b1", "pred_w2", "pred_b2",
)


def flight_delay_kernel(x_ref,
                        emb_w, emb_b,
                        r1_w1, r1_b1, r1_w2, r1_b2,
                        r2_w1, r2_b1, r2_w2, r2_b2,
                        r3_w1, r3_b1, r3_w2, r3_b2,
                        bot_w1, bot_b1, bot_w2, bot_b2, bot_w3, bot_b3,
                        pred_w1, pred_b1, pred_w2, pred_b2,
                        out_ref):
    x = x_ref[...]

    # embedding: folded Linear+BN -> LeakyReLU(0.1) -> Dropout (identity, eval)
    h = _leaky_relu(_mm(x, emb_w[...], emb_b[...]))

    # 3x ResidualBlock(hidden)   (fc+bn folded, dropout identity)
    for w1, b1, w2, b2 in ((r1_w1, r1_b1, r1_w2, r1_b2),
                           (r2_w1, r2_b1, r2_w2, r2_b2),
                           (r3_w1, r3_b1, r3_w2, r3_b2)):
        identity = h
        o = _relu(_mm(h, w1[...], b1[...]))
        o = _mm(o, w2[...], b2[...]) + identity
        h = _relu(o)

    # BottleneckResidualBlock(hidden, hidden // 2) — bottleneck dim lane-padded
    identity = h
    o = _relu(_mm(h, bot_w1[...], bot_b1[...]))
    o = _relu(_mm(o, bot_w2[...], bot_b2[...]))
    o = _mm(o, bot_w3[...], bot_b3[...]) + identity
    h = _relu(o)

    # prediction head: folded Linear+BN -> LeakyReLU(0.1) -> Linear(64, 1)
    # final layer lane-padded to 128 output columns (only column 0 is real)
    o = _leaky_relu(_mm(h, pred_w1[...], pred_b1[...]))
    o = _mm(o, pred_w2[...], pred_b2[...])

    out_ref[...] = o.astype(out_ref.dtype)


# ------------------------------ host wrapper -------------------------------- #

def flight_delay_regressor(x, kp, *, tm=128):
    """x: [B, input_dim] f32; kp: padded/bf16 kernel params. Returns [B, 1] f32."""
    B, F = x.shape
    tm = max(8, tm)
    grid_m = pl.cdiv(B, tm)
    Bp = grid_m * tm
    if Bp != B:
        x = jnp.pad(x, ((0, Bp - B), (0, 0)))

    weights = [kp[k] for k in WEIGHT_KEYS]

    def resident(w):
        # full-array block + constant index_map -> loaded into VMEM once and
        # kept resident across all batch-grid steps (no per-step weight DMA).
        nd = w.ndim
        return pl.BlockSpec(tuple(w.shape), lambda *_, _nd=nd: (0,) * _nd)

    in_specs = [pl.BlockSpec((tm, F), lambda i: (i, 0))]
    in_specs += [resident(w) for w in weights]
    out_specs = pl.BlockSpec((tm, LANE), lambda i: (i, 0))

    flops = 2 * Bp * sum(int(w.shape[0]) * int(w.shape[1])
                         for k, w in zip(WEIGHT_KEYS, weights) if "_w" in k)
    bytes_accessed = (x.size * x.dtype.itemsize + Bp * LANE * 4 +
                      sum(int(w.size) * w.dtype.itemsize for w in weights))

    out = pl.pallas_call(
        flight_delay_kernel,
        out_shape=jax.ShapeDtypeStruct((Bp, LANE), jnp.float32),
        grid_spec=pltpu.PrefetchScalarGridSpec(
            num_scalar_prefetch=0,
            grid=(grid_m,),
            in_specs=in_specs,
            out_specs=out_specs,
        ),
        compiler_params=pltpu.CompilerParams(
            dimension_semantics=("parallel",)),
        cost_estimate=pl.CostEstimate(
            flops=int(flops), transcendentals=0,
            bytes_accessed=int(bytes_accessed)),
    )(x, *weights)

    return out[:B, :1]     # only column 0 of the lane-dense slab is real


# ------------------------ parameter construction --------------------------- #

def _linear(key, fan_in, fan_out):
    k1, k2 = jax.random.split(key)
    bound = 1.0 / (fan_in ** 0.5)
    w = jax.random.uniform(k1, (fan_in, fan_out), jnp.float32, -bound, bound)
    b = jax.random.uniform(k2, (1, fan_out), jnp.float32, -bound, bound)
    return w, b


def _bn(key, dim):
    k1, k2, k3, k4 = jax.random.split(key, 4)
    gamma = jax.random.uniform(k1, (1, dim), jnp.float32, 0.5, 1.5)
    beta = jax.random.uniform(k2, (1, dim), jnp.float32, -0.5, 0.5)
    mean = jax.random.uniform(k3, (1, dim), jnp.float32, -0.5, 0.5)
    var = jax.random.uniform(k4, (1, dim), jnp.float32, 0.5, 1.5)
    return gamma, beta, mean, var


def _fold(w, b, bn_params):
    # eval-mode BN after a Linear folds to an affine rescale of (W, b)
    gamma, beta, mean, var = bn_params
    scale = gamma / jnp.sqrt(var + EPS)          # [1, out]
    return w * scale, (b - mean) * scale + beta


def make_params(key, input_dim, hidden_dim):
    h2 = hidden_dim // 2
    keys = iter(jax.random.split(key, 64))

    def folded_linear(fan_in, fan_out):
        w, b = _linear(next(keys), fan_in, fan_out)
        return _fold(w, b, _bn(next(keys), fan_out))

    p = {}
    p["emb_w"], p["emb_b"] = folded_linear(input_dim, hidden_dim)
    for i in (1, 2, 3):
        p[f"res{i}_w1"], p[f"res{i}_b1"] = folded_linear(hidden_dim, hidden_dim)
        p[f"res{i}_w2"], p[f"res{i}_b2"] = folded_linear(hidden_dim, hidden_dim)
    p["bot_w1"], p["bot_b1"] = folded_linear(hidden_dim, h2)
    p["bot_w2"], p["bot_b2"] = folded_linear(h2, h2)
    p["bot_w3"], p["bot_b3"] = folded_linear(h2, hidden_dim)
    p["pred_w1"], p["pred_b1"] = folded_linear(hidden_dim, 64)
    p["pred_w2"], p["pred_b2"] = _linear(next(keys), 64, 1)   # no BN after final
    return p


def _pad_out(w, b, n_to):
    pad = n_to - w.shape[-1]
    return jnp.pad(w, ((0, 0), (0, pad))), jnp.pad(b, ((0, 0), (0, pad)))


def _pad_in(w, n_to):
    pad = n_to - w.shape[0]
    return jnp.pad(w, ((0, pad), (0, 0)))


def make_kernel_params(p, hidden_dim):
    """Pad 64-wide dims to full 128 lanes and cast weights to bf16.

    Zero-padded columns produce zero pre-activations (relu/leaky_relu(0)=0) and
    zero-padded rows contribute nothing downstream, so the math is unchanged.
    """
    h2 = hidden_dim // 2
    h2p = max(LANE, -(-h2 // LANE) * LANE)

    kp = dict(p)
    # bottleneck block
    w1, b1 = _pad_out(p["bot_w1"], p["bot_b1"], h2p)
    w2, b2 = _pad_out(p["bot_w2"], p["bot_b2"], h2p)
    w2 = _pad_in(w2, h2p)
    w3 = _pad_in(p["bot_w3"], h2p)
    kp.update(bot_w1=w1, bot_b1=b1, bot_w2=w2, bot_b2=b2, bot_w3=w3)

    # prediction head: 64 hidden -> 128 lanes; final (64, 1) -> (128, 128)
    pw1, pb1 = _pad_out(p["pred_w1"], p["pred_b1"], LANE)
    pw2, pb2 = _pad_out(p["pred_w2"], p["pred_b2"], LANE)
    pw2 = _pad_in(pw2, LANE)
    kp.update(pred_w1=pw1, pred_b1=pb1, pred_w2=pw2, pred_b2=pb2)

    # bf16 weights (MXU-native, half the DMA bytes); biases stay f32.
    for k in list(kp):
        if "_w" in k:
            kp[k] = kp[k].astype(jnp.bfloat16)
    return kp


# --------------------------- pure-JAX reference ----------------------------- #

def reference_forward(x, kp):
    """Mirrors the kernel math exactly (bf16 operands, f32 accumulation)."""
    def mm(a, w, b):
        return jnp.dot(a.astype(jnp.bfloat16), w,
                       preferred_element_type=jnp.float32) + b

    h = _leaky_relu(mm(x, kp["emb_w"], kp["emb_b"]))
    for i in (1, 2, 3):
        identity = h
        o = _relu(mm(h, kp[f"res{i}_w1"], kp[f"res{i}_b1"]))
        o = mm(o, kp[f"res{i}_w2"], kp[f"res{i}_b2"]) + identity
        h = _relu(o)
    identity = h
    o = _relu(mm(h, kp["bot_w1"], kp["bot_b1"]))
    o = _relu(mm(o, kp["bot_w2"], kp["bot_b2"]))
    o = mm(o, kp["bot_w3"], kp["bot_b3"]) + identity
    h = _relu(o)
    o = _leaky_relu(mm(h, kp["pred_w1"], kp["pred_b1"]))
    o = mm(o, kp["pred_w2"], kp["pred_b2"])
    return o[:, :1]


# ---------------------------------- main ------------------------------------ #

if __name__ == "__main__":
    B, INPUT_DIM, HIDDEN_DIM, TM = 256, 32, 128, 128

    key = jax.random.PRNGKey(0)
    kx, kparam = jax.random.split(key)
    x = jax.random.normal(kx, (B, INPUT_DIM), jnp.float32)

    folded = make_params(kparam, INPUT_DIM, HIDDEN_DIM)
    kparams = make_kernel_params(folded, HIDDEN_DIM)

    out = flight_delay_regressor(x, kparams, tm=TM)
    out = jax.block_until_ready(out)
    assert out.shape == (B, 1), out.shape

    ref = reference_forward(x, kparams)
    max_err = float(jnp.max(jnp.abs(out - ref)))
    assert jnp.allclose(out, ref, rtol=1e-2, atol=1e-2), max_err

    print("KERNEL_OK")
</pallas_src>

<mosaic_0001>
module attributes {stable_mosaic.version = 11 : i64} {
  func.func @flight_delay_kernel(%arg0: i32, %arg1: memref<128x32xf32, #tpu.memory_space<vmem>>, %arg2: memref<32x128xbf16, #tpu.memory_space<vmem>>, %arg3: memref<1x128xf32, #tpu.memory_space<vmem>>, %arg4: memref<128x128xbf16, #tpu.memory_space<vmem>>, %arg5: memref<1x128xf32, #tpu.memory_space<vmem>>, %arg6: memref<128x128xbf16, #tpu.memory_space<vmem>>, %arg7: memref<1x128xf32, #tpu.memory_space<vmem>>, %arg8: memref<128x128xbf16, #tpu.memory_space<vmem>>, %arg9: memref<1x128xf32, #tpu.memory_space<vmem>>, %arg10: memref<128x128xbf16, #tpu.memory_space<vmem>>, %arg11: memref<1x128xf32, #tpu.memory_space<vmem>>, %arg12: memref<128x128xbf16, #tpu.memory_space<vmem>>, %arg13: memref<1x128xf32, #tpu.memory_space<vmem>>, %arg14: memref<128x128xbf16, #tpu.memory_space<vmem>>, %arg15: memref<1x128xf32, #tpu.memory_space<vmem>>, %arg16: memref<128x128xbf16, #tpu.memory_space<vmem>>, %arg17: memref<1x128xf32, #tpu.memory_space<vmem>>, %arg18: memref<128x128xbf16, #tpu.memory_space<vmem>>, %arg19: memref<1x128xf32, #tpu.memory_space<vmem>>, %arg20: memref<128x128xbf16, #tpu.memory_space<vmem>>, %arg21: memref<1x128xf32, #tpu.memory_space<vmem>>, %arg22: memref<128x128xbf16, #tpu.memory_space<vmem>>, %arg23: memref<1x128xf32, #tpu.memory_space<vmem>>, %arg24: memref<128x128xbf16, #tpu.memory_space<vmem>>, %arg25: memref<1x128xf32, #tpu.memory_space<vmem>>, %arg26: memref<128x128xf32, #tpu.memory_space<vmem>>) attributes {dimension_semantics = [#tpu.dimension_semantics<parallel>], iteration_bounds = array<i64: 2>, scalar_prefetch = 0 : i64, scratch_operands = 0 : i64, tpu.core_type = #tpu.core_type<tc>, window_params = [{transform_indices = @transform_0, window_bounds = array<i64: 128, 32>}, {pipeline_mode = #tpu.pipeline_mode<synchronous>, transform_indices = @transform_1, window_bounds = array<i64: 32, 128>}, {pipeline_mode = #tpu.pipeline_mode<synchronous>, transform_indices = @transform_2, window_bounds = array<i64: 1, 128>}, {pipeline_mode = #tpu.pipeline_mode<synchronous>, transform_indices = @transform_3, window_bounds = array<i64: 128, 128>}, {pipeline_mode = #tpu.pipeline_mode<synchronous>, transform_indices = @transform_4, window_bounds = array<i64: 1, 128>}, {pipeline_mode = #tpu.pipeline_mode<synchronous>, transform_indices = @transform_5, window_bounds = array<i64: 128, 128>}, {pipeline_mode = #tpu.pipeline_mode<synchronous>, transform_indices = @transform_6, window_bounds = array<i64: 1, 128>}, {pipeline_mode = #tpu.pipeline_mode<synchronous>, transform_indices = @transform_7, window_bounds = array<i64: 128, 128>}, {pipeline_mode = #tpu.pipeline_mode<synchronous>, transform_indices = @transform_8, window_bounds = array<i64: 1, 128>}, {pipeline_mode = #tpu.pipeline_mode<synchronous>, transform_indices = @transform_9, window_bounds = array<i64: 128, 128>}, {pipeline_mode = #tpu.pipeline_mode<synchronous>, transform_indices = @transform_10, window_bounds = array<i64: 1, 128>}, {pipeline_mode = #tpu.pipeline_mode<synchronous>, transform_indices = @transform_11, window_bounds = array<i64: 128, 128>}, {pipeline_mode = #tpu.pipeline_mode<synchronous>, transform_indices = @transform_12, window_bounds = array<i64: 1, 128>}, {pipeline_mode = #tpu.pipeline_mode<synchronous>, transform_indices = @transform_13, window_bounds = array<i64: 128, 128>}, {pipeline_mode = #tpu.pipeline_mode<synchronous>, transform_indices = @transform_14, window_bounds = array<i64: 1, 128>}, {pipeline_mode = #tpu.pipeline_mode<synchronous>, transform_indices = @transform_15, window_bounds = array<i64: 128, 128>}, {pipeline_mode = #tpu.pipeline_mode<synchronous>, transform_indices = @transform_16, window_bounds = array<i64: 1, 128>}, {pipeline_mode = #tpu.pipeline_mode<synchronous>, transform_indices = @transform_17, window_bounds = array<i64: 128, 128>}, {pipeline_mode = #tpu.pipeline_mode<synchronous>, transform_indices = @transform_18, window_bounds = array<i64: 1, 128>}, {pipeline_mode = #tpu.pipeline_mode<synchronous>, transform_indices = @transform_19, window_bounds = array<i64: 128, 128>}, {pipeline_mode = #tpu.pipeline_mode<synchronous>, transform_indices = @transform_20, window_bounds = array<i64: 1, 128>}, {pipeline_mode = #tpu.pipeline_mode<synchronous>, transform_indices = @transform_21, window_bounds = array<i64: 128, 128>}, {pipeline_mode = #tpu.pipeline_mode<synchronous>, transform_indices = @transform_22, window_bounds = array<i64: 1, 128>}, {pipeline_mode = #tpu.pipeline_mode<synchronous>, transform_indices = @transform_23, window_bounds = array<i64: 128, 128>}, {pipeline_mode = #tpu.pipeline_mode<synchronous>, transform_indices = @transform_24, window_bounds = array<i64: 1, 128>}, {transform_indices = @transform_25, window_bounds = array<i64: 128, 128>}]} {
    %c0 = arith.constant 0 : index
    %c0_0 = arith.constant 0 : index
    %0 = vector.load %arg1[%c0, %c0_0] : memref<128x32xf32, #tpu.memory_space<vmem>>, vector<128x32xf32>
    %c0_1 = arith.constant 0 : index
    %c0_2 = arith.constant 0 : index
    %1 = vector.load %arg2[%c0_1, %c0_2] : memref<32x128xbf16, #tpu.memory_space<vmem>>, vector<32x128xbf16>
    %c0_3 = arith.constant 0 : index
    %c0_4 = arith.constant 0 : index
    %2 = vector.load %arg3[%c0_3, %c0_4] : memref<1x128xf32, #tpu.memory_space<vmem>>, vector<1x128xf32>
    %3 = arith.truncf %0 : vector<128x32xf32> to vector<128x32xbf16>
    %cst = arith.constant dense<0.000000e+00> : vector<128x128xf32>
    %4 = tpu.matmul %3, %1, %cst {dimension_numbers = #tpu.dot_dimension_numbers<[1], [0], [0], [1], [0, 0, 1, 1], [], []>} : vector<128x32xbf16>, vector<32x128xbf16>, vector<128x128xf32> -> vector<128x128xf32>
    %5 = vector.broadcast %2 : vector<1x128xf32> to vector<128x128xf32>
    %6 = arith.addf %4, %5 : vector<128x128xf32>
    %cst_5 = arith.constant 0.000000e+00 : f32
    %7 = vector.broadcast %cst_5 : f32 to vector<128x128xf32>
    %8 = arith.cmpf ogt, %6, %7 : vector<128x128xf32>
    %cst_6 = arith.constant 1.000000e-01 : f32
    %9 = vector.broadcast %cst_6 : f32 to vector<128x128xf32>
    %10 = arith.mulf %9, %6 : vector<128x128xf32>
    %11 = arith.select %8, %6, %10 : vector<128x128xi1>, vector<128x128xf32>
    %c0_7 = arith.constant 0 : index
    %c0_8 = arith.constant 0 : index
    %12 = vector.load %arg4[%c0_7, %c0_8] : memref<128x128xbf16, #tpu.memory_space<vmem>>, vector<128x128xbf16>
    %c0_9 = arith.constant 0 : index
    %c0_10 = arith.constant 0 : index
    %13 = vector.load %arg5[%c0_9, %c0_10] : memref<1x128xf32, #tpu.memory_space<vmem>>, vector<1x128xf32>
    %14 = arith.truncf %11 : vector<128x128xf32> to vector<128x128xbf16>
    %cst_11 = arith.constant dense<0.000000e+00> : vector<128x128xf32>
    %15 = tpu.matmul %14, %12, %cst_11 {dimension_numbers = #tpu.dot_dimension_numbers<[1], [0], [0], [1], [0, 0, 1, 1], [], []>} : vector<128x128xbf16>, vector<128x128xbf16>, vector<128x128xf32> -> vector<128x128xf32>
    %16 = vector.broadcast %13 : vector<1x128xf32> to vector<128x128xf32>
    %17 = arith.addf %15, %16 : vector<128x128xf32>
    %cst_12 = arith.constant 0.000000e+00 : f32
    %18 = vector.broadcast %cst_12 : f32 to vector<128x128xf32>
    %19 = arith.maximumf %17, %18 : vector<128x128xf32>
    %c0_13 = arith.constant 0 : index
    %c0_14 = arith.constant 0 : index
    %20 = vector.load %arg6[%c0_13, %c0_14] : memref<128x128xbf16, #tpu.memory_space<vmem>>, vector<128x128xbf16>
    %c0_15 = arith.constant 0 : index
    %c0_16 = arith.constant 0 : index
    %21 = vector.load %arg7[%c0_15, %c0_16] : memref<1x128xf32, #tpu.memory_space<vmem>>, vector<1x128xf32>
    %22 = arith.truncf %19 : vector<128x128xf32> to vector<128x128xbf16>
    %cst_17 = arith.constant dense<0.000000e+00> : vector<128x128xf32>
    %23 = tpu.matmul %22, %20, %cst_17 {dimension_numbers = #tpu.dot_dimension_numbers<[1], [0], [0], [1], [0, 0, 1, 1], [], []>} : vector<128x128xbf16>, vector<128x128xbf16>, vector<128x128xf32> -> vector<128x128xf32>
    %24 = vector.broadcast %21 : vector<1x128xf32> to vector<128x128xf32>
    %25 = arith.addf %23, %24 : vector<128x128xf32>
    %26 = arith.addf %25, %11 : vector<128x128xf32>
    %cst_18 = arith.constant 0.000000e+00 : f32
    %27 = vector.broadcast %cst_18 : f32 to vector<128x128xf32>
    %28 = arith.maximumf %26, %27 : vector<128x128xf32>
    %c0_19 = arith.constant 0 : index
    %c0_20 = arith.constant 0 : index
    %29 = vector.load %arg8[%c0_19, %c0_20] : memref<128x128xbf16, #tpu.memory_space<vmem>>, vector<128x128xbf16>
    %c0_21 = arith.constant 0 : index
    %c0_22 = arith.constant 0 : index
    %30 = vector.load %arg9[%c0_21, %c0_22] : memref<1x128xf32, #tpu.memory_space<vmem>>, vector<1x128xf32>
    %31 = arith.truncf %28 : vector<128x128xf32> to vector<128x128xbf16>
    %cst_23 = arith.constant dense<0.000000e+00> : vector<128x128xf32>
    %32 = tpu.matmul %31, %29, %cst_23 {dimension_numbers = #tpu.dot_dimension_numbers<[1], [0], [0], [1], [0, 0, 1, 1], [], []>} : vector<128x128xbf16>, vector<128x128xbf16>, vector<128x128xf32> -> vector<128x128xf32>
    %33 = vector.broadcast %30 : vector<1x128xf32> to vector<128x128xf32>
    %34 = arith.addf %32, %33 : vector<128x128xf32>
    %cst_24 = arith.constant 0.000000e+00 : f32
    %35 = vector.broadcast %cst_24 : f32 to vector<128x128xf32>
    %36 = arith.maximumf %34, %35 : vector<128x128xf32>
    %c0_25 = arith.constant 0 : index
    %c0_26 = arith.constant 0 : index
    %37 = vector.load %arg10[%c0_25, %c0_26] : memref<128x128xbf16, #tpu.memory_space<vmem>>, vector<128x128xbf16>
    %c0_27 = arith.constant 0 : index
    %c0_28 = arith.constant 0 : index
    %38 = vector.load %arg11[%c0_27, %c0_28] : memref<1x128xf32, #tpu.memory_space<vmem>>, vector<1x128xf32>
    %39 = arith.truncf %36 : vector<128x128xf32> to vector<128x128xbf16>
    %cst_29 = arith.constant dense<0.000000e+00> : vector<128x128xf32>
    %40 = tpu.matmul %39, %37, %cst_29 {dimension_numbers = #tpu.dot_dimension_numbers<[1], [0], [0], [1], [0, 0, 1, 1], [], []>} : vector<128x128xbf16>, vector<128x128xbf16>, vector<128x128xf32> -> vector<128x128xf32>
    %41 = vector.broadcast %38 : vector<1x128xf32> to vector<128x128xf32>
    %42 = arith.addf %40, %41 : vector<128x128xf32>
    %43 = arith.addf %42, %28 : vector<128x128xf32>
    %cst_30 = arith.constant 0.000000e+00 : f32
    %44 = vector.broadcast %cst_30 : f32 to vector<128x128xf32>
    %45 = arith.maximumf %43, %44 : vector<128x128xf32>
    %c0_31 = arith.constant 0 : index
    %c0_32 = arith.constant 0 : index
    %46 = vector.load %arg12[%c0_31, %c0_32] : memref<128x128xbf16, #tpu.memory_space<vmem>>, vector<128x128xbf16>
    %c0_33 = arith.constant 0 : index
    %c0_34 = arith.constant 0 : index
    %47 = vector.load %arg13[%c0_33, %c0_34] : memref<1x128xf32, #tpu.memory_space<vmem>>, vector<1x128xf32>
    %48 = arith.truncf %45 : vector<128x128xf32> to vector<128x128xbf16>
    %cst_35 = arith.constant dense<0.000000e+00> : vector<128x128xf32>
    %49 = tpu.matmul %48, %46, %cst_35 {dimension_numbers = #tpu.dot_dimension_numbers<[1], [0], [0], [1], [0, 0, 1, 1], [], []>} : vector<128x128xbf16>, vector<128x128xbf16>, vector<128x128xf32> -> vector<128x128xf32>
    %50 = vector.broadcast %47 : vector<1x128xf32> to vector<128x128xf32>
    %51 = arith.addf %49, %50 : vector<128x128xf32>
    %cst_36 = arith.constant 0.000000e+00 : f32
    %52 = vector.broadcast %cst_36 : f32 to vector<128x128xf32>
    %53 = arith.maximumf %51, %52 : vector<128x128xf32>
    %c0_37 = arith.constant 0 : index
    %c0_38 = arith.constant 0 : index
    %54 = vector.load %arg14[%c0_37, %c0_38] : memref<128x128xbf16, #tpu.memory_space<vmem>>, vector<128x128xbf16>
    %c0_39 = arith.constant 0 : index
    %c0_40 = arith.constant 0 : index
    %55 = vector.load %arg15[%c0_39, %c0_40] : memref<1x128xf32, #tpu.memory_space<vmem>>, vector<1x128xf32>
    %56 = arith.truncf %53 : vector<128x128xf32> to vector<128x128xbf16>
    %cst_41 = arith.constant dense<0.000000e+00> : vector<128x128xf32>
    %57 = tpu.matmul %56, %54, %cst_41 {dimension_numbers = #tpu.dot_dimension_numbers<[1], [0], [0], [1], [0, 0, 1, 1], [], []>} : vector<128x128xbf16>, vector<128x128xbf16>, vector<128x128xf32> -> vector<128x128xf32>
    %58 = vector.broadcast %55 : vector<1x128xf32> to vector<128x128xf32>
    %59 = arith.addf %57, %58 : vector<128x128xf32>
    %60 = arith.addf %59, %45 : vector<128x128xf32>
    %cst_42 = arith.constant 0.000000e+00 : f32
    %61 = vector.broadcast %cst_42 : f32 to vector<128x128xf32>
    %62 = arith.maximumf %60, %61 : vector<128x128xf32>
    %c0_43 = arith.constant 0 : index
    %c0_44 = arith.constant 0 : index
    %63 = vector.load %arg16[%c0_43, %c0_44] : memref<128x128xbf16, #tpu.memory_space<vmem>>, vector<128x128xbf16>
    %c0_45 = arith.constant 0 : index
    %c0_46 = arith.constant 0 : index
    %64 = vector.load %arg17[%c0_45, %c0_46] : memref<1x128xf32, #tpu.memory_space<vmem>>, vector<1x128xf32>
    %65 = arith.truncf %62 : vector<128x128xf32> to vector<128x128xbf16>
    %cst_47 = arith.constant dense<0.000000e+00> : vector<128x128xf32>
    %66 = tpu.matmul %65, %63, %cst_47 {dimension_numbers = #tpu.dot_dimension_numbers<[1], [0], [0], [1], [0, 0, 1, 1], [], []>} : vector<128x128xbf16>, vector<128x128xbf16>, vector<128x128xf32> -> vector<128x128xf32>
    %67 = vector.broadcast %64 : vector<1x128xf32> to vector<128x128xf32>
    %68 = arith.addf %66, %67 : vector<128x128xf32>
    %cst_48 = arith.constant 0.000000e+00 : f32
    %69 = vector.broadcast %cst_48 : f32 to vector<128x128xf32>
    %70 = arith.maximumf %68, %69 : vector<128x128xf32>
    %c0_49 = arith.constant 0 : index
    %c0_50 = arith.constant 0 : index
    %71 = vector.load %arg18[%c0_49, %c0_50] : memref<128x128xbf16, #tpu.memory_space<vmem>>, vector<128x128xbf16>
    %c0_51 = arith.constant 0 : index
    %c0_52 = arith.constant 0 : index
    %72 = vector.load %arg19[%c0_51, %c0_52] : memref<1x128xf32, #tpu.memory_space<vmem>>, vector<1x128xf32>
    %73 = arith.truncf %70 : vector<128x128xf32> to vector<128x128xbf16>
    %cst_53 = arith.constant dense<0.000000e+00> : vector<128x128xf32>
    %74 = tpu.matmul %73, %71, %cst_53 {dimension_numbers = #tpu.dot_dimension_numbers<[1], [0], [0], [1], [0, 0, 1, 1], [], []>} : vector<128x128xbf16>, vector<128x128xbf16>, vector<128x128xf32> -> vector<128x128xf32>
    %75 = vector.broadcast %72 : vector<1x128xf32> to vector<128x128xf32>
    %76 = arith.addf %74, %75 : vector<128x128xf32>
    %cst_54 = arith.constant 0.000000e+00 : f32
    %77 = vector.broadcast %cst_54 : f32 to vector<128x128xf32>
    %78 = arith.maximumf %76, %77 : vector<128x128xf32>
    %c0_55 = arith.constant 0 : index
    %c0_56 = arith.constant 0 : index
    %79 = vector.load %arg20[%c0_55, %c0_56] : memref<128x128xbf16, #tpu.memory_space<vmem>>, vector<128x128xbf16>
    %c0_57 = arith.constant 0 : index
    %c0_58 = arith.constant 0 : index
    %80 = vector.load %arg21[%c0_57, %c0_58] : memref<1x128xf32, #tpu.memory_space<vmem>>, vector<1x128xf32>
    %81 = arith.truncf %78 : vector<128x128xf32> to vector<128x128xbf16>
    %cst_59 = arith.constant dense<0.000000e+00> : vector<128x128xf32>
    %82 = tpu.matmul %81, %79, %cst_59 {dimension_numbers = #tpu.dot_dimension_numbers<[1], [0], [0], [1], [0, 0, 1, 1], [], []>} : vector<128x128xbf16>, vector<128x128xbf16>, vector<128x128xf32> -> vector<128x128xf32>
    %83 = vector.broadcast %80 : vector<1x128xf32> to vector<128x128xf32>
    %84 = arith.addf %82, %83 : vector<128x128xf32>
    %85 = arith.addf %84, %62 : vector<128x128xf32>
    %cst_60 = arith.constant 0.000000e+00 : f32
    %86 = vector.broadcast %cst_60 : f32 to vector<128x128xf32>
    %87 = arith.maximumf %85, %86 : vector<128x128xf32>
    %c0_61 = arith.constant 0 : index
    %c0_62 = arith.constant 0 : index
    %88 = vector.load %arg22[%c0_61, %c0_62] : memref<128x128xbf16, #tpu.memory_space<vmem>>, vector<128x128xbf16>
    %c0_63 = arith.constant 0 : index
    %c0_64 = arith.constant 0 : index
    %89 = vector.load %arg23[%c0_63, %c0_64] : memref<1x128xf32, #tpu.memory_space<vmem>>, vector<1x128xf32>
    %90 = arith.truncf %87 : vector<128x128xf32> to vector<128x128xbf16>
    %cst_65 = arith.constant dense<0.000000e+00> : vector<128x128xf32>
    %91 = tpu.matmul %90, %88, %cst_65 {dimension_numbers = #tpu.dot_dimension_numbers<[1], [0], [0], [1], [0, 0, 1, 1], [], []>} : vector<128x128xbf16>, vector<128x128xbf16>, vector<128x128xf32> -> vector<128x128xf32>
    %92 = vector.broadcast %89 : vector<1x128xf32> to vector<128x128xf32>
    %93 = arith.addf %91, %92 : vector<128x128xf32>
    %cst_66 = arith.constant 0.000000e+00 : f32
    %94 = vector.broadcast %cst_66 : f32 to vector<128x128xf32>
    %95 = arith.cmpf ogt, %93, %94 : vector<128x128xf32>
    %cst_67 = arith.constant 1.000000e-01 : f32
    %96 = vector.broadcast %cst_67 : f32 to vector<128x128xf32>
    %97 = arith.mulf %96, %93 : vector<128x128xf32>
    %98 = arith.select %95, %93, %97 : vector<128x128xi1>, vector<128x128xf32>
    %c0_68 = arith.constant 0 : index
    %c0_69 = arith.constant 0 : index
    %99 = vector.load %arg24[%c0_68, %c0_69] : memref<128x128xbf16, #tpu.memory_space<vmem>>, vector<128x128xbf16>
    %c0_70 = arith.constant 0 : index
    %c0_71 = arith.constant 0 : index
    %100 = vector.load %arg25[%c0_70, %c0_71] : memref<1x128xf32, #tpu.memory_space<vmem>>, vector<1x128xf32>
    %101 = arith.truncf %98 : vector<128x128xf32> to vector<128x128xbf16>
    %cst_72 = arith.constant dense<0.000000e+00> : vector<128x128xf32>
    %102 = tpu.matmul %101, %99, %cst_72 {dimension_numbers = #tpu.dot_dimension_numbers<[1], [0], [0], [1], [0, 0, 1, 1], [], []>} : vector<128x128xbf16>, vector<128x128xbf16>, vector<128x128xf32> -> vector<128x128xf32>
    %103 = vector.broadcast %100 : vector<1x128xf32> to vector<128x128xf32>
    %104 = arith.addf %102, %103 : vector<128x128xf32>
    %c0_73 = arith.constant 0 : index
    %c0_74 = arith.constant 0 : index
    %105 = vector.load %arg26[%c0_73, %c0_74] : memref<128x128xf32, #tpu.memory_space<vmem>>, vector<128x128xf32>
    tpu.vector_store %arg26[%c0_73, %c0_74], %104 {strides = array<i32>} : memref<128x128xf32, #tpu.memory_space<vmem>>, vector<128x128xf32>,
    return
  }
  func.func @transform_0(%arg0: i32) -> (i32, i32) {
    %c0_i32 = arith.constant 0 : i32
    %c0_i32_0 = arith.constant 0 : i32
    return %arg0, %c0_i32 : i32, i32
  }
  func.func @transform_1(%arg0: i32) -> (i32, i32) {
    %c0_i32 = arith.constant 0 : i32
    %c0_i32_0 = arith.constant 0 : i32
    %c0_i32_1 = arith.constant 0 : i32
    return %c0_i32, %c0_i32_0 : i32, i32
  }
  func.func @transform_2(%arg0: i32) -> (i32, i32) {
    %c0_i32 = arith.constant 0 : i32
    %c0_i32_0 = arith.constant 0 : i32
    %c0_i32_1 = arith.constant 0 : i32
    return %c0_i32, %c0_i32_0 : i32, i32
  }
  func.func @transform_3(%arg0: i32) -> (i32, i32) {
    %c0_i32 = arith.constant 0 : i32
    %c0_i32_0 = arith.constant 0 : i32
    %c0_i32_1 = arith.constant 0 : i32
    return %c0_i32, %c0_i32_0 : i32, i32
  }
  func.func @transform_4(%arg0: i32) -> (i32, i32) {
    %c0_i32 = arith.constant 0 : i32
    %c0_i32_0 = arith.constant 0 : i32
    %c0_i32_1 = arith.constant 0 : i32
    return %c0_i32, %c0_i32_0 : i32, i32
  }
  func.func @transform_5(%arg0: i32) -> (i32, i32) {
    %c0_i32 = arith.constant 0 : i32
    %c0_i32_0 = arith.constant 0 : i32
    %c0_i32_1 = arith.constant 0 : i32
    return %c0_i32, %c0_i32_0 : i32, i32
  }
  func.func @transform_6(%arg0: i32) -> (i32, i32) {
    %c0_i32 = arith.constant 0 : i32
    %c0_i32_0 = arith.constant 0 : i32
    %c0_i32_1 = arith.constant 0 : i32
    return %c0_i32, %c0_i32_0 : i32, i32
  }
  func.func @transform_7(%arg0: i32) -> (i32, i32) {
    %c0_i32 = arith.constant 0 : i32
    %c0_i32_0 = arith.constant 0 : i32
    %c0_i32_1 = arith.constant 0 : i32
    return %c0_i32, %c0_i32_0 : i32, i32
  }
  func.func @transform_8(%arg0: i32) -> (i32, i32) {
    %c0_i32 = arith.constant 0 : i32
    %c0_i32_0 = arith.constant 0 : i32
    %c0_i32_1 = arith.constant 0 : i32
    return %c0_i32, %c0_i32_0 : i32, i32
  }
  func.func @transform_9(%arg0: i32) -> (i32, i32) {
    %c0_i32 = arith.constant 0 : i32
    %c0_i32_0 = arith.constant 0 : i32
    %c0_i32_1 = arith.constant 0 : i32
    return %c0_i32, %c0_i32_0 : i32, i32
  }
  func.func @transform_10(%arg0: i32) -> (i32, i32) {
    %c0_i32 = arith.constant 0 : i32
    %c0_i32_0 = arith.constant 0 : i32
    %c0_i32_1 = arith.constant 0 : i32
    return %c0_i32, %c0_i32_0 : i32, i32
  }
  func.func @transform_11(%arg0: i32) -> (i32, i32) {
    %c0_i32 = arith.constant 0 : i32
    %c0_i32_0 = arith.constant 0 : i32
    %c0_i32_1 = arith.constant 0 : i32
    return %c0_i32, %c0_i32_0 : i32, i32
  }
  func.func @transform_12(%arg0: i32) -> (i32, i32) {
    %c0_i32 = arith.constant 0 : i32
    %c0_i32_0 = arith.constant 0 : i32
    %c0_i32_1 = arith.constant 0 : i32
    return %c0_i32, %c0_i32_0 : i32, i32
  }
  func.func @transform_13(%arg0: i32) -> (i32, i32) {
    %c0_i32 = arith.constant 0 : i32
    %c0_i32_0 = arith.constant 0 : i32
    %c0_i32_1 = arith.constant 0 : i32
    return %c0_i32, %c0_i32_0 : i32, i32
  }
  func.func @transform_14(%arg0: i32) -> (i32, i32) {
    %c0_i32 = arith.constant 0 : i32
    %c0_i32_0 = arith.constant 0 : i32
    %c0_i32_1 = arith.constant 0 : i32
    return %c0_i32, %c0_i32_0 : i32, i32
  }
  func.func @transform_15(%arg0: i32) -> (i32, i32) {
    %c0_i32 = arith.constant 0 : i32
    %c0_i32_0 = arith.constant 0 : i32
    %c0_i32_1 = arith.constant 0 : i32
    return %c0_i32, %c0_i32_0 : i32, i32
  }
  func.func @transform_16(%arg0: i32) -> (i32, i32) {
    %c0_i32 = arith.constant 0 : i32
    %c0_i32_0 = arith.constant 0 : i32
    %c0_i32_1 = arith.constant 0 : i32
    return %c0_i32, %c0_i32_0 : i32, i32
  }
  func.func @transform_17(%arg0: i32) -> (i32, i32) {
    %c0_i32 = arith.constant 0 : i32
    %c0_i32_0 = arith.constant 0 : i32
    %c0_i32_1 = arith.constant 0 : i32
    return %c0_i32, %c0_i32_0 : i32, i32
  }
  func.func @transform_18(%arg0: i32) -> (i32, i32) {
    %c0_i32 = arith.constant 0 : i32
    %c0_i32_0 = arith.constant 0 : i32
    %c0_i32_1 = arith.constant 0 : i32
    return %c0_i32, %c0_i32_0 : i32, i32
  }
  func.func @transform_19(%arg0: i32) -> (i32, i32) {
    %c0_i32 = arith.constant 0 : i32
    %c0_i32_0 = arith.constant 0 : i32
    %c0_i32_1 = arith.constant 0 : i32
    return %c0_i32, %c0_i32_0 : i32, i32
  }
  func.func @transform_20(%arg0: i32) -> (i32, i32) {
    %c0_i32 = arith.constant 0 : i32
    %c0_i32_0 = arith.constant 0 : i32
    %c0_i32_1 = arith.constant 0 : i32
    return %c0_i32, %c0_i32_0 : i32, i32
  }
  func.func @transform_21(%arg0: i32) -> (i32, i32) {
    %c0_i32 = arith.constant 0 : i32
    %c0_i32_0 = arith.constant 0 : i32
    %c0_i32_1 = arith.constant 0 : i32
    return %c0_i32, %c0_i32_0 : i32, i32
  }
  func.func @transform_22(%arg0: i32) -> (i32, i32) {
    %c0_i32 = arith.constant 0 : i32
    %c0_i32_0 = arith.constant 0 : i32
    %c0_i32_1 = arith.constant 0 : i32
    return %c0_i32, %c0_i32_0 : i32, i32
  }
  func.func @transform_23(%arg0: i32) -> (i32, i32) {
    %c0_i32 = arith.constant 0 : i32
    %c0_i32_0 = arith.constant 0 : i32
    %c0_i32_1 = arith.constant 0 : i32
    return %c0_i32, %c0_i32_0 : i32, i32
  }
  func.func @transform_24(%arg0: i32) -> (i32, i32) {
    %c0_i32 = arith.constant 0 : i32
    %c0_i32_0 = arith.constant 0 : i32
    %c0_i32_1 = arith.constant 0 : i32
    return %c0_i32, %c0_i32_0 : i32, i32
  }
  func.func @transform_25(%arg0: i32) -> (i32, i32) {
    %c0_i32 = arith.constant 0 : i32
    %c0_i32_0 = arith.constant 0 : i32
    return %arg0, %c0_i32 : i32, i32
  }
}

</mosaic_0001>

<llo_original>
// kernel: tpu_custom_call.1
$region0: #{tpu_custom_call.1}
  #allocation0 [shape = 'u32[]', space=smem, size = 0x4, offset = 0x4, fixed_abs, tag = 'smem constant byte address 0x4 - core index']
  #allocation1 [shape = 'u32[144,128]{1,0:T(1,128)}', space=vmem, size = 0x12000, scoped, tag = 'internal scratch']
  %s0 = inlined_call_operand.vmem [shape: f32[256,32], index: 0, kind: input, shape index: {}]
  %s1 = inlined_call_operand.hbm [shape: bf16[32,128], index: 1, kind: input, shape index: {}]
  %s2 = inlined_call_operand.vmem [shape: f32[1,128], index: 2, kind: input, shape index: {}]
  %s3 = inlined_call_operand.vmem [shape: bf16[128,128], index: 3, kind: input, shape index: {}]
  %s4 = inlined_call_operand.vmem [shape: f32[1,128], index: 4, kind: input, shape index: {}]
  %s5 = inlined_call_operand.vmem [shape: bf16[128,128], index: 5, kind: input, shape index: {}]
  %s6 = inlined_call_operand.vmem [shape: f32[1,128], index: 6, kind: input, shape index: {}]
  %s7 = inlined_call_operand.vmem [shape: bf16[128,128], index: 7, kind: input, shape index: {}]
  %s8 = inlined_call_operand.vmem [shape: f32[1,128], index: 8, kind: input, shape index: {}]
  %s9 = inlined_call_operand.vmem [shape: bf16[128,128], index: 9, kind: input, shape index: {}]
  %s10 = inlined_call_operand.hbm [shape: f32[1,128], index: 10, kind: input, shape index: {}]
  %s11 = inlined_call_operand.vmem [shape: bf16[128,128], index: 11, kind: input, shape index: {}]
  %s12 = inlined_call_operand.hbm [shape: f32[1,128], index: 12, kind: input, shape index: {}]
  %s13 = inlined_call_operand.hbm [shape: bf16[128,128], index: 13, kind: input, shape index: {}]
  %s14 = inlined_call_operand.hbm [shape: f32[1,128], index: 14, kind: input, shape index: {}]
  %s15 = inlined_call_operand.hbm [shape: bf16[128,128], index: 15, kind: input, shape index: {}]
  %s16 = inlined_call_operand.hbm [shape: f32[1,128], index: 16, kind: input, shape index: {}]
  %s17 = inlined_call_operand.hbm [shape: bf16[128,128], index: 17, kind: input, shape index: {}]
  %s18 = inlined_call_operand.hbm [shape: f32[1,128], index: 18, kind: input, shape index: {}]
  %s19 = inlined_call_operand.vmem [shape: bf16[128,128], index: 19, kind: input, shape index: {}]
  %s20 = inlined_call_operand.vmem [shape: f32[1,128], index: 20, kind: input, shape index: {}]
  %s21 = inlined_call_operand.hbm [shape: bf16[128,128], index: 21, kind: input, shape index: {}]
  %s22 = inlined_call_operand.vmem [shape: f32[1,128], index: 22, kind: input, shape index: {}]
  %s23 = inlined_call_operand.hbm [shape: bf16[128,128], index: 23, kind: input, shape index: {}]
  %s24 = inlined_call_operand.vmem [shape: f32[1,128], index: 24, kind: input, shape index: {}]
  %s25 = inlined_call_operand.hbm [shape: f32[256,128], index: 25, kind: output, shape index: {}]
  %s26 = sld [smem:[#allocation0]]
  $region177: #{tpu_custom_call.1} parent=0
    _
  %s28 = ssub.s32 1, %s26
  %s29 = scalar_select 0, %s28, %s26
  $region1: #{tpu_custom_call.1} parent=0
    #allocation2 [shape = 'u8[8192]{0}', space=vmem, size = 0x2000, scoped, tag = 'input window, operand 1, single buffered']
    #allocation3 [shape = 's32[2]{0}', space=sflag, size = 0x8, scoped, tag = 'scoped memory for tpu_custom_call.1']
    #allocation4 [shape = 's32[2]{0}', space=sflag, size = 0x8, scoped, tag = 'scoped memory for tpu_custom_call.1']
    #allocation5 [shape = 'u8[512]{0}', space=vmem, size = 0x400, scoped, tag = 'input window, operand 10, single buffered']
    #allocation6 [shape = 's32[1]{0}', space=sflag, size = 0x4, scoped, tag = 'scoped memory for tpu_custom_call.1']
    #allocation7 [shape = 'u8[512]{0}', space=vmem, size = 0x400, scoped, tag = 'input window, operand 12, single buffered']
    #allocation8 [shape = 'u8[32768]{0}', space=vmem, size = 0x8000, scoped, tag = 'input window, operand 13, single buffered']
    #allocation9 [shape = 's32[1]{0}', space=sflag, size = 0x4, scoped, tag = 'scoped memory for tpu_custom_call.1']
    #allocation10 [shape = 'u8[512]{0}', space=vmem, size = 0x400, scoped, tag = 'input window, operand 14, single buffered']
    #allocation11 [shape = 'u8[32768]{0}', space=vmem, size = 0x8000, scoped, tag = 'input window, operand 15, single buffered']
    #allocation12 [shape = 's32[1]{0}', space=sflag, size = 0x4, scoped, tag = 'scoped memory for tpu_custom_call.1']
    #allocation13 [shape = 'u8[512]{0}', space=vmem, size = 0x400, scoped, tag = 'input window, operand 16, single buffered']
    #allocation14 [shape = 'u8[32768]{0}', space=vmem, size = 0x8000, scoped, tag = 'input window, operand 17, single buffered']
    #allocation15 [shape = 's32[1]{0}', space=sflag, size = 0x4, scoped, tag = 'scoped memory for tpu_custom_call.1']
    #allocation16 [shape = 'u8[512]{0}', space=vmem, size = 0x400, scoped, tag = 'input window, operand 18, single buffered']
    #allocation17 [shape = 'u8[32768]{0}', space=vmem, size = 0x8000, scoped, tag = 'input window, operand 21, single buffered']
    #allocation18 [shape = 's32[1]{0}', space=sflag, size = 0x4, scoped, tag = 'scoped memory for tpu_custom_call.1']
    #allocation19 [shape = 'u8[32768]{0}', space=vmem, size = 0x8000, scoped, tag = 'input window, operand 23, single buffered']
    #allocation20 [shape = 'u8[131072]{0}', space=vmem, size = 0x20000, scoped, tag = 'output window, operand 0']
    %30 = vsyncpa [#allocation3], 0
    %31 = vsyncpa [#allocation6], 0
    %32 = vsyncpa [#allocation9], 0
    %33 = vsyncpa [#allocation12], 0
    %34 = vsyncpa [#allocation15], 0
    %35 = vsyncpa [#allocation18], 0
    %36 = vsyncpa [#allocation4], 0
    %s37 = scalar_lea.sflag [#allocation4], 1
    %38 = vsyncpa %s37, 0
    loop: start=0, step=1, limit=4
    $region2: #{tpu_custom_call.1} parent=1 // loop_pre_header
      _
    $region3: #{tpu_custom_call.1} parent=1 // loop_header
      %s40 = sphi 0, %s44
      %p41 = scmp.ge.s32.totalorder %s40, 4
      %s50 = sphi 0, %s52
      %s53 = sphi 0, %s50
      %s54 = sphi 0, %s53
      %s70 = sphi 0, %s54
      %s74 = sphi 0, %s74
      %s76 = sphi 0, %s74
      %s77 = sphi 0, %s76
      %s91 = sphi 0, %s77
      %s95 = sphi 0, %s95
      %s97 = sphi 0, %s95
      %s98 = sphi 0, %s97
      %s112 = sphi 0, %s98
      %s116 = sphi 0, %s116
      %s118 = sphi 0, %s116
      %s119 = sphi 0, %s118
      %s133 = sphi 0, %s119
      %s137 = sphi 0, %s137
      %s139 = sphi 0, %s137
      %s140 = sphi 0, %s139
      %s154 = sphi 0, %s140
      %s158 = sphi 0, %s158
      %s160 = sphi 0, %s158
      %s161 = sphi 0, %s160
      %s175 = sphi 0, %s161
      %s179 = sphi 0, %s179
      %s181 = sphi 0, %s179
      %s182 = sphi 0, %s181
      %s196 = sphi 0, %s182
      %s200 = sphi 0, %s200
      %s202 = sphi 0, %s200
      %s203 = sphi 0, %s202
      %s217 = sphi 0, %s203
      %s221 = sphi 0, %s221
      %s223 = sphi 0, %s221
      %s224 = sphi 0, %s223
      %s238 = sphi 0, %s224
      %s242 = sphi 0, %s242
      %s244 = sphi 0, %s242
      %s245 = sphi 0, %s244
      %s259 = sphi 0, %s245
      %s263 = sphi 0, %s263
      %s265 = sphi 0, %s263
      %s266 = sphi 0, %s265
      %s280 = sphi 0, %s266
      %s284 = sphi 0, %s284
      %s286 = sphi 0, %s284
      %s287 = sphi 0, %s286
      %s301 = sphi 0, %s287
      %s305 = sphi 0, %s305
      %s307 = sphi 0, %s305
      %s308 = sphi 0, %s307
      %s322 = sphi 0, %s308
      %s326 = sphi 0, %s326
      %s328 = sphi 0, %s326
      %s329 = sphi 0, %s328
      %s343 = sphi 0, %s329
      %s347 = sphi 0, %s347
      %s349 = sphi 0, %s347
      %s350 = sphi 0, %s349
      %s364 = sphi 0, %s350
      %s368 = sphi 0, %s368
      %s370 = sphi 0, %s368
      %s371 = sphi 0, %s370
      %s385 = sphi 0, %s371
      %s389 = sphi 0, %s389
      %s391 = sphi 0, %s389
      %s392 = sphi 0, %s391
      %s406 = sphi 0, %s392
      %s410 = sphi 0, %s410
      %s412 = sphi 0, %s410
      %s413 = sphi 0, %s412
      %s427 = sphi 0, %s413
      %s431 = sphi 0, %s431
      %s433 = sphi 0, %s431
      %s434 = sphi 0, %s433
      %s448 = sphi 0, %s434
      %s452 = sphi 0, %s452
      %s454 = sphi 0, %s452
      %s455 = sphi 0, %s454
      %s469 = sphi 0, %s455
      %s473 = sphi 0, %s473
      %s475 = sphi 0, %s473
      %s476 = sphi 0, %s475
      %s490 = sphi 0, %s476
      %s494 = sphi 0, %s494
      %s496 = sphi 0, %s494
      %s497 = sphi 0, %s496
      %s511 = sphi 0, %s497
      %s515 = sphi 0, %s515
      %s517 = sphi 0, %s515
      %s518 = sphi 0, %s517
      %s532 = sphi 0, %s518
      %s536 = sphi 0, %s536
      %s538 = sphi 0, %s536
      %s539 = sphi 0, %s538
      %s553 = sphi 0, %s539
      %s557 = sphi 0, %s557
      %s559 = sphi 0, %s557
      %s560 = sphi 0, %s559
      %s574 = sphi 0, %s560
      %s580 = sphi 0, %s582
      %s583 = sphi 0, %s580
      %s584 = sphi 0, %s583
      %s600 = sphi 0, %s584
    $region4: #{tpu_custom_call.1} parent=1 // loop_header_branch
      %43 = sbr.rel (%p41) target = $region8
    $region5: #{tpu_custom_call.1} parent=1 // loop_body
      %s45 = ssub.s32 %s40, 1
      %s46 = ssub.s32 %s40, 2
      %s47 = sadd.s32 %s40, 1
      %s48 = ssub.s32 %s40, %s47
      %p49 = scmp.eq.s32.totalorder %s48, 0
      %s51 = sadd.s32 %s50, 1
      %s52 = scalar_select %p49, %s50, %s51
      %p55 = pneg %p49
      %p56 = scmp.eq.s32.totalorder %s40, 1
      %p57 = por %p55, %p56
      %p58 = scmp.ne.s32.totalorder %s50, %s53
      %p59 = scmp.eq.s32.totalorder %s40, 0
      %p60 = por %p58, %p59
      %p61 = scmp.ne.s32.totalorder %s50, %s53
      %p62 = scmp.eq.s32.totalorder %s45, 1
      %p63 = por %p61, %p62
      %p64 = scmp.ne.s32.totalorder %s53, %s54
      %p65 = scmp.eq.s32.totalorder %s45, 0
      %p66 = por %p64, %p65
      %p67 = scmp.ne.s32.totalorder %s53, %s54
      %p68 = scmp.eq.s32.totalorder %s46, 1
      %p69 = por %p67, %p68
      %p71 = scmp.ne.s32.totalorder %s54, %s70
      %p72 = scmp.eq.s32.totalorder %s46, 0
      %p73 = por %p71, %p72
      %s75 = sadd.s32 %s74, 1
      %p78 = scmp.eq.s32.totalorder %s40, 1
      %p79 = scmp.ne.s32.totalorder %s74, %s76
      %p80 = scmp.eq.s32.totalorder %s40, 0
      %p81 = por %p79, %p80
      %p82 = scmp.ne.s32.totalorder %s74, %s76
      %p83 = scmp.eq.s32.totalorder %s45, 1
      %p84 = por %p82, %p83
      %p85 = scmp.ne.s32.totalorder %s76, %s77
      %p86 = scmp.eq.s32.totalorder %s45, 0
      %p87 = por %p85, %p86
      %p88 = scmp.ne.s32.totalorder %s76, %s77
      %p89 = scmp.eq.s32.totalorder %s46, 1
      %p90 = por %p88, %p89
      %p92 = scmp.ne.s32.totalorder %s77, %s91
      %p93 = scmp.eq.s32.totalorder %s46, 0
      %p94 = por %p92, %p93
      %s96 = sadd.s32 %s95, 1
      %p99 = scmp.eq.s32.totalorder %s40, 1
      %p100 = scmp.ne.s32.totalorder %s95, %s97
      %p101 = scmp.eq.s32.totalorder %s40, 0
      %p102 = por %p100, %p101
      %p103 = scmp.ne.s32.totalorder %s95, %s97
      %p104 = scmp.eq.s32.totalorder %s45, 1
      %p105 = por %p103, %p104
      %p106 = scmp.ne.s32.totalorder %s97, %s98
      %p107 = scmp.eq.s32.totalorder %s45, 0
      %p108 = por %p106, %p107
      %p109 = scmp.ne.s32.totalorder %s97, %s98
      %p110 = scmp.eq.s32.totalorder %s46, 1
      %p111 = por %p109, %p110
      %p113 = scmp.ne.s32.totalorder %s98, %s112
      %p114 = scmp.eq.s32.totalorder %s46, 0
      %p115 = por %p113, %p114
      %s117 = sadd.s32 %s116, 1
      %p120 = scmp.eq.s32.totalorder %s40, 1
      %p121 = scmp.ne.s32.totalorder %s116, %s118
      %p122 = scmp.eq.s32.totalorder %s40, 0
      %p123 = por %p121, %p122
      %p124 = scmp.ne.s32.totalorder %s116, %s118
      %p125 = scmp.eq.s32.totalorder %s45, 1
      %p126 = por %p124, %p125
      %p127 = scmp.ne.s32.totalorder %s118, %s119
      %p128 = scmp.eq.s32.totalorder %s45, 0
      %p129 = por %p127, %p128
      %p130 = scmp.ne.s32.totalorder %s118, %s119
      %p131 = scmp.eq.s32.totalorder %s46, 1
      %p132 = por %p130, %p131
      %p134 = scmp.ne.s32.totalorder %s119, %s133
      %p135 = scmp.eq.s32.totalorder %s46, 0
      %p136 = por %p134, %p135
      %s138 = sadd.s32 %s137, 1
      %p141 = scmp.eq.s32.totalorder %s40, 1
      %p142 = scmp.ne.s32.totalorder %s137, %s139
      %p143 = scmp.eq.s32.totalorder %s40, 0
      %p144 = por %p142, %p143
      %p145 = scmp.ne.s32.totalorder %s137, %s139
      %p146 = scmp.eq.s32.totalorder %s45, 1
      %p147 = por %p145, %p146
      %p148 = scmp.ne.s32.totalorder %s139, %s140
      %p149 = scmp.eq.s32.totalorder %s45, 0
      %p150 = por %p148, %p149
      %p151 = scmp.ne.s32.totalorder %s139, %s140
      %p152 = scmp.eq.s32.totalorder %s46, 1
      %p153 = por %p151, %p152
      %p155 = scmp.ne.s32.totalorder %s140, %s154
      %p156 = scmp.eq.s32.totalorder %s46, 0
      %p157 = por %p155, %p156
      %s159 = sadd.s32 %s158, 1
      %p162 = scmp.eq.s32.totalorder %s40, 1
      %p163 = scmp.ne.s32.totalorder %s158, %s160
      %p164 = scmp.eq.s32.totalorder %s40, 0
      %p165 = por %p163, %p164
      %p166 = scmp.ne.s32.totalorder %s158, %s160
      %p167 = scmp.eq.s32.totalorder %s45, 1
      %p168 = por %p166, %p167
      %p169 = scmp.ne.s32.totalorder %s160, %s161
      %p170 = scmp.eq.s32.totalorder %s45, 0
      %p171 = por %p169, %p170
      %p172 = scmp.ne.s32.totalorder %s160, %s161
      %p173 = scmp.eq.s32.totalorder %s46, 1
      %p174 = por %p172, %p173
      %p176 = scmp.ne.s32.totalorder %s161, %s175
      %p177 = scmp.eq.s32.totalorder %s46, 0
      %p178 = por %p176, %p177
      %s180 = sadd.s32 %s179, 1
      %p183 = scmp.eq.s32.totalorder %s40, 1
      %p184 = scmp.ne.s32.totalorder %s179, %s181
      %p185 = scmp.eq.s32.totalorder %s40, 0
      %p186 = por %p184, %p185
      %p187 = scmp.ne.s32.totalorder %s179, %s181
      %p188 = scmp.eq.s32.totalorder %s45, 1
      %p189 = por %p187, %p188
      %p190 = scmp.ne.s32.totalorder %s181, %s182
      %p191 = scmp.eq.s32.totalorder %s45, 0
      %p192 = por %p190, %p191
      %p193 = scmp.ne.s32.totalorder %s181, %s182
      %p194 = scmp.eq.s32.totalorder %s46, 1
      %p195 = por %p193, %p194
      %p197 = scmp.ne.s32.totalorder %s182, %s196
      %p198 = scmp.eq.s32.totalorder %s46, 0
      %p199 = por %p197, %p198
      %s201 = sadd.s32 %s200, 1
      %p204 = scmp.eq.s32.totalorder %s40, 1
      %p205 = scmp.ne.s32.totalorder %s200, %s202
      %p206 = scmp.eq.s32.totalorder %s40, 0
      %p207 = por %p205, %p206
      %p208 = scmp.ne.s32.totalorder %s200, %s202
      %p209 = scmp.eq.s32.totalorder %s45, 1
      %p210 = por %p208, %p209
      %p211 = scmp.ne.s32.totalorder %s202, %s203
      %p212 = scmp.eq.s32.totalorder %s45, 0
      %p213 = por %p211, %p212
      %p214 = scmp.ne.s32.totalorder %s202, %s203
      %p215 = scmp.eq.s32.totalorder %s46, 1
      %p216 = por %p214, %p215
      %p218 = scmp.ne.s32.totalorder %s203, %s217
      %p219 = scmp.eq.s32.totalorder %s46, 0
      %p220 = por %p218, %p219
      %s222 = sadd.s32 %s221, 1
      %p225 = scmp.eq.s32.totalorder %s40, 1
      %p226 = scmp.ne.s32.totalorder %s221, %s223
      %p227 = scmp.eq.s32.totalorder %s40, 0
      %p228 = por %p226, %p227
      %p229 = scmp.ne.s32.totalorder %s221, %s223
      %p230 = scmp.eq.s32.totalorder %s45, 1
      %p231 = por %p229, %p230
      %p232 = scmp.ne.s32.totalorder %s223, %s224
      %p233 = scmp.eq.s32.totalorder %s45, 0
      %p234 = por %p232, %p233
      %p235 = scmp.ne.s32.totalorder %s223, %s224
      %p236 = scmp.eq.s32.totalorder %s46, 1
      %p237 = por %p235, %p236
      %p239 = scmp.ne.s32.totalorder %s224, %s238
      %p240 = scmp.eq.s32.totalorder %s46, 0
      %p241 = por %p239, %p240
      %s243 = sadd.s32 %s242, 1
      %p246 = scmp.eq.s32.totalorder %s40, 1
      %p247 = scmp.ne.s32.totalorder %s242, %s244
      %p248 = scmp.eq.s32.totalorder %s40, 0
      %p249 = por %p247, %p248
      %p250 = scmp.ne.s32.totalorder %s242, %s244
      %p251 = scmp.eq.s32.totalorder %s45, 1
      %p252 = por %p250, %p251
      %p253 = scmp.ne.s32.totalorder %s244, %s245
      %p254 = scmp.eq.s32.totalorder %s45, 0
      %p255 = por %p253, %p254
      %p256 = scmp.ne.s32.totalorder %s244, %s245
      %p257 = scmp.eq.s32.totalorder %s46, 1
      %p258 = por %p256, %p257
      %p260 = scmp.ne.s32.totalorder %s245, %s259
      %p261 = scmp.eq.s32.totalorder %s46, 0
      %p262 = por %p260, %p261
      %s264 = sadd.s32 %s263, 1
      %p267 = scmp.eq.s32.totalorder %s40, 1
      %p268 = scmp.ne.s32.totalorder %s263, %s265
      %p269 = scmp.eq.s32.totalorder %s40, 0
      %p270 = por %p268, %p269
      %p271 = scmp.ne.s32.totalorder %s263, %s265
      %p272 = scmp.eq.s32.totalorder %s45, 1
      %p273 = por %p271, %p272
      %p274 = scmp.ne.s32.totalorder %s265, %s266
      %p275 = scmp.eq.s32.totalorder %s45, 0
      %p276 = por %p274, %p275
      %p277 = scmp.ne.s32.totalorder %s265, %s266
      %p278 = scmp.eq.s32.totalorder %s46, 1
      %p279 = por %p277, %p278
      %p281 = scmp.ne.s32.totalorder %s266, %s280
      %p282 = scmp.eq.s32.totalorder %s46, 0
      %p283 = por %p281, %p282
      %s285 = sadd.s32 %s284, 1
      %p288 = scmp.eq.s32.totalorder %s40, 1
      %p289 = scmp.ne.s32.totalorder %s284, %s286
      %p290 = scmp.eq.s32.totalorder %s40, 0
      %p291 = por %p289, %p290
      %p292 = scmp.ne.s32.totalorder %s284, %s286
      %p293 = scmp.eq.s32.totalorder %s45, 1
      %p294 = por %p292, %p293
      %p295 = scmp.ne.s32.totalorder %s286, %s287
      %p296 = scmp.eq.s32.totalorder %s45, 0
      %p297 = por %p295, %p296
      %p298 = scmp.ne.s32.totalorder %s286, %s287
      %p299 = scmp.eq.s32.totalorder %s46, 1
      %p300 = por %p298, %p299
      %p302 = scmp.ne.s32.totalorder %s287, %s301
      %p303 = scmp.eq.s32.totalorder %s46, 0
      %p304 = por %p302, %p303
      %s306 = sadd.s32 %s305, 1
      %p309 = scmp.eq.s32.totalorder %s40, 1
      %p310 = scmp.ne.s32.totalorder %s305, %s307
      %p311 = scmp.eq.s32.totalorder %s40, 0
      %p312 = por %p310, %p311
      %p313 = scmp.ne.s32.totalorder %s305, %s307
      %p314 = scmp.eq.s32.totalorder %s45, 1
      %p315 = por %p313, %p314
      %p316 = scmp.ne.s32.totalorder %s307, %s308
      %p317 = scmp.eq.s32.totalorder %s45, 0
      %p318 = por %p316, %p317
      %p319 = scmp.ne.s32.totalorder %s307, %s308
      %p320 = scmp.eq.s32.totalorder %s46, 1
      %p321 = por %p319, %p320
      %p323 = scmp.ne.s32.totalorder %s308, %s322
      %p324 = scmp.eq.s32.totalorder %s46, 0
      %p325 = por %p323, %p324
      %s327 = sadd.s32 %s326, 1
      %p330 = scmp.eq.s32.totalorder %s40, 1
      %p331 = scmp.ne.s32.totalorder %s326, %s328
      %p332 = scmp.eq.s32.totalorder %s40, 0
      %p333 = por %p331, %p332
      %p334 = scmp.ne.s32.totalorder %s326, %s328
      %p335 = scmp.eq.s32.totalorder %s45, 1
      %p336 = por %p334, %p335
      %p337 = scmp.ne.s32.totalorder %s328, %s329
      %p338 = scmp.eq.s32.totalorder %s45, 0
      %p339 = por %p337, %p338
      %p340 = scmp.ne.s32.totalorder %s328, %s329
      %p341 = scmp.eq.s32.totalorder %s46, 1
      %p342 = por %p340, %p341
      %p344 = scmp.ne.s32.totalorder %s329, %s343
      %p345 = scmp.eq.s32.totalorder %s46, 0
      %p346 = por %p344, %p345
      %s348 = sadd.s32 %s347, 1
      %p351 = scmp.eq.s32.totalorder %s40, 1
      %p352 = scmp.ne.s32.totalorder %s347, %s349
      %p353 = scmp.eq.s32.totalorder %s40, 0
      %p354 = por %p352, %p353
      %p355 = scmp.ne.s32.totalorder %s347, %s349
      %p356 = scmp.eq.s32.totalorder %s45, 1
      %p357 = por %p355, %p356
      %p358 = scmp.ne.s32.totalorder %s349, %s350
      %p359 = scmp.eq.s32.totalorder %s45, 0
      %p360 = por %p358, %p359
      %p361 = scmp.ne.s32.totalorder %s349, %s350
      %p362 = scmp.eq.s32.totalorder %s46, 1
      %p363 = por %p361, %p362
      %p365 = scmp.ne.s32.totalorder %s350, %s364
      %p366 = scmp.eq.s32.totalorder %s46, 0
      %p367 = por %p365, %p366
      %s369 = sadd.s32 %s368, 1
      %p372 = scmp.eq.s32.totalorder %s40, 1
      %p373 = scmp.ne.s32.totalorder %s368, %s370
      %p374 = scmp.eq.s32.totalorder %s40, 0
      %p375 = por %p373, %p374
      %p376 = scmp.ne.s32.totalorder %s368, %s370
      %p377 = scmp.eq.s32.totalorder %s45, 1
      %p378 = por %p376, %p377
      %p379 = scmp.ne.s32.totalorder %s370, %s371
      %p380 = scmp.eq.s32.totalorder %s45, 0
      %p381 = por %p379, %p380
      %p382 = scmp.ne.s32.totalorder %s370, %s371
      %p383 = scmp.eq.s32.totalorder %s46, 1
      %p384 = por %p382, %p383
      %p386 = scmp.ne.s32.totalorder %s371, %s385
      %p387 = scmp.eq.s32.totalorder %s46, 0
      %p388 = por %p386, %p387
      %s390 = sadd.s32 %s389, 1
      %p393 = scmp.eq.s32.totalorder %s40, 1
      %p394 = scmp.ne.s32.totalorder %s389, %s391
      %p395 = scmp.eq.s32.totalorder %s40, 0
      %p396 = por %p394, %p395
      %p397 = scmp.ne.s32.totalorder %s389, %s391
      %p398 = scmp.eq.s32.totalorder %s45, 1
      %p399 = por %p397, %p398
      %p400 = scmp.ne.s32.totalorder %s391, %s392
      %p401 = scmp.eq.s32.totalorder %s45, 0
      %p402 = por %p400, %p401
      %p403 = scmp.ne.s32.totalorder %s391, %s392
      %p404 = scmp.eq.s32.totalorder %s46, 1
      %p405 = por %p403, %p404
      %p407 = scmp.ne.s32.totalorder %s392, %s406
      %p408 = scmp.eq.s32.totalorder %s46, 0
      %p409 = por %p407, %p408
      %s411 = sadd.s32 %s410, 1
      %p414 = scmp.eq.s32.totalorder %s40, 1
      %p415 = scmp.ne.s32.totalorder %s410, %s412
      %p416 = scmp.eq.s32.totalorder %s40, 0
      %p417 = por %p415, %p416
      %p418 = scmp.ne.s32.totalorder %s410, %s412
      %p419 = scmp.eq.s32.totalorder %s45, 1
      %p420 = por %p418, %p419
      %p421 = scmp.ne.s32.totalorder %s412, %s413
      %p422 = scmp.eq.s32.totalorder %s45, 0
      %p423 = por %p421, %p422
      %p424 = scmp.ne.s32.totalorder %s412, %s413
      %p425 = scmp.eq.s32.totalorder %s46, 1
      %p426 = por %p424, %p425
      %p428 = scmp.ne.s32.totalorder %s413, %s427
      %p429 = scmp.eq.s32.totalorder %s46, 0
      %p430 = por %p428, %p429
      %s432 = sadd.s32 %s431, 1
      %p435 = scmp.eq.s32.totalorder %s40, 1
      %p436 = scmp.ne.s32.totalorder %s431, %s433
      %p437 = scmp.eq.s32.totalorder %s40, 0
      %p438 = por %p436, %p437
      %p439 = scmp.ne.s32.totalorder %s431, %s433
      %p440 = scmp.eq.s32.totalorder %s45, 1
      %p441 = por %p439, %p440
      %p442 = scmp.ne.s32.totalorder %s433, %s434
      %p443 = scmp.eq.s32.totalorder %s45, 0
      %p444 = por %p442, %p443
      %p445 = scmp.ne.s32.totalorder %s433, %s434
      %p446 = scmp.eq.s32.totalorder %s46, 1
      %p447 = por %p445, %p446
      %p449 = scmp.ne.s32.totalorder %s434, %s448
      %p450 = scmp.eq.s32.totalorder %s46, 0
      %p451 = por %p449, %p450
      %s453 = sadd.s32 %s452, 1
      %p456 = scmp.eq.s32.totalorder %s40, 1
      %p457 = scmp.ne.s32.totalorder %s452, %s454
      %p458 = scmp.eq.s32.totalorder %s40, 0
      %p459 = por %p457, %p458
      %p460 = scmp.ne.s32.totalorder %s452, %s454
      %p461 = scmp.eq.s32.totalorder %s45, 1
      %p462 = por %p460, %p461
      %p463 = scmp.ne.s32.totalorder %s454, %s455
      %p464 = scmp.eq.s32.totalorder %s45, 0
      %p465 = por %p463, %p464
      %p466 = scmp.ne.s32.totalorder %s454, %s455
      %p467 = scmp.eq.s32.totalorder %s46, 1
      %p468 = por %p466, %p467
      %p470 = scmp.ne.s32.totalorder %s455, %s469
      %p471 = scmp.eq.s32.totalorder %s46, 0
      %p472 = por %p470, %p471
      %s474 = sadd.s32 %s473, 1
      %p477 = scmp.eq.s32.totalorder %s40, 1
      %p478 = scmp.ne.s32.totalorder %s473, %s475
      %p479 = scmp.eq.s32.totalorder %s40, 0
      %p480 = por %p478, %p479
      %p481 = scmp.ne.s32.totalorder %s473, %s475
      %p482 = scmp.eq.s32.totalorder %s45, 1
      %p483 = por %p481, %p482
      %p484 = scmp.ne.s32.totalorder %s475, %s476
      %p485 = scmp.eq.s32.totalorder %s45, 0
      %p486 = por %p484, %p485
      %p487 = scmp.ne.s32.totalorder %s475, %s476
      %p488 = scmp.eq.s32.totalorder %s46, 1
      %p489 = por %p487, %p488
      %p491 = scmp.ne.s32.totalorder %s476, %s490
      %p492 = scmp.eq.s32.totalorder %s46, 0
      %p493 = por %p491, %p492
      %s495 = sadd.s32 %s494, 1
      %p498 = scmp.eq.s32.totalorder %s40, 1
      %p499 = scmp.ne.s32.totalorder %s494, %s496
      %p500 = scmp.eq.s32.totalorder %s40, 0
      %p501 = por %p499, %p500
      %p502 = scmp.ne.s32.totalorder %s494, %s496
      %p503 = scmp.eq.s32.totalorder %s45, 1
      %p504 = por %p502, %p503
      %p505 = scmp.ne.s32.totalorder %s496, %s497
      %p506 = scmp.eq.s32.totalorder %s45, 0
      %p507 = por %p505, %p506
      %p508 = scmp.ne.s32.totalorder %s496, %s497
      %p509 = scmp.eq.s32.totalorder %s46, 1
      %p510 = por %p508, %p509
      %p512 = scmp.ne.s32.totalorder %s497, %s511
      %p513 = scmp.eq.s32.totalorder %s46, 0
      %p514 = por %p512, %p513
      %s516 = sadd.s32 %s515, 1
      %p519 = scmp.eq.s32.totalorder %s40, 1
      %p520 = scmp.ne.s32.totalorder %s515, %s517
      %p521 = scmp.eq.s32.totalorder %s40, 0
      %p522 = por %p520, %p521
      %p523 = scmp.ne.s32.totalorder %s515, %s517
      %p524 = scmp.eq.s32.totalorder %s45, 1
      %p525 = por %p523, %p524
      %p526 = scmp.ne.s32.totalorder %s517, %s518
      %p527 = scmp.eq.s32.totalorder %s45, 0
      %p528 = por %p526, %p527
      %p529 = scmp.ne.s32.totalorder %s517, %s518
      %p530 = scmp.eq.s32.totalorder %s46, 1
      %p531 = por %p529, %p530
      %p533 = scmp.ne.s32.totalorder %s518, %s532
      %p534 = scmp.eq.s32.totalorder %s46, 0
      %p535 = por %p533, %p534
      %s537 = sadd.s32 %s536, 1
      %p540 = scmp.eq.s32.totalorder %s40, 1
      %p541 = scmp.ne.s32.totalorder %s536, %s538
      %p542 = scmp.eq.s32.totalorder %s40, 0
      %p543 = por %p541, %p542
      %p544 = scmp.ne.s32.totalorder %s536, %s538
      %p545 = scmp.eq.s32.totalorder %s45, 1
      %p546 = por %p544, %p545
      %p547 = scmp.ne.s32.totalorder %s538, %s539
      %p548 = scmp.eq.s32.totalorder %s45, 0
      %p549 = por %p547, %p548
      %p550 = scmp.ne.s32.totalorder %s538, %s539
      %p551 = scmp.eq.s32.totalorder %s46, 1
      %p552 = por %p550, %p551
      %p554 = scmp.ne.s32.totalorder %s539, %s553
      %p555 = scmp.eq.s32.totalorder %s46, 0
      %p556 = por %p554, %p555
      %s558 = sadd.s32 %s557, 1
      %p561 = scmp.eq.s32.totalorder %s40, 1
      %p562 = scmp.ne.s32.totalorder %s557, %s559
      %p563 = scmp.eq.s32.totalorder %s40, 0
      %p564 = por %p562, %p563
      %p565 = scmp.ne.s32.totalorder %s557, %s559
      %p566 = scmp.eq.s32.totalorder %s45, 1
      %p567 = por %p565, %p566
      %p568 = scmp.ne.s32.totalorder %s559, %s560
      %p569 = scmp.eq.s32.totalorder %s45, 0
      %p570 = por %p568, %p569
      %p571 = scmp.ne.s32.totalorder %s559, %s560
      %p572 = scmp.eq.s32.totalorder %s46, 1
      %p573 = por %p571, %p572
      %p575 = scmp.ne.s32.totalorder %s560, %s574
      %p576 = scmp.eq.s32.totalorder %s46, 0
      %p577 = por %p575, %p576
      %s578 = ssub.s32 %s40, %s47
      %p579 = scmp.eq.s32.totalorder %s578, 0
      %s581 = sadd.s32 %s580, 1
      %s582 = scalar_select %p579, %s580, %s581
      %p585 = pneg %p579
      %p586 = scmp.eq.s32.totalorder %s40, 1
      %p587 = por %p585, %p586
      %p588 = scmp.ne.s32.totalorder %s580, %s583
      %p589 = scmp.eq.s32.totalorder %s40, 0
      %p590 = por %p588, %p589
      %p591 = scmp.ne.s32.totalorder %s580, %s583
      %p592 = scmp.eq.s32.totalorder %s45, 1
      %p593 = por %p591, %p592
      %p594 = scmp.ne.s32.totalorder %s583, %s584
      %p595 = scmp.eq.s32.totalorder %s45, 0
      %p596 = por %p594, %p595
      %p597 = scmp.ne.s32.totalorder %s583, %s584
      %p598 = scmp.eq.s32.totalorder %s46, 1
      %p599 = por %p597, %p598
      %p601 = scmp.ne.s32.totalorder %s584, %s600
      %p602 = scmp.eq.s32.totalorder %s46, 0
      %p603 = por %p601, %p602
      %p604 = scmp.le.s32.totalorder 1, %s40
      %p605 = scmp.lt.s32.totalorder %s40, 3
      %p606 = pnand %p604, %p605
      %p607 = pneg %p606
      // Predicated region
      $region9: #{tpu_custom_call.1} parent=5 // pred_check
        _
      $region10: #{tpu_custom_call.1} parent=5 // pred_check_branch
        %609 = sbr.rel (%p606) target = $region12
      $region11: #{tpu_custom_call.1} parent=5 // pred_region
        %s610 = ssub.s32 %s40, 1
        // Predicated region
        $region13: #{tpu_custom_call.1} parent=11 // pred_check
          %p611 = pneg %p87
        $region14: #{tpu_custom_call.1} parent=11 // pred_check_branch
          %613 = sbr.rel (%p611) target = $region16
        $region15: #{tpu_custom_call.1} parent=11 // pred_region
          %s615 = ssub.s32 256, 256
          %616 = vsyncadd [#allocation3], %s615
          %s617 = sshll.u32 [#allocation2], 4
          %s618 = int_to_ptr.vmem [resolvable:$true] %s617
          %623 = dma.hbm_to_vmem [thread:$0]  %s1, 256, %s618, [#allocation3], 64, 64, 4
        $region16: #{tpu_custom_call.1} parent=11 // pred_fallthru
          _
        // Predicated region
        $region17: #{tpu_custom_call.1} parent=11 // pred_check
          %p624 = pneg %p108
        $region18: #{tpu_custom_call.1} parent=11 // pred_check_branch
          %626 = sbr.rel (%p624) target = $region20
        $region19: #{tpu_custom_call.1} parent=11 // pred_region
          _
        $region20: #{tpu_custom_call.1} parent=11 // pred_fallthru
          _
        // Predicated region
        $region21: #{tpu_custom_call.1} parent=11 // pred_check
          %p627 = pneg %p129
        $region22: #{tpu_custom_call.1} parent=11 // pred_check_branch
          %629 = sbr.rel (%p627) target = $region24
        $region23: #{tpu_custom_call.1} parent=11 // pred_region
          _
        $region24: #{tpu_custom_call.1} parent=11 // pred_fallthru
          _
        // Predicated region
        $region25: #{tpu_custom_call.1} parent=11 // pred_check
          %p630 = pneg %p150
        $region26: #{tpu_custom_call.1} parent=11 // pred_check_branch
          %632 = sbr.rel (%p630) target = $region28
        $region27: #{tpu_custom_call.1} parent=11 // pred_region
          _
        $region28: #{tpu_custom_call.1} parent=11 // pred_fallthru
          _
        // Predicated region
        $region29: #{tpu_custom_call.1} parent=11 // pred_check
          %p633 = pneg %p171
        $region30: #{tpu_custom_call.1} parent=11 // pred_check_branch
          %635 = sbr.rel (%p633) target = $region32
        $region31: #{tpu_custom_call.1} parent=11 // pred_region
          _
        $region32: #{tpu_custom_call.1} parent=11 // pred_fallthru
          _
        // Predicated region
        $region33: #{tpu_custom_call.1} parent=11 // pred_check
          %p636 = pneg %p192
        $region34: #{tpu_custom_call.1} parent=11 // pred_check_branch
          %638 = sbr.rel (%p636) target = $region36
        $region35: #{tpu_custom_call.1} parent=11 // pred_region
          _
        $region36: #{tpu_custom_call.1} parent=11 // pred_fallthru
          _
        // Predicated region
        $region37: #{tpu_custom_call.1} parent=11 // pred_check
          %p639 = pneg %p213
        $region38: #{tpu_custom_call.1} parent=11 // pred_check_branch
          %641 = sbr.rel (%p639) target = $region40
        $region39: #{tpu_custom_call.1} parent=11 // pred_region
          _
        $region40: #{tpu_custom_call.1} parent=11 // pred_fallthru
          _
        // Predicated region
        $region41: #{tpu_custom_call.1} parent=11 // pred_check
          %p642 = pneg %p234
        $region42: #{tpu_custom_call.1} parent=11 // pred_check_branch
          %644 = sbr.rel (%p642) target = $region44
        $region43: #{tpu_custom_call.1} parent=11 // pred_region
          _
        $region44: #{tpu_custom_call.1} parent=11 // pred_fallthru
          _
        // Predicated region
        $region45: #{tpu_custom_call.1} parent=11 // pred_check
          %p645 = pneg %p255
        $region46: #{tpu_custom_call.1} parent=11 // pred_check_branch
          %647 = sbr.rel (%p645) target = $region48
        $region47: #{tpu_custom_call.1} parent=11 // pred_region
          _
        $region48: #{tpu_custom_call.1} parent=11 // pred_fallthru
          _
        // Predicated region
        $region49: #{tpu_custom_call.1} parent=11 // pred_check
          %p648 = pneg %p276
        $region50: #{tpu_custom_call.1} parent=11 // pred_check_branch
          %650 = sbr.rel (%p648) target = $region52
        $region51: #{tpu_custom_call.1} parent=11 // pred_region
          %s652 = ssub.s32 16, 16
          %653 = vsyncadd [#allocation6], %s652
          %s655 = sshll.u32 [#allocation5], 4
          %s656 = int_to_ptr.vmem [resolvable:$true] %s655
          %658 = dma.hbm_to_vmem [thread:$0]  %s10, 16, %s656, [#allocation6]
        $region52: #{tpu_custom_call.1} parent=11 // pred_fallthru
          _
        // Predicated region
        $region53: #{tpu_custom_call.1} parent=11 // pred_check
          %p659 = pneg %p297
        $region54: #{tpu_custom_call.1} parent=11 // pred_check_branch
          %661 = sbr.rel (%p659) target = $region56
        $region55: #{tpu_custom_call.1} parent=11 // pred_region
          _
        $region56: #{tpu_custom_call.1} parent=11 // pred_fallthru
          _
        // Predicated region
        $region57: #{tpu_custom_call.1} parent=11 // pred_check
          %p662 = pneg %p318
        $region58: #{tpu_custom_call.1} parent=11 // pred_check_branch
          %664 = sbr.rel (%p662) target = $region60
        $region59: #{tpu_custom_call.1} parent=11 // pred_region
          %s666 = ssub.s32 16, 16
          %667 = vsyncadd [#allocation6], %s666
          %s669 = sshll.u32 [#allocation7], 4
          %s670 = int_to_ptr.vmem [resolvable:$true] %s669
          %672 = dma.hbm_to_vmem [thread:$0]  %s12, 16, %s670, [#allocation6]
        $region60: #{tpu_custom_call.1} parent=11 // pred_fallthru
          _
        // Predicated region
        $region61: #{tpu_custom_call.1} parent=11 // pred_check
          %p673 = pneg %p339
        $region62: #{tpu_custom_call.1} parent=11 // pred_check_branch
          %675 = sbr.rel (%p673) target = $region64
        $region63: #{tpu_custom_call.1} parent=11 // pred_region
          %s677 = ssub.s32 1024, 1024
          %678 = vsyncadd [#allocation9], %s677
          %s679 = sshll.u32 [#allocation8], 4
          %s680 = int_to_ptr.vmem [resolvable:$true] %s679
          %685 = dma.hbm_to_vmem [thread:$0]  %s13, 1024, %s680, [#allocation9], 64, 64, 4
        $region64: #{tpu_custom_call.1} parent=11 // pred_fallthru
          _
        // Predicated region
        $region65: #{tpu_custom_call.1} parent=11 // pred_check
          %p686 = pneg %p360
        $region66: #{tpu_custom_call.1} parent=11 // pred_check_branch
          %688 = sbr.rel (%p686) target = $region68
        $region67: #{tpu_custom_call.1} parent=11 // pred_region
          %s690 = ssub.s32 16, 16
          %691 = vsyncadd [#allocation9], %s690
          %s693 = sshll.u32 [#allocation10], 4
          %s694 = int_to_ptr.vmem [resolvable:$true] %s693
          %696 = dma.hbm_to_vmem [thread:$0]  %s14, 16, %s694, [#allocation9]
        $region68: #{tpu_custom_call.1} parent=11 // pred_fallthru
          _
        // Predicated region
        $region69: #{tpu_custom_call.1} parent=11 // pred_check
          %p697 = pneg %p381
        $region70: #{tpu_custom_call.1} parent=11 // pred_check_branch
          %699 = sbr.rel (%p697) target = $region72
        $region71: #{tpu_custom_call.1} parent=11 // pred_region
          %s701 = ssub.s32 1024, 1024
          %702 = vsyncadd [#allocation12], %s701
          %s703 = sshll.u32 [#allocation11], 4
          %s704 = int_to_ptr.vmem [resolvable:$true] %s703
          %709 = dma.hbm_to_vmem [thread:$0]  %s15, 1024, %s704, [#allocation12], 64, 64, 4
        $region72: #{tpu_custom_call.1} parent=11 // pred_fallthru
          _
        // Predicated region
        $region73: #{tpu_custom_call.1} parent=11 // pred_check
          %p710 = pneg %p402
        $region74: #{tpu_custom_call.1} parent=11 // pred_check_branch
          %712 = sbr.rel (%p710) target = $region76
        $region75: #{tpu_custom_call.1} parent=11 // pred_region
          %s714 = ssub.s32 16, 16
          %715 = vsyncadd [#allocation12], %s714
          %s717 = sshll.u32 [#allocation13], 4
          %s718 = int_to_ptr.vmem [resolvable:$true] %s717
          %720 = dma.hbm_to_vmem [thread:$0]  %s16, 16, %s718, [#allocation12]
        $region76: #{tpu_custom_call.1} parent=11 // pred_fallthru
          _
        // Predicated region
        $region77: #{tpu_custom_call.1} parent=11 // pred_check
          %p721 = pneg %p423
        $region78: #{tpu_custom_call.1} parent=11 // pred_check_branch
          %723 = sbr.rel (%p721) target = $region80
        $region79: #{tpu_custom_call.1} parent=11 // pred_region
          %s725 = ssub.s32 1024, 1024
          %726 = vsyncadd [#allocation15], %s725
          %s727 = sshll.u32 [#allocation14], 4
          %s728 = int_to_ptr.vmem [resolvable:$true] %s727
          %733 = dma.hbm_to_vmem [thread:$0]  %s17, 1024, %s728, [#allocation15], 64, 64, 4
        $region80: #{tpu_custom_call.1} parent=11 // pred_fallthru
          _
        // Predicated region
        $region81: #{tpu_custom_call.1} parent=11 // pred_check
          %p734 = pneg %p444
        $region82: #{tpu_custom_call.1} parent=11 // pred_check_branch
          %736 = sbr.rel (%p734) target = $region84
        $region83: #{tpu_custom_call.1} parent=11 // pred_region
          %s738 = ssub.s32 16, 16
          %739 = vsyncadd [#allocation15], %s738
          %s741 = sshll.u32 [#allocation16], 4
          %s742 = int_to_ptr.vmem [resolvable:$true] %s741
          %744 = dma.hbm_to_vmem [thread:$0]  %s18, 16, %s742, [#allocation15]
        $region84: #{tpu_custom_call.1} parent=11 // pred_fallthru
          _
        // Predicated region
        $region85: #{tpu_custom_call.1} parent=11 // pred_check
          %p745 = pneg %p465
        $region86: #{tpu_custom_call.1} parent=11 // pred_check_branch
          %747 = sbr.rel (%p745) target = $region88
        $region87: #{tpu_custom_call.1} parent=11 // pred_region
          _
        $region88: #{tpu_custom_call.1} parent=11 // pred_fallthru
          _
        // Predicated region
        $region89: #{tpu_custom_call.1} parent=11 // pred_check
          %p748 = pneg %p486
        $region90: #{tpu_custom_call.1} parent=11 // pred_check_branch
          %750 = sbr.rel (%p748) target = $region92
        $region91: #{tpu_custom_call.1} parent=11 // pred_region
          _
        $region92: #{tpu_custom_call.1} parent=11 // pred_fallthru
          _
        // Predicated region
        $region93: #{tpu_custom_call.1} parent=11 // pred_check
          %p751 = pneg %p507
        $region94: #{tpu_custom_call.1} parent=11 // pred_check_branch
          %753 = sbr.rel (%p751) target = $region96
        $region95: #{tpu_custom_call.1} parent=11 // pred_region
          %s755 = ssub.s32 1024, 1024
          %756 = vsyncadd [#allocation18], %s755
          %s757 = sshll.u32 [#allocation17], 4
          %s758 = int_to_ptr.vmem [resolvable:$true] %s757
          %763 = dma.hbm_to_vmem [thread:$0]  %s21, 1024, %s758, [#allocation18], 64, 64, 4
        $region96: #{tpu_custom_call.1} parent=11 // pred_fallthru
          _
        // Predicated region
        $region97: #{tpu_custom_call.1} parent=11 // pred_check
          %p764 = pneg %p528
        $region98: #{tpu_custom_call.1} parent=11 // pred_check_branch
          %766 = sbr.rel (%p764) target = $region100
        $region99: #{tpu_custom_call.1} parent=11 // pred_region
          _
        $region100: #{tpu_custom_call.1} parent=11 // pred_fallthru
          _
        // Predicated region
        $region101: #{tpu_custom_call.1} parent=11 // pred_check
          %p767 = pneg %p549
        $region102: #{tpu_custom_call.1} parent=11 // pred_check_branch
          %769 = sbr.rel (%p767) target = $region104
        $region103: #{tpu_custom_call.1} parent=11 // pred_region
          %s771 = ssub.s32 1024, 1024
          %772 = vsyncadd [#allocation18], %s771
          %s773 = sshll.u32 [#allocation19], 4
          %s774 = int_to_ptr.vmem [resolvable:$true] %s773
          %779 = dma.hbm_to_vmem [thread:$0]  %s23, 1024, %s774, [#allocation18], 64, 64, 4
        $region104: #{tpu_custom_call.1} parent=11 // pred_fallthru
          _
        // Predicated region
        $region105: #{tpu_custom_call.1} parent=11 // pred_check
          %p780 = pneg %p570
        $region106: #{tpu_custom_call.1} parent=11 // pred_check_branch
          %782 = sbr.rel (%p780) target = $region108
        $region107: #{tpu_custom_call.1} parent=11 // pred_region
          _
        $region108: #{tpu_custom_call.1} parent=11 // pred_fallthru
          _
      $region12: #{tpu_custom_call.1} parent=5 // pred_fallthru
        _
      %p783 = scmp.lt.s32.totalorder %s40, 2
      // Predicated region
      $region109: #{tpu_custom_call.1} parent=5 // pred_check
        %p784 = pneg %p783
      $region110: #{tpu_custom_call.1} parent=5 // pred_check_branch
        %786 = sbr.rel (%p784) target = $region112
      $region111: #{tpu_custom_call.1} parent=5 // pred_region
        // Predicated region
        $region113: #{tpu_custom_call.1} parent=111 // pred_check
          %p787 = pneg %p60
        $region114: #{tpu_custom_call.1} parent=111 // pred_check_branch
          %789 = sbr.rel (%p787) target = $region116
        $region115: #{tpu_custom_call.1} parent=111 // pred_region
          %s790 = smul.u32 16, %s40
          %p791 = scmp.lt.s32.totalorder %s790, 31
          %s792 = scalar_select %p791, %s790, 31
          %s793 = smul.addr %s792, 8
          %s794 = scalar_lea.vmem %s0, %s793
          %s795 = smul.u32 16, %s40
        $region116: #{tpu_custom_call.1} parent=111 // pred_fallthru
          _
      $region112: #{tpu_custom_call.1} parent=5 // pred_fallthru
        _
      %p796 = scmp.le.s32.totalorder 1, %s40
      %p797 = scmp.lt.s32.totalorder %s40, 3
      %p798 = pnand %p796, %p797
      %p799 = pneg %p798
      // Predicated region
      $region117: #{tpu_custom_call.1} parent=5 // pred_check
        _
      $region118: #{tpu_custom_call.1} parent=5 // pred_check_branch
        %801 = sbr.rel (%p798) target = $region120
      $region119: #{tpu_custom_call.1} parent=5 // pred_region
        %s802 = ssub.s32 %s40, 1
        // Predicated region
        $region121: #{tpu_custom_call.1} parent=119 // pred_check
          %p803 = pneg %p87
        $region122: #{tpu_custom_call.1} parent=119 // pred_check_branch
          %805 = sbr.rel (%p803) target = $region124
        $region123: #{tpu_custom_call.1} parent=119 // pred_region
          %806 = dma.done [#allocation3], 256
        $region124: #{tpu_custom_call.1} parent=119 // pred_fallthru
          _
        // Predicated region
        $region125: #{tpu_custom_call.1} parent=119 // pred_check
          %p807 = pneg %p276
        $region126: #{tpu_custom_call.1} parent=119 // pred_check_branch
          %809 = sbr.rel (%p807) target = $region128
        $region127: #{tpu_custom_call.1} parent=119 // pred_region
          %810 = dma.done [#allocation6], 16
        $region128: #{tpu_custom_call.1} parent=119 // pred_fallthru
          _
        // Predicated region
        $region129: #{tpu_custom_call.1} parent=119 // pred_check
          %p811 = pneg %p318
        $region130: #{tpu_custom_call.1} parent=119 // pred_check_branch
          %813 = sbr.rel (%p811) target = $region132
        $region131: #{tpu_custom_call.1} parent=119 // pred_region
          %814 = dma.done [#allocation6], 16
        $region132: #{tpu_custom_call.1} parent=119 // pred_fallthru
          _
        // Predicated region
        $region133: #{tpu_custom_call.1} parent=119 // pred_check
          %p815 = pneg %p339
        $region134: #{tpu_custom_call.1} parent=119 // pred_check_branch
          %817 = sbr.rel (%p815) target = $region136
        $region135: #{tpu_custom_call.1} parent=119 // pred_region
          %818 = dma.done [#allocation9], 1024
        $region136: #{tpu_custom_call.1} parent=119 // pred_fallthru
          _
        // Predicated region
        $region137: #{tpu_custom_call.1} parent=119 // pred_check
          %p819 = pneg %p360
        $region138: #{tpu_custom_call.1} parent=119 // pred_check_branch
          %821 = sbr.rel (%p819) target = $region140
        $region139: #{tpu_custom_call.1} parent=119 // pred_region
          %822 = dma.done [#allocation9], 16
        $region140: #{tpu_custom_call.1} parent=119 // pred_fallthru
          _
        // Predicated region
        $region141: #{tpu_custom_call.1} parent=119 // pred_check
          %p823 = pneg %p381
        $region142: #{tpu_custom_call.1} parent=119 // pred_check_branch
          %825 = sbr.rel (%p823) target = $region144
        $region143: #{tpu_custom_call.1} parent=119 // pred_region
          %826 = dma.done [#allocation12], 1024
        $region144: #{tpu_custom_call.1} parent=119 // pred_fallthru
          _
        // Predicated region
        $region145: #{tpu_custom_call.1} parent=119 // pred_check
          %p827 = pneg %p402
        $region146: #{tpu_custom_call.1} parent=119 // pred_check_branch
          %829 = sbr.rel (%p827) target = $region148
        $region147: #{tpu_custom_call.1} parent=119 // pred_region
          %830 = dma.done [#allocation12], 16
        $region148: #{tpu_custom_call.1} parent=119 // pred_fallthru
          _
        // Predicated region
        $region149: #{tpu_custom_call.1} parent=119 // pred_check
          %p831 = pneg %p423
        $region150: #{tpu_custom_call.1} parent=119 // pred_check_branch
          %833 = sbr.rel (%p831) target = $region152
        $region151: #{tpu_custom_call.1} parent=119 // pred_region
          %834 = dma.done [#allocation15], 1024
        $region152: #{tpu_custom_call.1} parent=119 // pred_fallthru
          _
        // Predicated region
        $region153: #{tpu_custom_call.1} parent=119 // pred_check
          %p835 = pneg %p444
        $region154: #{tpu_custom_call.1} parent=119 // pred_check_branch
          %837 = sbr.rel (%p835) target = $region156
        $region155: #{tpu_custom_call.1} parent=119 // pred_region
          %838 = dma.done [#allocation15], 16
        $region156: #{tpu_custom_call.1} parent=119 // pred_fallthru
          _
        // Predicated region
        $region157: #{tpu_custom_call.1} parent=119 // pred_check
          %p839 = pneg %p507
        $region158: #{tpu_custom_call.1} parent=119 // pred_check_branch
          %841 = sbr.rel (%p839) target = $region160
        $region159: #{tpu_custom_call.1} parent=119 // pred_region
          %842 = dma.done [#allocation18], 1024
        $region160: #{tpu_custom_call.1} parent=119 // pred_fallthru
          _
        // Predicated region
        $region161: #{tpu_custom_call.1} parent=119 // pred_check
          %p843 = pneg %p549
        $region162: #{tpu_custom_call.1} parent=119 // pred_check_branch
          %845 = sbr.rel (%p843) target = $region164
        $region163: #{tpu_custom_call.1} parent=119 // pred_region
          %846 = dma.done [#allocation18], 1024
        $region164: #{tpu_custom_call.1} parent=119 // pred_fallthru
          _
        %s847 = smul.u32 16, %s45
        %p848 = scmp.lt.s32.totalorder %s847, 31
        %s849 = scalar_select %p848, %s847, 31
        %s850 = smul.addr %s849, 8
        %s851 = scalar_lea.vmem %s0, %s850
        %p852 = pneg %p66
        %p853 = pneg %p63
        %p854 = pneg %p87
        %p855 = pneg %p84
        %p856 = pneg %p108
        %p857 = pneg %p105
        %p858 = pneg %p129
        %p859 = pneg %p126
        %p860 = pneg %p150
        %p861 = pneg %p147
        %p862 = pneg %p171
        %p863 = pneg %p168
        %p864 = pneg %p192
        %p865 = pneg %p189
        %p866 = pneg %p213
        %p867 = pneg %p210
        %p868 = pneg %p234
        %p869 = pneg %p231
        %p870 = pneg %p255
        %p871 = pneg %p252
        %p872 = pneg %p276
        %p873 = pneg %p273
        %p874 = pneg %p297
        %p875 = pneg %p294
        %p876 = pneg %p318
        %p877 = pneg %p315
        %p878 = pneg %p339
        %p879 = pneg %p336
        %p880 = pneg %p360
        %p881 = pneg %p357
        %p882 = pneg %p381
        %p883 = pneg %p378
        %p884 = pneg %p402
        %p885 = pneg %p399
        %p886 = pneg %p423
        %p887 = pneg %p420
        %p888 = pneg %p444
        %p889 = pneg %p441
        %p890 = pneg %p465
        %p891 = pneg %p462
        %p892 = pneg %p486
        %p893 = pneg %p483
        %p894 = pneg %p507
        %p895 = pneg %p504
        %p896 = pneg %p528
        %p897 = pneg %p525
        %p898 = pneg %p549
        %p899 = pneg %p546
        %p900 = pneg %p570
        %p901 = pneg %p567
        %p902 = pneg %p596
        %p903 = pneg %p593
        %s904 = sand.u32 %s583, 1
        %s905 = scalar_lea.sflag [#allocation4], %s904
        %s906 = sand.u32 %s583, 1
        %s907 = smul.addr %s906, 128
        %s908 = scalar_lea.vmem [#allocation20], %s907
        %s909 = smul.u32 16, %s45
        %p910 = scmp.lt.s32.totalorder %s909, 31
        %s911 = scalar_select %p910, %s909, 31
        %s912 = smul.addr %s911, 8
        %s913 = scalar_lea.vmem %s0, %s912
        %s914 = smul.u32 16, %s45
        %s915 = smul.u32 16, %s45
        %v917 = vld [vmem:[%s913] sm:$0xff]
        %v918 = vld [vmem:[%s913 + $0x8] sm:$0xff]
        %v919 = vld [vmem:[%s913 + $0x10] sm:$0xff]
        %v920 = vld [vmem:[%s913 + $0x18] sm:$0xff]
        %v921 = vld [vmem:[%s913 + $0x20] sm:$0xff]
        %v922 = vld [vmem:[%s913 + $0x28] sm:$0xff]
        %v923 = vld [vmem:[%s913 + $0x30] sm:$0xff]
        %v924 = vld [vmem:[%s913 + $0x38] sm:$0xff]
        %v925 = vld [vmem:[%s913 + $0x40] sm:$0xff]
        %v926 = vld [vmem:[%s913 + $0x48] sm:$0xff]
        %v927 = vld [vmem:[%s913 + $0x50] sm:$0xff]
        %v928 = vld [vmem:[%s913 + $0x58] sm:$0xff]
        %v929 = vld [vmem:[%s913 + $0x60] sm:$0xff]
        %v930 = vld [vmem:[%s913 + $0x68] sm:$0xff]
        %v931 = vld [vmem:[%s913 + $0x70] sm:$0xff]
        %v932 = vld [vmem:[%s913 + $0x78] sm:$0xff]
        %v933 = vld [vmem:[#allocation2] sm:$0xf]
        %v934 = vld [vmem:[#allocation2 + $0x4] sm:$0xf]
        %v935 = vld [vmem:[#allocation2 + $0x8] sm:$0xf]
        %v936 = vld [vmem:[#allocation2 + $0xc] sm:$0xf]
        %v937 = vld [vmem:[%s2] sm:$0x1]
        %v938 = vpack.c.bf16 %v918, %v917
        %v939 = vpack.c.bf16 %v920, %v919
        %v940 = vpack.c.bf16 %v922, %v921
        %v941 = vpack.c.bf16 %v924, %v923
        %v942 = vpack.c.bf16 %v926, %v925
        %v943 = vpack.c.bf16 %v928, %v927
        %v944 = vpack.c.bf16 %v930, %v929
        %v945 = vpack.c.bf16 %v932, %v931
        %v947 = vlaneseq
        %v948 = vshrl.u32 %v947, 7
        %v949 = vsub.s32 0, %v948
        %v950 = vrot.slane %v937, %v949
        %v956 = vunpack.c.l.b16 %v933
        %v957 = vunpack.c.l.b16 %v934
        %v958 = vunpack.c.l.b16 %v935
        %v959 = vunpack.c.l.b16 %v936
        %v960 = vpack.c.b16 %v957, %v956
        %v961 = vpack.c.b16 %v959, %v958
        %vm964 = vcmask 261120
        %v966 = vsel %vm964, %v938, 0
        %v969 = vsel %vm964, %v939, 0
        %v972 = vsel %vm964, %v940, 0
        %v975 = vsel %vm964, %v941, 0
        %v978 = vsel %vm964, %v942, 0
        %v981 = vsel %vm964, %v943, 0
        %v984 = vsel %vm964, %v944, 0
        %v987 = vsel %vm964, %v945, 0
        %989 = vmatprep.subr.bf16.mxu0 0
        %990 = vmatpush1.bf16.msra.mxu0 %v960
        %991 = vmatprep.subr.bf16.mxu0 0
        %992 = vmatpush1.bf16.msra.mxu0 %v961
        %993 = vmatprep.subr.bf16.mxu0 0
        %994 = vmatpush1.bf16.msra.mxu0 0
        %995 = vmatprep.subr.bf16.mxu0 0
        %996 = vmatpush1.bf16.msra.mxu0 0
        %997 = vmatprep.subr.bf16.mxu0 0
        %998 = vmatpush1.bf16.msra.mxu0 0
        %999 = vmatprep.subr.bf16.mxu0 0
        %1000 = vmatpush1.bf16.msra.mxu0 0
        %1001 = vmatprep.subr.bf16.mxu0 0
        %1002 = vmatpush1.bf16.msra.mxu0 0
        %1003 = vmatprep.subr.bf16.mxu0 0
        %1004 = vmatpush1.bf16.msra.mxu0 0
        %1005 = vmatprep.subr.bf16.mxu0 0
        %1006 = vmatpush1.bf16.msra.mxu0 0
        %1007 = vmatprep.subr.bf16.mxu0 0
        %1008 = vmatpush1.bf16.msra.mxu0 0
        %1009 = vmatprep.subr.bf16.mxu0 0
        %1010 = vmatpush1.bf16.msra.mxu0 0
        %1011 = vmatprep.subr.bf16.mxu0 0
        %1012 = vmatpush1.bf16.msra.mxu0 0
        %1013 = vmatprep.subr.bf16.mxu0 0
        %1014 = vmatpush1.bf16.msra.mxu0 0
        %1015 = vmatprep.subr.bf16.mxu0 0
        %1016 = vmatpush1.bf16.msra.mxu0 0
        %1017 = vmatprep.subr.bf16.mxu0 0
        %1018 = vmatpush1.bf16.msra.mxu0 0
        %1019 = vmatprep.subr.bf16.mxu0 0
        %1020 = vmatpush1.bf16.msra.mxu0 0
        %1021 = vmatprep.mubr.bf16.mxu0 0
        %1022 = vmatmul.mubr.bf16.gmra.mrb[0].mxu0 %v966
        %v1023 = vpop.f32.mrb[0].mxu0
        %v1024 = vadd.f32 %v950, %v1023
        %v1025 = vpop.f32.mrb[0].mxu0
        %v1026 = vpop.f32.mrb[0].mxu0
        %v1027 = vadd.f32 %v950, %v1026
        %v1028 = vpop.f32.mrb[0].mxu0
        %1029 = vmatprep.mubr.bf16.mxu0 0
        %1030 = vmatmul.mubr.bf16.gmra.mrb[0].mxu0 %v969
        %v1031 = vpop.f32.mrb[0].mxu0
        %v1032 = vadd.f32 %v950, %v1031
        %v1033 = vpop.f32.mrb[0].mxu0
        %v1034 = vpop.f32.mrb[0].mxu0
        %v1035 = vadd.f32 %v950, %v1034
        %v1036 = vpop.f32.mrb[0].mxu0
        %1037 = vmatprep.mubr.bf16.mxu0 0
        %1038 = vmatmul.mubr.bf16.gmra.mrb[0].mxu0 %v972
        %v1039 = vpop.f32.mrb[0].mxu0
        %v1040 = vadd.f32 %v950, %v1039
        %v1041 = vpop.f32.mrb[0].mxu0
        %v1042 = vpop.f32.mrb[0].mxu0
        %v1043 = vadd.f32 %v950, %v1042
        %v1044 = vpop.f32.mrb[0].mxu0
        %1045 = vmatprep.mubr.bf16.mxu0 0
        %1046 = vmatmul.mubr.bf16.gmra.mrb[0].mxu0 %v975
        %v1047 = vpop.f32.mrb[0].mxu0
        %v1048 = vadd.f32 %v950, %v1047
        %v1049 = vpop.f32.mrb[0].mxu0
        %v1050 = vpop.f32.mrb[0].mxu0
        %v1051 = vadd.f32 %v950, %v1050
        %v1052 = vpop.f32.mrb[0].mxu0
        %1053 = vmatprep.mubr.bf16.mxu0 0
        %1054 = vmatmul.mubr.bf16.gmra.mrb[0].mxu0 %v978
        %v1055 = vpop.f32.mrb[0].mxu0
        %v1056 = vadd.f32 %v950, %v1055
        %v1057 = vpop.f32.mrb[0].mxu0
        %v1058 = vpop.f32.mrb[0].mxu0
        %v1059 = vadd.f32 %v950, %v1058
        %v1060 = vpop.f32.mrb[0].mxu0
        %1061 = vmatprep.mubr.bf16.mxu0 0
        %1062 = vmatmul.mubr.bf16.gmra.mrb[0].mxu0 %v981
        %v1063 = vpop.f32.mrb[0].mxu0
        %v1064 = vadd.f32 %v950, %v1063
        %v1065 = vpop.f32.mrb[0].mxu0
        %v1066 = vpop.f32.mrb[0].mxu0
        %v1067 = vadd.f32 %v950, %v1066
        %v1068 = vpop.f32.mrb[0].mxu0
        %1069 = vmatprep.mubr.bf16.mxu0 0
        %1070 = vmatmul.mubr.bf16.gmra.mrb[0].mxu0 %v984
        %v1071 = vpop.f32.mrb[0].mxu0
        %v1072 = vadd.f32 %v950, %v1071
        %v1073 = vpop.f32.mrb[0].mxu0
        %v1074 = vpop.f32.mrb[0].mxu0
        %v1075 = vadd.f32 %v950, %v1074
        %v1076 = vpop.f32.mrb[0].mxu0
        %1077 = vmatprep.mubr.bf16.mxu0 0
        %1078 = vmatmul.mubr.bf16.gmra.mrb[0].mxu0 %v987
        %v1079 = vpop.f32.mrb[0].mxu0
        %v1080 = vadd.f32 %v950, %v1079
        %v1081 = vpop.f32.mrb[0].mxu0
        %v1082 = vpop.f32.mrb[0].mxu0
        %v1083 = vadd.f32 %v950, %v1082
        %v1084 = vpop.f32.mrb[0].mxu0
        %1085 = vdwg.mxu0
        %vm1086 = vcmp.gt.f32.partialorder %v1024, 0.0
        %vm1087 = vcmp.gt.f32.partialorder %v1027, 0.0
        %vm1088 = vcmp.gt.f32.partialorder %v1032, 0.0
        %vm1089 = vcmp.gt.f32.partialorder %v1035, 0.0
        %vm1090 = vcmp.gt.f32.partialorder %v1040, 0.0
        %vm1091 = vcmp.gt.f32.partialorder %v1043, 0.0
        %vm1092 = vcmp.gt.f32.partialorder %v1048, 0.0
        %vm1093 = vcmp.gt.f32.partialorder %v1051, 0.0
        %vm1094 = vcmp.gt.f32.partialorder %v1056, 0.0
        %vm1095 = vcmp.gt.f32.partialorder %v1059, 0.0
        %vm1096 = vcmp.gt.f32.partialorder %v1064, 0.0
        %vm1097 = vcmp.gt.f32.partialorder %v1067, 0.0
        %vm1098 = vcmp.gt.f32.partialorder %v1072, 0.0
        %vm1099 = vcmp.gt.f32.partialorder %v1075, 0.0
        %vm1100 = vcmp.gt.f32.partialorder %v1080, 0.0
        %vm1101 = vcmp.gt.f32.partialorder %v1083, 0.0
        %v1102 = vmul.f32 %v1024, 0.1
        %v1103 = vmul.f32 %v1027, 0.1
        %v1104 = vmul.f32 %v1032, 0.1
        %v1105 = vmul.f32 %v1035, 0.1
        %v1106 = vmul.f32 %v1040, 0.1
        %v1107 = vmul.f32 %v1043, 0.1
        %v1108 = vmul.f32 %v1048, 0.1
        %v1109 = vmul.f32 %v1051, 0.1
        %v1110 = vmul.f32 %v1056, 0.1
        %v1111 = vmul.f32 %v1059, 0.1
        %v1112 = vmul.f32 %v1064, 0.1
        %v1113 = vmul.f32 %v1067, 0.1
        %v1114 = vmul.f32 %v1072, 0.1
        %v1115 = vmul.f32 %v1075, 0.1
        %v1116 = vmul.f32 %v1080, 0.1
        %v1117 = vmul.f32 %v1083, 0.1
        %v1118 = vsel %vm1086, %v1024, %v1102
        %v1119 = vsel %vm1087, %v1027, %v1103
        %v1120 = vsel %vm1088, %v1032, %v1104
        %v1121 = vsel %vm1089, %v1035, %v1105
        %v1122 = vsel %vm1090, %v1040, %v1106
        %v1123 = vsel %vm1091, %v1043, %v1107
        %v1124 = vsel %vm1092, %v1048, %v1108
        %v1125 = vsel %vm1093, %v1051, %v1109
        %v1126 = vsel %vm1094, %v1056, %v1110
        %v1127 = vsel %vm1095, %v1059, %v1111
        %v1128 = vsel %vm1096, %v1064, %v1112
        %v1129 = vsel %vm1097, %v1067, %v1113
        %v1130 = vsel %vm1098, %v1072, %v1114
        %v1131 = vsel %vm1099, %v1075, %v1115
        %v1132 = vsel %vm1100, %v1080, %v1116
        %v1133 = vsel %vm1101, %v1083, %v1117
        %v1134 = vld [vmem:[%s3] sm:$0xf]
        %v1135 = vld [vmem:[%s3 + $0x4] sm:$0xf]
        %v1136 = vld [vmem:[%s3 + $0x8] sm:$0xf]
        %v1137 = vld [vmem:[%s3 + $0xc] sm:$0xf]
        %v1138 = vld [vmem:[%s3 + $0x10] sm:$0xf]
        %v1139 = vld [vmem:[%s3 + $0x14] sm:$0xf]
        %v1140 = vld [vmem:[%s3 + $0x18] sm:$0xf]
        %v1141 = vld [vmem:[%s3 + $0x1c] sm:$0xf]
        %v1142 = vld [vmem:[%s3 + $0x20] sm:$0xf]
        %v1143 = vld [vmem:[%s3 + $0x24] sm:$0xf]
        %v1144 = vld [vmem:[%s3 + $0x28] sm:$0xf]
        %v1145 = vld [vmem:[%s3 + $0x2c] sm:$0xf]
        %v1146 = vld [vmem:[%s3 + $0x30] sm:$0xf]
        %v1147 = vld [vmem:[%s3 + $0x34] sm:$0xf]
        %v1148 = vld [vmem:[%s3 + $0x38] sm:$0xf]
        %v1149 = vld [vmem:[%s3 + $0x3c] sm:$0xf]
        %v1150 = vld [vmem:[%s4] sm:$0x1]
        %v1151 = vpack.c.bf16 %v1119, %v1118
        %v1152 = vpack.c.bf16 %v1121, %v1120
        %v1153 = vpack.c.bf16 %v1123, %v1122
        %v1154 = vpack.c.bf16 %v1125, %v1124
        %v1155 = vpack.c.bf16 %v1127, %v1126
        %v1156 = vpack.c.bf16 %v1129, %v1128
        %v1157 = vpack.c.bf16 %v1131, %v1130
        %v1158 = vpack.c.bf16 %v1133, %v1132
        %v1160 = vlaneseq
        %v1161 = vshrl.u32 %v1160, 7
        %v1162 = vsub.s32 0, %v1161
        %v1163 = vrot.slane %v1150, %v1162
        %v1181 = vunpack.c.l.b16 %v1134
        %v1182 = vunpack.c.l.b16 %v1135
        %v1183 = vunpack.c.l.b16 %v1136
        %v1184 = vunpack.c.l.b16 %v1137
        %v1185 = vunpack.c.l.b16 %v1138
        %v1186 = vunpack.c.l.b16 %v1139
        %v1187 = vunpack.c.l.b16 %v1140
        %v1188 = vunpack.c.l.b16 %v1141
        %v1189 = vunpack.c.l.b16 %v1142
        %v1190 = vunpack.c.l.b16 %v1143
        %v1191 = vunpack.c.l.b16 %v1144
        %v1192 = vunpack.c.l.b16 %v1145
        %v1193 = vunpack.c.l.b16 %v1146
        %v1194 = vunpack.c.l.b16 %v1147
        %v1195 = vunpack.c.l.b16 %v1148
        %v1196 = vunpack.c.l.b16 %v1149
        %v1197 = vpack.c.b16 %v1182, %v1181
        %v1198 = vpack.c.b16 %v1184, %v1183
        %v1199 = vpack.c.b16 %v1186, %v1185
        %v1200 = vpack.c.b16 %v1188, %v1187
        %v1201 = vpack.c.b16 %v1190, %v1189
        %v1202 = vpack.c.b16 %v1192, %v1191
        %v1203 = vpack.c.b16 %v1194, %v1193
        %v1204 = vpack.c.b16 %v1196, %v1195
        %1213 = vmatprep.subr.bf16.mxu0 0
        %1214 = vmatpush1.bf16.msra.mxu0 %v1197
        %1215 = vmatprep.subr.bf16.mxu0 0
        %1216 = vmatpush1.bf16.msra.mxu0 %v1198
        %1217 = vmatprep.subr.bf16.mxu0 0
        %1218 = vmatpush1.bf16.msra.mxu0 %v1199
        %1219 = vmatprep.subr.bf16.mxu0 0
        %1220 = vmatpush1.bf16.msra.mxu0 %v1200
        %1221 = vmatprep.subr.bf16.mxu0 0
        %1222 = vmatpush1.bf16.msra.mxu0 %v1201
        %1223 = vmatprep.subr.bf16.mxu0 0
        %1224 = vmatpush1.bf16.msra.mxu0 %v1202
        %1225 = vmatprep.subr.bf16.mxu0 0
        %1226 = vmatpush1.bf16.msra.mxu0 %v1203
        %1227 = vmatprep.subr.bf16.mxu0 0
        %1228 = vmatpush1.bf16.msra.mxu0 %v1204
        %1229 = vmatprep.subr.bf16.mxu0 0
        %1230 = vmatpush1.bf16.msra.mxu0 0
        %1231 = vmatprep.subr.bf16.mxu0 0
        %1232 = vmatpush1.bf16.msra.mxu0 0
        %1233 = vmatprep.subr.bf16.mxu0 0
        %1234 = vmatpush1.bf16.msra.mxu0 0
        %1235 = vmatprep.subr.bf16.mxu0 0
        %1236 = vmatpush1.bf16.msra.mxu0 0
        %1237 = vmatprep.subr.bf16.mxu0 0
        %1238 = vmatpush1.bf16.msra.mxu0 0
        %1239 = vmatprep.subr.bf16.mxu0 0
        %1240 = vmatpush1.bf16.msra.mxu0 0
        %1241 = vmatprep.subr.bf16.mxu0 0
        %1242 = vmatpush1.bf16.msra.mxu0 0
        %1243 = vmatprep.subr.bf16.mxu0 0
        %1244 = vmatpush1.bf16.msra.mxu0 0
        %1245 = vmatprep.mubr.bf16.mxu0 0
        %1246 = vmatmul.mubr.bf16.gmra.mrb[0].mxu0 %v1151
        %v1247 = vpop.f32.mrb[0].mxu0
        %v1248 = vadd.f32 %v1163, %v1247
        %v1249 = vpop.f32.mrb[0].mxu0
        %v1250 = vpop.f32.mrb[0].mxu0
        %v1251 = vadd.f32 %v1163, %v1250
        %v1252 = vpop.f32.mrb[0].mxu0
        %1253 = vmatprep.mubr.bf16.mxu0 0
        %1254 = vmatmul.mubr.bf16.gmra.mrb[0].mxu0 %v1152
        %v1255 = vpop.f32.mrb[0].mxu0
        %v1256 = vadd.f32 %v1163, %v1255
        %v1257 = vpop.f32.mrb[0].mxu0
        %v1258 = vpop.f32.mrb[0].mxu0
        %v1259 = vadd.f32 %v1163, %v1258
        %v1260 = vpop.f32.mrb[0].mxu0
        %1261 = vmatprep.mubr.bf16.mxu0 0
        %1262 = vmatmul.mubr.bf16.gmra.mrb[0].mxu0 %v1153
        %v1263 = vpop.f32.mrb[0].mxu0
        %v1264 = vadd.f32 %v1163, %v1263
        %v1265 = vpop.f32.mrb[0].mxu0
        %v1266 = vpop.f32.mrb[0].mxu0
        %v1267 = vadd.f32 %v1163, %v1266
        %v1268 = vpop.f32.mrb[0].mxu0
        %1269 = vmatprep.mubr.bf16.mxu0 0
        %1270 = vmatmul.mubr.bf16.gmra.mrb[0].mxu0 %v1154
        %v1271 = vpop.f32.mrb[0].mxu0
        %v1272 = vadd.f32 %v1163, %v1271
        %v1273 = vpop.f32.mrb[0].mxu0
        %v1274 = vpop.f32.mrb[0].mxu0
        %v1275 = vadd.f32 %v1163, %v1274
        %v1276 = vpop.f32.mrb[0].mxu0
        %1277 = vmatprep.mubr.bf16.mxu0 0
        %1278 = vmatmul.mubr.bf16.gmra.mrb[0].mxu0 %v1155
        %v1279 = vpop.f32.mrb[0].mxu0
        %v1280 = vadd.f32 %v1163, %v1279
        %v1281 = vpop.f32.mrb[0].mxu0
        %v1282 = vpop.f32.mrb[0].mxu0
        %v1283 = vadd.f32 %v1163, %v1282
        %v1284 = vpop.f32.mrb[0].mxu0
        %1285 = vmatprep.mubr.bf16.mxu0 0
        %1286 = vmatmul.mubr.bf16.gmra.mrb[0].mxu0 %v1156
        %v1287 = vpop.f32.mrb[0].mxu0
        %v1288 = vadd.f32 %v1163, %v1287
        %v1289 = vpop.f32.mrb[0].mxu0
        %v1290 = vpop.f32.mrb[0].mxu0
        %v1291 = vadd.f32 %v1163, %v1290
        %v1292 = vpop.f32.mrb[0].mxu0
        %1293 = vmatprep.mubr.bf16.mxu0 0
        %1294 = vmatmul.mubr.bf16.gmra.mrb[0].mxu0 %v1157
        %v1295 = vpop.f32.mrb[0].mxu0
        %v1296 = vadd.f32 %v1163, %v1295
        %v1297 = vpop.f32.mrb[0].mxu0
        %v1298 = vpop.f32.mrb[0].mxu0
        %v1299 = vadd.f32 %v1163, %v1298
        %v1300 = vpop.f32.mrb[0].mxu0
        %1301 = vmatprep.mubr.bf16.mxu0 0
        %1302 = vmatmul.mubr.bf16.gmra.mrb[0].mxu0 %v1158
        %v1303 = vpop.f32.mrb[0].mxu0
        %v1304 = vadd.f32 %v1163, %v1303
        %v1305 = vpop.f32.mrb[0].mxu0
        %v1306 = vpop.f32.mrb[0].mxu0
        %v1307 = vadd.f32 %v1163, %v1306
        %v1308 = vpop.f32.mrb[0].mxu0
        %1309 = vdwg.mxu0
        %v1310 = vmax.f32 %v1248, 0.0
        %v1311 = vmax.f32 %v1251, 0.0
        %v1312 = vmax.f32 %v1256, 0.0
        %v1313 = vmax.f32 %v1259, 0.0
        %v1314 = vmax.f32 %v1264, 0.0
        %v1315 = vmax.f32 %v1267, 0.0
        %v1316 = vmax.f32 %v1272, 0.0
        %v1317 = vmax.f32 %v1275, 0.0
        %v1318 = vmax.f32 %v1280, 0.0
        %v1319 = vmax.f32 %v1283, 0.0
        %v1320 = vmax.f32 %v1288, 0.0
        %v1321 = vmax.f32 %v1291, 0.0
        %v1322 = vmax.f32 %v1296, 0.0
        %v1323 = vmax.f32 %v1299, 0.0
        %v1324 = vmax.f32 %v1304, 0.0
        %v1325 = vmax.f32 %v1307, 0.0
        %v1326 = vld [vmem:[%s5] sm:$0xf]
        %v1327 = vld [vmem:[%s5 + $0x4] sm:$0xf]
        %v1328 = vld [vmem:[%s5 + $0x8] sm:$0xf]
        %v1329 = vld [vmem:[%s5 + $0xc] sm:$0xf]
        %v1330 = vld [vmem:[%s5 + $0x10] sm:$0xf]
        %v1331 = vld [vmem:[%s5 + $0x14] sm:$0xf]
        %v1332 = vld [vmem:[%s5 + $0x18] sm:$0xf]
        %v1333 = vld [vmem:[%s5 + $0x1c] sm:$0xf]
        %v1334 = vld [vmem:[%s5 + $0x20] sm:$0xf]
        %v1335 = vld [vmem:[%s5 + $0x24] sm:$0xf]
        %v1336 = vld [vmem:[%s5 + $0x28] sm:$0xf]
        %v1337 = vld [vmem:[%s5 + $0x2c] sm:$0xf]
        %v1338 = vld [vmem:[%s5 + $0x30] sm:$0xf]
        %v1339 = vld [vmem:[%s5 + $0x34] sm:$0xf]
        %v1340 = vld [vmem:[%s5 + $0x38] sm:$0xf]
        %v1341 = vld [vmem:[%s5 + $0x3c] sm:$0xf]
        %v1342 = vld [vmem:[%s6] sm:$0x1]
        %v1343 = vpack.c.bf16 %v1311, %v1310
        %v1344 = vpack.c.bf16 %v1313, %v1312
        %v1345 = vpack.c.bf16 %v1315, %v1314
        %v1346 = vpack.c.bf16 %v1317, %v1316
        %v1347 = vpack.c.bf16 %v1319, %v1318
        %v1348 = vpack.c.bf16 %v1321, %v1320
        %v1349 = vpack.c.bf16 %v1323, %v1322
        %v1350 = vpack.c.bf16 %v1325, %v1324
        %v1352 = vlaneseq
        %v1353 = vshrl.u32 %v1352, 7
        %v1354 = vsub.s32 0, %v1353
        %v1355 = vrot.slane %v1342, %v1354
        %v1373 = vunpack.c.l.b16 %v1326
        %v1374 = vunpack.c.l.b16 %v1327
        %v1375 = vunpack.c.l.b16 %v1328
        %v1376 = vunpack.c.l.b16 %v1329
        %v1377 = vunpack.c.l.b16 %v1330
        %v1378 = vunpack.c.l.b16 %v1331
        %v1379 = vunpack.c.l.b16 %v1332
        %v1380 = vunpack.c.l.b16 %v1333
        %v1381 = vunpack.c.l.b16 %v1334
        %v1382 = vunpack.c.l.b16 %v1335
        %v1383 = vunpack.c.l.b16 %v1336
        %v1384 = vunpack.c.l.b16 %v1337
        %v1385 = vunpack.c.l.b16 %v1338
        %v1386 = vunpack.c.l.b16 %v1339
        %v1387 = vunpack.c.l.b16 %v1340
        %v1388 = vunpack.c.l.b16 %v1341
        %v1389 = vpack.c.b16 %v1374, %v1373
        %v1390 = vpack.c.b16 %v1376, %v1375
        %v1391 = vpack.c.b16 %v1378, %v1377
        %v1392 = vpack.c.b16 %v1380, %v1379
        %v1393 = vpack.c.b16 %v1382, %v1381
        %v1394 = vpack.c.b16 %v1384, %v1383
        %v1395 = vpack.c.b16 %v1386, %v1385
        %v1396 = vpack.c.b16 %v1388, %v1387
        %1405 = vmatprep.subr.bf16.mxu0 0
        %1406 = vmatpush1.bf16.msra.mxu0 %v1389
        %1407 = vmatprep.subr.bf16.mxu0 0
        %1408 = vmatpush1.bf16.msra.mxu0 %v1390
        %1409 = vmatprep.subr.bf16.mxu0 0
        %1410 = vmatpush1.bf16.msra.mxu0 %v1391
        %1411 = vmatprep.subr.bf16.mxu0 0
        %1412 = vmatpush1.bf16.msra.mxu0 %v1392
        %1413 = vmatprep.subr.bf16.mxu0 0
        %1414 = vmatpush1.bf16.msra.mxu0 %v1393
        %1415 = vmatprep.subr.bf16.mxu0 0
        %1416 = vmatpush1.bf16.msra.mxu0 %v1394
        %1417 = vmatprep.subr.bf16.mxu0 0
        %1418 = vmatpush1.bf16.msra.mxu0 %v1395
        %1419 = vmatprep.subr.bf16.mxu0 0
        %1420 = vmatpush1.bf16.msra.mxu0 %v1396
        %1421 = vmatprep.subr.bf16.mxu0 0
        %1422 = vmatpush1.bf16.msra.mxu0 0
        %1423 = vmatprep.subr.bf16.mxu0 0
        %1424 = vmatpush1.bf16.msra.mxu0 0
        %1425 = vmatprep.subr.bf16.mxu0 0
        %1426 = vmatpush1.bf16.msra.mxu0 0
        %1427 = vmatprep.subr.bf16.mxu0 0
        %1428 = vmatpush1.bf16.msra.mxu0 0
        %1429 = vmatprep.subr.bf16.mxu0 0
        %1430 = vmatpush1.bf16.msra.mxu0 0
        %1431 = vmatprep.subr.bf16.mxu0 0
        %1432 = vmatpush1.bf16.msra.mxu0 0
        %1433 = vmatprep.subr.bf16.mxu0 0
        %1434 = vmatpush1.bf16.msra.mxu0 0
        %1435 = vmatprep.subr.bf16.mxu0 0
        %1436 = vmatpush1.bf16.msra.mxu0 0
        %1437 = vmatprep.mubr.bf16.mxu0 0
        %1438 = vmatmul.mubr.bf16.gmra.mrb[0].mxu0 %v1343
        %v1439 = vpop.f32.mrb[0].mxu0
        %v1440 = vadd.f32 %v1355, %v1439
        %v1441 = vpop.f32.mrb[0].mxu0
        %v1442 = vpop.f32.mrb[0].mxu0
        %v1443 = vadd.f32 %v1355, %v1442
        %v1444 = vpop.f32.mrb[0].mxu0
        %1445 = vmatprep.mubr.bf16.mxu0 0
        %1446 = vmatmul.mubr.bf16.gmra.mrb[0].mxu0 %v1344
        %v1447 = vpop.f32.mrb[0].mxu0
        %v1448 = vadd.f32 %v1355, %v1447
        %v1449 = vpop.f32.mrb[0].mxu0
        %v1450 = vpop.f32.mrb[0].mxu0
        %v1451 = vadd.f32 %v1355, %v1450
        %v1452 = vpop.f32.mrb[0].mxu0
        %1453 = vmatprep.mubr.bf16.mxu0 0
        %1454 = vmatmul.mubr.bf16.gmra.mrb[0].mxu0 %v1345
        %v1455 = vpop.f32.mrb[0].mxu0
        %v1456 = vadd.f32 %v1355, %v1455
        %v1457 = vpop.f32.mrb[0].mxu0
        %v1458 = vpop.f32.mrb[0].mxu0
        %v1459 = vadd.f32 %v1355, %v1458
        %v1460 = vpop.f32.mrb[0].mxu0
        %1461 = vmatprep.mubr.bf16.mxu0 0
        %1462 = vmatmul.mubr.bf16.gmra.mrb[0].mxu0 %v1346
        %v1463 = vpop.f32.mrb[0].mxu0
        %v1464 = vadd.f32 %v1355, %v1463
        %v1465 = vpop.f32.mrb[0].mxu0
        %v1466 = vpop.f32.mrb[0].mxu0
        %v1467 = vadd.f32 %v1355, %v1466
        %v1468 = vpop.f32.mrb[0].mxu0
        %1469 = vmatprep.mubr.bf16.mxu0 0
        %1470 = vmatmul.mubr.bf16.gmra.mrb[0].mxu0 %v1347
        %v1471 = vpop.f32.mrb[0].mxu0
        %v1472 = vadd.f32 %v1355, %v1471
        %v1473 = vpop.f32.mrb[0].mxu0
        %v1474 = vpop.f32.mrb[0].mxu0
        %v1475 = vadd.f32 %v1355, %v1474
        %v1476 = vpop.f32.mrb[0].mxu0
        %1477 = vmatprep.mubr.bf16.mxu0 0
        %1478 = vmatmul.mubr.bf16.gmra.mrb[0].mxu0 %v1348
        %v1479 = vpop.f32.mrb[0].mxu0
        %v1480 = vadd.f32 %v1355, %v1479
        %v1481 = vpop.f32.mrb[0].mxu0
        %v1482 = vpop.f32.mrb[0].mxu0
        %v1483 = vadd.f32 %v1355, %v1482
        %v1484 = vpop.f32.mrb[0].mxu0
        %1485 = vmatprep.mubr.bf16.mxu0 0
        %1486 = vmatmul.mubr.bf16.gmra.mrb[0].mxu0 %v1349
        %v1487 = vpop.f32.mrb[0].mxu0
        %v1488 = vadd.f32 %v1355, %v1487
        %v1489 = vpop.f32.mrb[0].mxu0
        %v1490 = vpop.f32.mrb[0].mxu0
        %v1491 = vadd.f32 %v1355, %v1490
        %v1492 = vpop.f32.mrb[0].mxu0
        %1493 = vmatprep.mubr.bf16.mxu0 0
        %1494 = vmatmul.mubr.bf16.gmra.mrb[0].mxu0 %v1350
        %v1495 = vpop.f32.mrb[0].mxu0
        %v1496 = vadd.f32 %v1355, %v1495
        %v1497 = vpop.f32.mrb[0].mxu0
        %v1498 = vpop.f32.mrb[0].mxu0
        %v1499 = vadd.f32 %v1355, %v1498
        %v1500 = vpop.f32.mrb[0].mxu0
        %1501 = vdwg.mxu0
        %v1502 = vadd.f32 %v1440, %v1118
        %v1503 = vadd.f32 %v1443, %v1119
        %v1504 = vadd.f32 %v1448, %v1120
        %v1505 = vadd.f32 %v1451, %v1121
        %v1506 = vadd.f32 %v1456, %v1122
        %v1507 = vadd.f32 %v1459, %v1123
        %v1508 = vadd.f32 %v1464, %v1124
        %v1509 = vadd.f32 %v1467, %v1125
        %v1510 = vadd.f32 %v1472, %v1126
        %v1511 = vadd.f32 %v1475, %v1127
        %v1512 = vadd.f32 %v1480, %v1128
        %v1513 = vadd.f32 %v1483, %v1129
        %v1514 = vadd.f32 %v1488, %v1130
        %v1515 = vadd.f32 %v1491, %v1131
        %v1516 = vadd.f32 %v1496, %v1132
        %v1517 = vadd.f32 %v1499, %v1133
        %v1518 = vmax.f32 %v1502, 0.0
        %v1519 = vmax.f32 %v1503, 0.0
        %v1520 = vmax.f32 %v1504, 0.0
        %v1521 = vmax.f32 %v1505, 0.0
        %v1522 = vmax.f32 %v1506, 0.0
        %v1523 = vmax.f32 %v1507, 0.0
        %v1524 = vmax.f32 %v1508, 0.0
        %v1525 = vmax.f32 %v1509, 0.0
        %v1526 = vmax.f32 %v1510, 0.0
        %v1527 = vmax.f32 %v1511, 0.0
        %v1528 = vmax.f32 %v1512, 0.0
        %v1529 = vmax.f32 %v1513, 0.0
        %v1530 = vmax.f32 %v1514, 0.0
        %v1531 = vmax.f32 %v1515, 0.0
        %v1532 = vmax.f32 %v1516, 0.0
        %v1533 = vmax.f32 %v1517, 0.0
        %v1534 = vld [vmem:[%s7] sm:$0xf]
        %v1535 = vld [vmem:[%s7 + $0x4] sm:$0xf]
        %v1536 = vld [vmem:[%s7 + $0x8] sm:$0xf]
        %v1537 = vld [vmem:[%s7 + $0xc] sm:$0xf]
        %v1538 = vld [vmem:[%s7 + $0x10] sm:$0xf]
        %v1539 = vld [vmem:[%s7 + $0x14] sm:$0xf]
        %v1540 = vld [vmem:[%s7 + $0x18] sm:$0xf]
        %v1541 = vld [vmem:[%s7 + $0x1c] sm:$0xf]
        %v1542 = vld [vmem:[%s7 + $0x20] sm:$0xf]
        %v1543 = vld [vmem:[%s7 + $0x24] sm:$0xf]
        %v1544 = vld [vmem:[%s7 + $0x28] sm:$0xf]
        %v1545 = vld [vmem:[%s7 + $0x2c] sm:$0xf]
        %v1546 = vld [vmem:[%s7 + $0x30] sm:$0xf]
        %v1547 = vld [vmem:[%s7 + $0x34] sm:$0xf]
        %v1548 = vld [vmem:[%s7 + $0x38] sm:$0xf]
        %v1549 = vld [vmem:[%s7 + $0x3c] sm:$0xf]
        %v1550 = vld [vmem:[%s8] sm:$0x1]
        %v1551 = vpack.c.bf16 %v1519, %v1518
        %v1552 = vpack.c.bf16 %v1521, %v1520
        %v1553 = vpack.c.bf16 %v1523, %v1522
        %v1554 = vpack.c.bf16 %v1525, %v1524
        %v1555 = vpack.c.bf16 %v1527, %v1526
        %v1556 = vpack.c.bf16 %v1529, %v1528
        %v1557 = vpack.c.bf16 %v1531, %v1530
        %v1558 = vpack.c.bf16 %v1533, %v1532
        %v1560 = vlaneseq
        %v1561 = vshrl.u32 %v1560, 7
        %v1562 = vsub.s32 0, %v1561
        %v1563 = vrot.slane %v1550, %v1562
        %v1581 = vunpack.c.l.b16 %v1534
        %v1582 = vunpack.c.l.b16 %v1535
        %v1583 = vunpack.c.l.b16 %v1536
        %v1584 = vunpack.c.l.b16 %v1537
        %v1585 = vunpack.c.l.b16 %v1538
        %v1586 = vunpack.c.l.b16 %v1539
        %v1587 = vunpack.c.l.b16 %v1540
        %v1588 = vunpack.c.l.b16 %v1541
        %v1589 = vunpack.c.l.b16 %v1542
        %v1590 = vunpack.c.l.b16 %v1543
        %v1591 = vunpack.c.l.b16 %v1544
        %v1592 = vunpack.c.l.b16 %v1545
        %v1593 = vunpack.c.l.b16 %v1546
        %v1594 = vunpack.c.l.b16 %v1547
        %v1595 = vunpack.c.l.b16 %v1548
        %v1596 = vunpack.c.l.b16 %v1549
        %v1597 = vpack.c.b16 %v1582, %v1581
        %v1598 = vpack.c.b16 %v1584, %v1583
        %v1599 = vpack.c.b16 %v1586, %v1585
        %v1600 = vpack.c.b16 %v1588, %v1587
        %v1601 = vpack.c.b16 %v1590, %v1589
        %v1602 = vpack.c.b16 %v1592, %v1591
        %v1603 = vpack.c.b16 %v1594, %v1593
        %v1604 = vpack.c.b16 %v1596, %v1595
        %1613 = vmatprep.subr.bf16.mxu0 0
        %1614 = vmatpush1.bf16.msra.mxu0 %v1597
        %1615 = vmatprep.subr.bf16.mxu0 0
        %1616 = vmatpush1.bf16.msra.mxu0 %v1598
        %1617 = vmatprep.subr.bf16.mxu0 0
        %1618 = vmatpush1.bf16.msra.mxu0 %v1599
        %1619 = vmatprep.subr.bf16.mxu0 0
        %1620 = vmatpush1.bf16.msra.mxu0 %v1600
        %1621 = vmatprep.subr.bf16.mxu0 0
        %1622 = vmatpush1.bf16.msra.mxu0 %v1601
        %1623 = vmatprep.subr.bf16.mxu0 0
        %1624 = vmatpush1.bf16.msra.mxu0 %v1602
        %1625 = vmatprep.subr.bf16.mxu0 0
        %1626 = vmatpush1.bf16.msra.mxu0 %v1603
        %1627 = vmatprep.subr.bf16.mxu0 0
        %1628 = vmatpush1.bf16.msra.mxu0 %v1604
        %1629 = vmatprep.subr.bf16.mxu0 0
        %1630 = vmatpush1.bf16.msra.mxu0 0
        %1631 = vmatprep.subr.bf16.mxu0 0
        %1632 = vmatpush1.bf16.msra.mxu0 0
        %1633 = vmatprep.subr.bf16.mxu0 0
        %1634 = vmatpush1.bf16.msra.mxu0 0
        %1635 = vmatprep.subr.bf16.mxu0 0
        %1636 = vmatpush1.bf16.msra.mxu0 0
        %1637 = vmatprep.subr.bf16.mxu0 0
        %1638 = vmatpush1.bf16.msra.mxu0 0
        %1639 = vmatprep.subr.bf16.mxu0 0
        %1640 = vmatpush1.bf16.msra.mxu0 0
        %1641 = vmatprep.subr.bf16.mxu0 0
        %1642 = vmatpush1.bf16.msra.mxu0 0
        %1643 = vmatprep.subr.bf16.mxu0 0
        %1644 = vmatpush1.bf16.msra.mxu0 0
        %1645 = vmatprep.mubr.bf16.mxu0 0
        %1646 = vmatmul.mubr.bf16.gmra.mrb[0].mxu0 %v1551
        %v1647 = vpop.f32.mrb[0].mxu0
        %v1648 = vadd.f32 %v1563, %v1647
        %v1649 = vpop.f32.mrb[0].mxu0
        %v1650 = vpop.f32.mrb[0].mxu0
        %v1651 = vadd.f32 %v1563, %v1650
        %v1652 = vpop.f32.mrb[0].mxu0
        %1653 = vmatprep.mubr.bf16.mxu0 0
        %1654 = vmatmul.mubr.bf16.gmra.mrb[0].mxu0 %v1552
        %v1655 = vpop.f32.mrb[0].mxu0
        %v1656 = vadd.f32 %v1563, %v1655
        %v1657 = vpop.f32.mrb[0].mxu0
        %v1658 = vpop.f32.mrb[0].mxu0
        %v1659 = vadd.f32 %v1563, %v1658
        %v1660 = vpop.f32.mrb[0].mxu0
        %1661 = vmatprep.mubr.bf16.mxu0 0
        %1662 = vmatmul.mubr.bf16.gmra.mrb[0].mxu0 %v1553
        %v1663 = vpop.f32.mrb[0].mxu0
        %v1664 = vadd.f32 %v1563, %v1663
        %v1665 = vpop.f32.mrb[0].mxu0
        %v1666 = vpop.f32.mrb[0].mxu0
        %v1667 = vadd.f32 %v1563, %v1666
        %v1668 = vpop.f32.mrb[0].mxu0
        %1669 = vmatprep.mubr.bf16.mxu0 0
        %1670 = vmatmul.mubr.bf16.gmra.mrb[0].mxu0 %v1554
        %v1671 = vpop.f32.mrb[0].mxu0
        %v1672 = vadd.f32 %v1563, %v1671
        %v1673 = vpop.f32.mrb[0].mxu0
        %v1674 = vpop.f32.mrb[0].mxu0
        %v1675 = vadd.f32 %v1563, %v1674
        %v1676 = vpop.f32.mrb[0].mxu0
        %1677 = vmatprep.mubr.bf16.mxu0 0
        %1678 = vmatmul.mubr.bf16.gmra.mrb[0].mxu0 %v1555
        %v1679 = vpop.f32.mrb[0].mxu0
        %v1680 = vadd.f32 %v1563, %v1679
        %v1681 = vpop.f32.mrb[0].mxu0
        %v1682 = vpop.f32.mrb[0].mxu0
        %v1683 = vadd.f32 %v1563, %v1682
        %v1684 = vpop.f32.mrb[0].mxu0
        %1685 = vmatprep.mubr.bf16.mxu0 0
        %1686 = vmatmul.mubr.bf16.gmra.mrb[0].mxu0 %v1556
        %v1687 = vpop.f32.mrb[0].mxu0
        %v1688 = vadd.f32 %v1563, %v1687
        %v1689 = vpop.f32.mrb[0].mxu0
        %v1690 = vpop.f32.mrb[0].mxu0
        %v1691 = vadd.f32 %v1563, %v1690
        %v1692 = vpop.f32.mrb[0].mxu0
        %1693 = vmatprep.mubr.bf16.mxu0 0
        %1694 = vmatmul.mubr.bf16.gmra.mrb[0].mxu0 %v1557
        %v1695 = vpop.f32.mrb[0].mxu0
        %v1696 = vadd.f32 %v1563, %v1695
        %v1697 = vpop.f32.mrb[0].mxu0
        %v1698 = vpop.f32.mrb[0].mxu0
        %v1699 = vadd.f32 %v1563, %v1698
        %v1700 = vpop.f32.mrb[0].mxu0
        %1701 = vmatprep.mubr.bf16.mxu0 0
        %1702 = vmatmul.mubr.bf16.gmra.mrb[0].mxu0 %v1558
        %v1703 = vpop.f32.mrb[0].mxu0
        %v1704 = vadd.f32 %v1563, %v1703
        %v1705 = vpop.f32.mrb[0].mxu0
        %v1706 = vpop.f32.mrb[0].mxu0
        %v1707 = vadd.f32 %v1563, %v1706
        %v1708 = vpop.f32.mrb[0].mxu0
        %1709 = vdwg.mxu0
        %v1710 = vmax.f32 %v1648, 0.0
        %v1711 = vmax.f32 %v1651, 0.0
        %v1712 = vmax.f32 %v1656, 0.0
        %v1713 = vmax.f32 %v1659, 0.0
        %v1714 = vmax.f32 %v1664, 0.0
        %v1715 = vmax.f32 %v1667, 0.0
        %v1716 = vmax.f32 %v1672, 0.0
        %v1717 = vmax.f32 %v1675, 0.0
        %v1718 = vmax.f32 %v1680, 0.0
        %v1719 = vmax.f32 %v1683, 0.0
        %v1720 = vmax.f32 %v1688, 0.0
        %v1721 = vmax.f32 %v1691, 0.0
        %v1722 = vmax.f32 %v1696, 0.0
        %v1723 = vmax.f32 %v1699, 0.0
        %v1724 = vmax.f32 %v1704, 0.0
        %v1725 = vmax.f32 %v1707, 0.0
        %v1726 = vld [vmem:[%s9] sm:$0xf]
        %v1727 = vld [vmem:[%s9 + $0x4] sm:$0xf]
        %v1728 = vld [vmem:[%s9 + $0x8] sm:$0xf]
        %v1729 = vld [vmem:[%s9 + $0xc] sm:$0xf]
        %v1730 = vld [vmem:[%s9 + $0x10] sm:$0xf]
        %v1731 = vld [vmem:[%s9 + $0x14] sm:$0xf]
        %v1732 = vld [vmem:[%s9 + $0x18] sm:$0xf]
        %v1733 = vld [vmem:[%s9 + $0x1c] sm:$0xf]
        %v1734 = vld [vmem:[%s9 + $0x20] sm:$0xf]
        %v1735 = vld [vmem:[%s9 + $0x24] sm:$0xf]
        %v1736 = vld [vmem:[%s9 + $0x28] sm:$0xf]
        %v1737 = vld [vmem:[%s9 + $0x2c] sm:$0xf]
        %v1738 = vld [vmem:[%s9 + $0x30] sm:$0xf]
        %v1739 = vld [vmem:[%s9 + $0x34] sm:$0xf]
        %v1740 = vld [vmem:[%s9 + $0x38] sm:$0xf]
        %v1741 = vld [vmem:[%s9 + $0x3c] sm:$0xf]
        %v1742 = vld [vmem:[#allocation5] sm:$0x1]
        %v1743 = vpack.c.bf16 %v1711, %v1710
        %v1744 = vpack.c.bf16 %v1713, %v1712
        %v1745 = vpack.c.bf16 %v1715, %v1714
        %v1746 = vpack.c.bf16 %v1717, %v1716
        %v1747 = vpack.c.bf16 %v1719, %v1718
        %v1748 = vpack.c.bf16 %v1721, %v1720
        %v1749 = vpack.c.bf16 %v1723, %v1722
        %v1750 = vpack.c.bf16 %v1725, %v1724
        %v1752 = vlaneseq
        %v1753 = vshrl.u32 %v1752, 7
        %v1754 = vsub.s32 0, %v1753
        %v1755 = vrot.slane %v1742, %v1754
        %v1773 = vunpack.c.l.b16 %v1726
        %v1774 = vunpack.c.l.b16 %v1727
        %v1775 = vunpack.c.l.b16 %v1728
        %v1776 = vunpack.c.l.b16 %v1729
        %v1777 = vunpack.c.l.b16 %v1730
        %v1778 = vunpack.c.l.b16 %v1731
        %v1779 = vunpack.c.l.b16 %v1732
        %v1780 = vunpack.c.l.b16 %v1733
        %v1781 = vunpack.c.l.b16 %v1734
        %v1782 = vunpack.c.l.b16 %v1735
        %v1783 = vunpack.c.l.b16 %v1736
        %v1784 = vunpack.c.l.b16 %v1737
        %v1785 = vunpack.c.l.b16 %v1738
        %v1786 = vunpack.c.l.b16 %v1739
        %v1787 = vunpack.c.l.b16 %v1740
        %v1788 = vunpack.c.l.b16 %v1741
        %v1789 = vpack.c.b16 %v1774, %v1773
        %v1790 = vpack.c.b16 %v1776, %v1775
        %v1791 = vpack.c.b16 %v1778, %v1777
        %v1792 = vpack.c.b16 %v1780, %v1779
        %v1793 = vpack.c.b16 %v1782, %v1781
        %v1794 = vpack.c.b16 %v1784, %v1783
        %v1795 = vpack.c.b16 %v1786, %v1785
        %v1796 = vpack.c.b16 %v1788, %v1787
        %1805 = vmatprep.subr.bf16.mxu0 0
        %1806 = vmatpush1.bf16.msra.mxu0 %v1789
        %1807 = vmatprep.subr.bf16.mxu0 0
        %1808 = vmatpush1.bf16.msra.mxu0 %v1790
        %1809 = vmatprep.subr.bf16.mxu0 0
        %1810 = vmatpush1.bf16.msra.mxu0 %v1791
        %1811 = vmatprep.subr.bf16.mxu0 0
        %1812 = vmatpush1.bf16.msra.mxu0 %v1792
        %1813 = vmatprep.subr.bf16.mxu0 0
        %1814 = vmatpush1.bf16.msra.mxu0 %v1793
        %1815 = vmatprep.subr.bf16.mxu0 0
        %1816 = vmatpush1.bf16.msra.mxu0 %v1794
        %1817 = vmatprep.subr.bf16.mxu0 0
        %1818 = vmatpush1.bf16.msra.mxu0 %v1795
        %1819 = vmatprep.subr.bf16.mxu0 0
        %1820 = vmatpush1.bf16.msra.mxu0 %v1796
        %1821 = vmatprep.subr.bf16.mxu0 0
        %1822 = vmatpush1.bf16.msra.mxu0 0
        %1823 = vmatprep.subr.bf16.mxu0 0
        %1824 = vmatpush1.bf16.msra.mxu0 0
        %1825 = vmatprep.subr.bf16.mxu0 0
        %1826 = vmatpush1.bf16.msra.mxu0 0
        %1827 = vmatprep.subr.bf16.mxu0 0
        %1828 = vmatpush1.bf16.msra.mxu0 0
        %1829 = vmatprep.subr.bf16.mxu0 0
        %1830 = vmatpush1.bf16.msra.mxu0 0
        %1831 = vmatprep.subr.bf16.mxu0 0
        %1832 = vmatpush1.bf16.msra.mxu0 0
        %1833 = vmatprep.subr.bf16.mxu0 0
        %1834 = vmatpush1.bf16.msra.mxu0 0
        %1835 = vmatprep.subr.bf16.mxu0 0
        %1836 = vmatpush1.bf16.msra.mxu0 0
        %1837 = vmatprep.mubr.bf16.mxu0 0
        %1838 = vmatmul.mubr.bf16.gmra.mrb[0].mxu0 %v1743
        %v1839 = vpop.f32.mrb[0].mxu0
        %v1840 = vadd.f32 %v1755, %v1839
        %v1841 = vpop.f32.mrb[0].mxu0
        %v1842 = vpop.f32.mrb[0].mxu0
        %v1843 = vadd.f32 %v1755, %v1842
        %v1844 = vpop.f32.mrb[0].mxu0
        %1845 = vmatprep.mubr.bf16.mxu0 0
        %1846 = vmatmul.mubr.bf16.gmra.mrb[0].mxu0 %v1744
        %v1847 = vpop.f32.mrb[0].mxu0
        %v1848 = vadd.f32 %v1755, %v1847
        %v1849 = vpop.f32.mrb[0].mxu0
        %v1850 = vpop.f32.mrb[0].mxu0
        %v1851 = vadd.f32 %v1755, %v1850
        %v1852 = vpop.f32.mrb[0].mxu0
        %1853 = vmatprep.mubr.bf16.mxu0 0
        %1854 = vmatmul.mubr.bf16.gmra.mrb[0].mxu0 %v1745
        %v1855 = vpop.f32.mrb[0].mxu0
        %v1856 = vadd.f32 %v1755, %v1855
        %v1857 = vpop.f32.mrb[0].mxu0
        %v1858 = vpop.f32.mrb[0].mxu0
        %v1859 = vadd.f32 %v1755, %v1858
        %v1860 = vpop.f32.mrb[0].mxu0
        %1861 = vmatprep.mubr.bf16.mxu0 0
        %1862 = vmatmul.mubr.bf16.gmra.mrb[0].mxu0 %v1746
        %v1863 = vpop.f32.mrb[0].mxu0
        %v1864 = vadd.f32 %v1755, %v1863
        %v1865 = vpop.f32.mrb[0].mxu0
        %v1866 = vpop.f32.mrb[0].mxu0
        %v1867 = vadd.f32 %v1755, %v1866
        %v1868 = vpop.f32.mrb[0].mxu0
        %1869 = vmatprep.mubr.bf16.mxu0 0
        %1870 = vmatmul.mubr.bf16.gmra.mrb[0].mxu0 %v1747
        %v1871 = vpop.f32.mrb[0].mxu0
        %v1872 = vadd.f32 %v1755, %v1871
        %v1873 = vpop.f32.mrb[0].mxu0
        %v1874 = vpop.f32.mrb[0].mxu0
        %v1875 = vadd.f32 %v1755, %v1874
        %v1876 = vpop.f32.mrb[0].mxu0
        %1877 = vmatprep.mubr.bf16.mxu0 0
        %1878 = vmatmul.mubr.bf16.gmra.mrb[0].mxu0 %v1748
        %v1879 = vpop.f32.mrb[0].mxu0
        %v1880 = vadd.f32 %v1755, %v1879
        %v1881 = vpop.f32.mrb[0].mxu0
        %v1882 = vpop.f32.mrb[0].mxu0
        %v1883 = vadd.f32 %v1755, %v1882
        %v1884 = vpop.f32.mrb[0].mxu0
        %1885 = vmatprep.mubr.bf16.mxu0 0
        %1886 = vmatmul.mubr.bf16.gmra.mrb[0].mxu0 %v1749
        %v1887 = vpop.f32.mrb[0].mxu0
        %v1888 = vadd.f32 %v1755, %v1887
        %v1889 = vpop.f32.mrb[0].mxu0
        %v1890 = vpop.f32.mrb[0].mxu0
        %v1891 = vadd.f32 %v1755, %v1890
        %v1892 = vpop.f32.mrb[0].mxu0
        %1893 = vmatprep.mubr.bf16.mxu0 0
        %1894 = vmatmul.mubr.bf16.gmra.mrb[0].mxu0 %v1750
        %v1895 = vpop.f32.mrb[0].mxu0
        %v1896 = vadd.f32 %v1755, %v1895
        %v1897 = vpop.f32.mrb[0].mxu0
        %v1898 = vpop.f32.mrb[0].mxu0
        %v1899 = vadd.f32 %v1755, %v1898
        %v1900 = vpop.f32.mrb[0].mxu0
        %1901 = vdwg.mxu0
        %v1902 = vadd.f32 %v1840, %v1518
        %v1903 = vadd.f32 %v1843, %v1519
        %v1904 = vadd.f32 %v1848, %v1520
        %v1905 = vadd.f32 %v1851, %v1521
        %v1906 = vadd.f32 %v1856, %v1522
        %v1907 = vadd.f32 %v1859, %v1523
        %v1908 = vadd.f32 %v1864, %v1524
        %v1909 = vadd.f32 %v1867, %v1525
        %v1910 = vadd.f32 %v1872, %v1526
        %v1911 = vadd.f32 %v1875, %v1527
        %v1912 = vadd.f32 %v1880, %v1528
        %v1913 = vadd.f32 %v1883, %v1529
        %v1914 = vadd.f32 %v1888, %v1530
        %v1915 = vadd.f32 %v1891, %v1531
        %v1916 = vadd.f32 %v1896, %v1532
        %v1917 = vadd.f32 %v1899, %v1533
        %v1918 = vmax.f32 %v1902, 0.0
        %v1919 = vmax.f32 %v1903, 0.0
        %v1920 = vmax.f32 %v1904, 0.0
        %v1921 = vmax.f32 %v1905, 0.0
        %v1922 = vmax.f32 %v1906, 0.0
        %v1923 = vmax.f32 %v1907, 0.0
        %v1924 = vmax.f32 %v1908, 0.0
        %v1925 = vmax.f32 %v1909, 0.0
        %v1926 = vmax.f32 %v1910, 0.0
        %v1927 = vmax.f32 %v1911, 0.0
        %v1928 = vmax.f32 %v1912, 0.0
        %v1929 = vmax.f32 %v1913, 0.0
        %v1930 = vmax.f32 %v1914, 0.0
        %v1931 = vmax.f32 %v1915, 0.0
        %v1932 = vmax.f32 %v1916, 0.0
        %v1933 = vmax.f32 %v1917, 0.0
        %v1934 = vld [vmem:[%s11] sm:$0xf]
        %v1935 = vld [vmem:[%s11 + $0x4] sm:$0xf]
        %v1936 = vld [vmem:[%s11 + $0x8] sm:$0xf]
        %v1937 = vld [vmem:[%s11 + $0xc] sm:$0xf]
        %v1938 = vld [vmem:[%s11 + $0x10] sm:$0xf]
        %v1939 = vld [vmem:[%s11 + $0x14] sm:$0xf]
        %v1940 = vld [vmem:[%s11 + $0x18] sm:$0xf]
        %v1941 = vld [vmem:[%s11 + $0x1c] sm:$0xf]
        %v1942 = vld [vmem:[%s11 + $0x20] sm:$0xf]
        %v1943 = vld [vmem:[%s11 + $0x24] sm:$0xf]
        %v1944 = vld [vmem:[%s11 + $0x28] sm:$0xf]
        %v1945 = vld [vmem:[%s11 + $0x2c] sm:$0xf]
        %v1946 = vld [vmem:[%s11 + $0x30] sm:$0xf]
        %v1947 = vld [vmem:[%s11 + $0x34] sm:$0xf]
        %v1948 = vld [vmem:[%s11 + $0x38] sm:$0xf]
        %v1949 = vld [vmem:[%s11 + $0x3c] sm:$0xf]
        %v1950 = vld [vmem:[#allocation7] sm:$0x1]
        %v1951 = vpack.c.bf16 %v1919, %v1918
        %v1952 = vpack.c.bf16 %v1921, %v1920
        %v1953 = vpack.c.bf16 %v1923, %v1922
        %v1954 = vpack.c.bf16 %v1925, %v1924
        %v1955 = vpack.c.bf16 %v1927, %v1926
        %v1956 = vpack.c.bf16 %v1929, %v1928
        %v1957 = vpack.c.bf16 %v1931, %v1930
        %v1958 = vpack.c.bf16 %v1933, %v1932
        %v1960 = vlaneseq
        %v1961 = vshrl.u32 %v1960, 7
        %v1962 = vsub.s32 0, %v1961
        %v1963 = vrot.slane %v1950, %v1962
        %v1981 = vunpack.c.l.b16 %v1934
        %v1982 = vunpack.c.l.b16 %v1935
        %v1983 = vunpack.c.l.b16 %v1936
        %v1984 = vunpack.c.l.b16 %v1937
        %v1985 = vunpack.c.l.b16 %v1938
        %v1986 = vunpack.c.l.b16 %v1939
        %v1987 = vunpack.c.l.b16 %v1940
        %v1988 = vunpack.c.l.b16 %v1941
        %v1989 = vunpack.c.l.b16 %v1942
        %v1990 = vunpack.c.l.b16 %v1943
        %v1991 = vunpack.c.l.b16 %v1944
        %v1992 = vunpack.c.l.b16 %v1945
        %v1993 = vunpack.c.l.b16 %v1946
        %v1994 = vunpack.c.l.b16 %v1947
        %v1995 = vunpack.c.l.b16 %v1948
        %v1996 = vunpack.c.l.b16 %v1949
        %v1997 = vpack.c.b16 %v1982, %v1981
        %v1998 = vpack.c.b16 %v1984, %v1983
        %v1999 = vpack.c.b16 %v1986, %v1985
        %v2000 = vpack.c.b16 %v1988, %v1987
        %v2001 = vpack.c.b16 %v1990, %v1989
        %v2002 = vpack.c.b16 %v1992, %v1991
        %v2003 = vpack.c.b16 %v1994, %v1993
        %v2004 = vpack.c.b16 %v1996, %v1995
        %2013 = vmatprep.subr.bf16.mxu0 0
        %2014 = vmatpush1.bf16.msra.mxu0 %v1997
        %2015 = vmatprep.subr.bf16.mxu0 0
        %2016 = vmatpush1.bf16.msra.mxu0 %v1998
        %2017 = vmatprep.subr.bf16.mxu0 0
        %2018 = vmatpush1.bf16.msra.mxu0 %v1999
        %2019 = vmatprep.subr.bf16.mxu0 0
        %2020 = vmatpush1.bf16.msra.mxu0 %v2000
        %2021 = vmatprep.subr.bf16.mxu0 0
        %2022 = vmatpush1.bf16.msra.mxu0 %v2001
        %2023 = vmatprep.subr.bf16.mxu0 0
        %2024 = vmatpush1.bf16.msra.mxu0 %v2002
        %2025 = vmatprep.subr.bf16.mxu0 0
        %2026 = vmatpush1.bf16.msra.mxu0 %v2003
        %2027 = vmatprep.subr.bf16.mxu0 0
        %2028 = vmatpush1.bf16.msra.mxu0 %v2004
        %2029 = vmatprep.subr.bf16.mxu0 0
        %2030 = vmatpush1.bf16.msra.mxu0 0
        %2031 = vmatprep.subr.bf16.mxu0 0
        %2032 = vmatpush1.bf16.msra.mxu0 0
        %2033 = vmatprep.subr.bf16.mxu0 0
        %2034 = vmatpush1.bf16.msra.mxu0 0
        %2035 = vmatprep.subr.bf16.mxu0 0
        %2036 = vmatpush1.bf16.msra.mxu0 0
        %2037 = vmatprep.subr.bf16.mxu0 0
        %2038 = vmatpush1.bf16.msra.mxu0 0
        %2039 = vmatprep.subr.bf16.mxu0 0
        %2040 = vmatpush1.bf16.msra.mxu0 0
        %2041 = vmatprep.subr.bf16.mxu0 0
        %2042 = vmatpush1.bf16.msra.mxu0 0
        %2043 = vmatprep.subr.bf16.mxu0 0
        %2044 = vmatpush1.bf16.msra.mxu0 0
        %2045 = vmatprep.mubr.bf16.mxu0 0
        %2046 = vmatmul.mubr.bf16.gmra.mrb[0].mxu0 %v1951
        %v2047 = vpop.f32.mrb[0].mxu0
        %v2048 = vadd.f32 %v1963, %v2047
        %v2049 = vpop.f32.mrb[0].mxu0
        %v2050 = vpop.f32.mrb[0].mxu0
        %v2051 = vadd.f32 %v1963, %v2050
        %v2052 = vpop.f32.mrb[0].mxu0
        %2053 = vmatprep.mubr.bf16.mxu0 0
        %2054 = vmatmul.mubr.bf16.gmra.mrb[0].mxu0 %v1952
        %v2055 = vpop.f32.mrb[0].mxu0
        %v2056 = vadd.f32 %v1963, %v2055
        %v2057 = vpop.f32.mrb[0].mxu0
        %v2058 = vpop.f32.mrb[0].mxu0
        %v2059 = vadd.f32 %v1963, %v2058
        %v2060 = vpop.f32.mrb[0].mxu0
        %2061 = vmatprep.mubr.bf16.mxu0 0
        %2062 = vmatmul.mubr.bf16.gmra.mrb[0].mxu0 %v1953
        %v2063 = vpop.f32.mrb[0].mxu0
        %v2064 = vadd.f32 %v1963, %v2063
        %v2065 = vpop.f32.mrb[0].mxu0
        %v2066 = vpop.f32.mrb[0].mxu0
        %v2067 = vadd.f32 %v1963, %v2066
        %v2068 = vpop.f32.mrb[0].mxu0
        %2069 = vmatprep.mubr.bf16.mxu0 0
        %2070 = vmatmul.mubr.bf16.gmra.mrb[0].mxu0 %v1954
        %v2071 = vpop.f32.mrb[0].mxu0
        %v2072 = vadd.f32 %v1963, %v2071
        %v2073 = vpop.f32.mrb[0].mxu0
        %v2074 = vpop.f32.mrb[0].mxu0
        %v2075 = vadd.f32 %v1963, %v2074
        %v2076 = vpop.f32.mrb[0].mxu0
        %2077 = vmatprep.mubr.bf16.mxu0 0
        %2078 = vmatmul.mubr.bf16.gmra.mrb[0].mxu0 %v1955
        %v2079 = vpop.f32.mrb[0].mxu0
        %v2080 = vadd.f32 %v1963, %v2079
        %v2081 = vpop.f32.mrb[0].mxu0
        %v2082 = vpop.f32.mrb[0].mxu0
        %v2083 = vadd.f32 %v1963, %v2082
        %v2084 = vpop.f32.mrb[0].mxu0
        %2085 = vmatprep.mubr.bf16.mxu0 0
        %2086 = vmatmul.mubr.bf16.gmra.mrb[0].mxu0 %v1956
        %v2087 = vpop.f32.mrb[0].mxu0
        %v2088 = vadd.f32 %v1963, %v2087
        %v2089 = vpop.f32.mrb[0].mxu0
        %v2090 = vpop.f32.mrb[0].mxu0
        %v2091 = vadd.f32 %v1963, %v2090
        %v2092 = vpop.f32.mrb[0].mxu0
        %2093 = vmatprep.mubr.bf16.mxu0 0
        %2094 = vmatmul.mubr.bf16.gmra.mrb[0].mxu0 %v1957
        %v2095 = vpop.f32.mrb[0].mxu0
        %v2096 = vadd.f32 %v1963, %v2095
        %v2097 = vpop.f32.mrb[0].mxu0
        %v2098 = vpop.f32.mrb[0].mxu0
        %v2099 = vadd.f32 %v1963, %v2098
        %v2100 = vpop.f32.mrb[0].mxu0
        %2101 = vmatprep.mubr.bf16.mxu0 0
        %2102 = vmatmul.mubr.bf16.gmra.mrb[0].mxu0 %v1958
        %v2103 = vpop.f32.mrb[0].mxu0
        %v2104 = vadd.f32 %v1963, %v2103
        %v2105 = vpop.f32.mrb[0].mxu0
        %v2106 = vpop.f32.mrb[0].mxu0
        %v2107 = vadd.f32 %v1963, %v2106
        %v2108 = vpop.f32.mrb[0].mxu0
        %2109 = vdwg.mxu0
        %v2110 = vmax.f32 %v2048, 0.0
        %v2111 = vmax.f32 %v2051, 0.0
        %v2112 = vmax.f32 %v2056, 0.0
        %v2113 = vmax.f32 %v2059, 0.0
        %v2114 = vmax.f32 %v2064, 0.0
        %v2115 = vmax.f32 %v2067, 0.0
        %v2116 = vmax.f32 %v2072, 0.0
        %v2117 = vmax.f32 %v2075, 0.0
        %v2118 = vmax.f32 %v2080, 0.0
        %v2119 = vmax.f32 %v2083, 0.0
        %v2120 = vmax.f32 %v2088, 0.0
        %v2121 = vmax.f32 %v2091, 0.0
        %v2122 = vmax.f32 %v2096, 0.0
        %v2123 = vmax.f32 %v2099, 0.0
        %v2124 = vmax.f32 %v2104, 0.0
        %v2125 = vmax.f32 %v2107, 0.0
        %v2126 = vld [vmem:[#allocation8] sm:$0xf]
        %v2127 = vld [vmem:[#allocation8 + $0x4] sm:$0xf]
        %v2128 = vld [vmem:[#allocation8 + $0x8] sm:$0xf]
        %v2129 = vld [vmem:[#allocation8 + $0xc] sm:$0xf]
        %v2130 = vld [vmem:[#allocation8 + $0x10] sm:$0xf]
        %v2131 = vld [vmem:[#allocation8 + $0x14] sm:$0xf]
        %v2132 = vld [vmem:[#allocation8 + $0x18] sm:$0xf]
        %v2133 = vld [vmem:[#allocation8 + $0x1c] sm:$0xf]
        %v2134 = vld [vmem:[#allocation8 + $0x20] sm:$0xf]
        %v2135 = vld [vmem:[#allocation8 + $0x24] sm:$0xf]
        %v2136 = vld [vmem:[#allocation8 + $0x28] sm:$0xf]
        %v2137 = vld [vmem:[#allocation8 + $0x2c] sm:$0xf]
        %v2138 = vld [vmem:[#allocation8 + $0x30] sm:$0xf]
        %v2139 = vld [vmem:[#allocation8 + $0x34] sm:$0xf]
        %v2140 = vld [vmem:[#allocation8 + $0x38] sm:$0xf]
        %v2141 = vld [vmem:[#allocation8 + $0x3c] sm:$0xf]
        %v2142 = vld [vmem:[#allocation10] sm:$0x1]
        %v2143 = vpack.c.bf16 %v2111, %v2110
        %v2144 = vpack.c.bf16 %v2113, %v2112
        %v2145 = vpack.c.bf16 %v2115, %v2114
        %v2146 = vpack.c.bf16 %v2117, %v2116
        %v2147 = vpack.c.bf16 %v2119, %v2118
        %v2148 = vpack.c.bf16 %v2121, %v2120
        %v2149 = vpack.c.bf16 %v2123, %v2122
        %v2150 = vpack.c.bf16 %v2125, %v2124
        %v2152 = vlaneseq
        %v2153 = vshrl.u32 %v2152, 7
        %v2154 = vsub.s32 0, %v2153
        %v2155 = vrot.slane %v2142, %v2154
        %v2173 = vunpack.c.l.b16 %v2126
        %v2174 = vunpack.c.l.b16 %v2127
        %v2175 = vunpack.c.l.b16 %v2128
        %v2176 = vunpack.c.l.b16 %v2129
        %v2177 = vunpack.c.l.b16 %v2130
        %v2178 = vunpack.c.l.b16 %v2131
        %v2179 = vunpack.c.l.b16 %v2132
        %v2180 = vunpack.c.l.b16 %v2133
        %v2181 = vunpack.c.l.b16 %v2134
        %v2182 = vunpack.c.l.b16 %v2135
        %v2183 = vunpack.c.l.b16 %v2136
        %v2184 = vunpack.c.l.b16 %v2137
        %v2185 = vunpack.c.l.b16 %v2138
        %v2186 = vunpack.c.l.b16 %v2139
        %v2187 = vunpack.c.l.b16 %v2140
        %v2188 = vunpack.c.l.b16 %v2141
        %v2189 = vpack.c.b16 %v2174, %v2173
        %v2190 = vpack.c.b16 %v2176, %v2175
        %v2191 = vpack.c.b16 %v2178, %v2177
        %v2192 = vpack.c.b16 %v2180, %v2179
        %v2193 = vpack.c.b16 %v2182, %v2181
        %v2194 = vpack.c.b16 %v2184, %v2183
        %v2195 = vpack.c.b16 %v2186, %v2185
        %v2196 = vpack.c.b16 %v2188, %v2187
        %2205 = vmatprep.subr.bf16.mxu0 0
        %2206 = vmatpush1.bf16.msra.mxu0 %v2189
        %2207 = vmatprep.subr.bf16.mxu0 0
        %2208 = vmatpush1.bf16.msra.mxu0 %v2190
        %2209 = vmatprep.subr.bf16.mxu0 0
        %2210 = vmatpush1.bf16.msra.mxu0 %v2191
        %2211 = vmatprep.subr.bf16.mxu0 0
        %2212 = vmatpush1.bf16.msra.mxu0 %v2192
        %2213 = vmatprep.subr.bf16.mxu0 0
        %2214 = vmatpush1.bf16.msra.mxu0 %v2193
        %2215 = vmatprep.subr.bf16.mxu0 0
        %2216 = vmatpush1.bf16.msra.mxu0 %v2194
        %2217 = vmatprep.subr.bf16.mxu0 0
        %2218 = vmatpush1.bf16.msra.mxu0 %v2195
        %2219 = vmatprep.subr.bf16.mxu0 0
        %2220 = vmatpush1.bf16.msra.mxu0 %v2196
        %2221 = vmatprep.subr.bf16.mxu0 0
        %2222 = vmatpush1.bf16.msra.mxu0 0
        %2223 = vmatprep.subr.bf16.mxu0 0
        %2224 = vmatpush1.bf16.msra.mxu0 0
        %2225 = vmatprep.subr.bf16.mxu0 0
        %2226 = vmatpush1.bf16.msra.mxu0 0
        %2227 = vmatprep.subr.bf16.mxu0 0
        %2228 = vmatpush1.bf16.msra.mxu0 0
        %2229 = vmatprep.subr.bf16.mxu0 0
        %2230 = vmatpush1.bf16.msra.mxu0 0
        %2231 = vmatprep.subr.bf16.mxu0 0
        %2232 = vmatpush1.bf16.msra.mxu0 0
        %2233 = vmatprep.subr.bf16.mxu0 0
        %2234 = vmatpush1.bf16.msra.mxu0 0
        %2235 = vmatprep.subr.bf16.mxu0 0
        %2236 = vmatpush1.bf16.msra.mxu0 0
        %2237 = vmatprep.mubr.bf16.mxu0 0
        %2238 = vmatmul.mubr.bf16.gmra.mrb[0].mxu0 %v2143
        %v2239 = vpop.f32.mrb[0].mxu0
        %v2240 = vadd.f32 %v2155, %v2239
        %v2241 = vpop.f32.mrb[0].mxu0
        %v2242 = vpop.f32.mrb[0].mxu0
        %v2243 = vadd.f32 %v2155, %v2242
        %v2244 = vpop.f32.mrb[0].mxu0
        %2245 = vmatprep.mubr.bf16.mxu0 0
        %2246 = vmatmul.mubr.bf16.gmra.mrb[0].mxu0 %v2144
        %v2247 = vpop.f32.mrb[0].mxu0
        %v2248 = vadd.f32 %v2155, %v2247
        %v2249 = vpop.f32.mrb[0].mxu0
        %v2250 = vpop.f32.mrb[0].mxu0
        %v2251 = vadd.f32 %v2155, %v2250
        %v2252 = vpop.f32.mrb[0].mxu0
        %2253 = vmatprep.mubr.bf16.mxu0 0
        %2254 = vmatmul.mubr.bf16.gmra.mrb[0].mxu0 %v2145
        %v2255 = vpop.f32.mrb[0].mxu0
        %v2256 = vadd.f32 %v2155, %v2255
        %v2257 = vpop.f32.mrb[0].mxu0
        %v2258 = vpop.f32.mrb[0].mxu0
        %v2259 = vadd.f32 %v2155, %v2258
        %v2260 = vpop.f32.mrb[0].mxu0
        %2261 = vmatprep.mubr.bf16.mxu0 0
        %2262 = vmatmul.mubr.bf16.gmra.mrb[0].mxu0 %v2146
        %v2263 = vpop.f32.mrb[0].mxu0
        %v2264 = vadd.f32 %v2155, %v2263
        %v2265 = vpop.f32.mrb[0].mxu0
        %v2266 = vpop.f32.mrb[0].mxu0
        %v2267 = vadd.f32 %v2155, %v2266
        %v2268 = vpop.f32.mrb[0].mxu0
        %2269 = vmatprep.mubr.bf16.mxu0 0
        %2270 = vmatmul.mubr.bf16.gmra.mrb[0].mxu0 %v2147
        %v2271 = vpop.f32.mrb[0].mxu0
        %v2272 = vadd.f32 %v2155, %v2271
        %v2273 = vpop.f32.mrb[0].mxu0
        %v2274 = vpop.f32.mrb[0].mxu0
        %v2275 = vadd.f32 %v2155, %v2274
        %v2276 = vpop.f32.mrb[0].mxu0
        %2277 = vmatprep.mubr.bf16.mxu0 0
        %2278 = vmatmul.mubr.bf16.gmra.mrb[0].mxu0 %v2148
        %v2279 = vpop.f32.mrb[0].mxu0
        %v2280 = vadd.f32 %v2155, %v2279
        %v2281 = vpop.f32.mrb[0].mxu0
        %v2282 = vpop.f32.mrb[0].mxu0
        %v2283 = vadd.f32 %v2155, %v2282
        %v2284 = vpop.f32.mrb[0].mxu0
        %2285 = vmatprep.mubr.bf16.mxu0 0
        %2286 = vmatmul.mubr.bf16.gmra.mrb[0].mxu0 %v2149
        %v2287 = vpop.f32.mrb[0].mxu0
        %v2288 = vadd.f32 %v2155, %v2287
        %v2289 = vpop.f32.mrb[0].mxu0
        %v2290 = vpop.f32.mrb[0].mxu0
        %v2291 = vadd.f32 %v2155, %v2290
        %v2292 = vpop.f32.mrb[0].mxu0
        %2293 = vmatprep.mubr.bf16.mxu0 0
        %2294 = vmatmul.mubr.bf16.gmra.mrb[0].mxu0 %v2150
        %v2295 = vpop.f32.mrb[0].mxu0
        %v2296 = vadd.f32 %v2155, %v2295
        %v2297 = vpop.f32.mrb[0].mxu0
        %v2298 = vpop.f32.mrb[0].mxu0
        %v2299 = vadd.f32 %v2155, %v2298
        %v2300 = vpop.f32.mrb[0].mxu0
        %2301 = vdwg.mxu0
        %v2302 = vadd.f32 %v2240, %v1918
        %v2303 = vadd.f32 %v2243, %v1919
        %v2304 = vadd.f32 %v2248, %v1920
        %v2305 = vadd.f32 %v2251, %v1921
        %v2306 = vadd.f32 %v2256, %v1922
        %v2307 = vadd.f32 %v2259, %v1923
        %v2308 = vadd.f32 %v2264, %v1924
        %v2309 = vadd.f32 %v2267, %v1925
        %v2310 = vadd.f32 %v2272, %v1926
        %v2311 = vadd.f32 %v2275, %v1927
        %v2312 = vadd.f32 %v2280, %v1928
        %v2313 = vadd.f32 %v2283, %v1929
        %v2314 = vadd.f32 %v2288, %v1930
        %v2315 = vadd.f32 %v2291, %v1931
        %v2316 = vadd.f32 %v2296, %v1932
        %v2317 = vadd.f32 %v2299, %v1933
        %v2318 = vmax.f32 %v2302, 0.0
        %v2319 = vmax.f32 %v2303, 0.0
        %v2320 = vmax.f32 %v2304, 0.0
        %v2321 = vmax.f32 %v2305, 0.0
        %v2322 = vmax.f32 %v2306, 0.0
        %v2323 = vmax.f32 %v2307, 0.0
        %v2324 = vmax.f32 %v2308, 0.0
        %v2325 = vmax.f32 %v2309, 0.0
        %v2326 = vmax.f32 %v2310, 0.0
        %v2327 = vmax.f32 %v2311, 0.0
        %v2328 = vmax.f32 %v2312, 0.0
        %v2329 = vmax.f32 %v2313, 0.0
        %v2330 = vmax.f32 %v2314, 0.0
        %v2331 = vmax.f32 %v2315, 0.0
        %v2332 = vmax.f32 %v2316, 0.0
        %v2333 = vmax.f32 %v2317, 0.0
        %v2334 = vld [vmem:[#allocation11] sm:$0xf]
        %v2335 = vld [vmem:[#allocation11 + $0x4] sm:$0xf]
        %v2336 = vld [vmem:[#allocation11 + $0x8] sm:$0xf]
        %v2337 = vld [vmem:[#allocation11 + $0xc] sm:$0xf]
        %v2338 = vld [vmem:[#allocation11 + $0x10] sm:$0xf]
        %v2339 = vld [vmem:[#allocation11 + $0x14] sm:$0xf]
        %v2340 = vld [vmem:[#allocation11 + $0x18] sm:$0xf]
        %v2341 = vld [vmem:[#allocation11 + $0x1c] sm:$0xf]
        %v2342 = vld [vmem:[#allocation11 + $0x20] sm:$0xf]
        %v2343 = vld [vmem:[#allocation11 + $0x24] sm:$0xf]
        %v2344 = vld [vmem:[#allocation11 + $0x28] sm:$0xf]
        %v2345 = vld [vmem:[#allocation11 + $0x2c] sm:$0xf]
        %v2346 = vld [vmem:[#allocation11 + $0x30] sm:$0xf]
        %v2347 = vld [vmem:[#allocation11 + $0x34] sm:$0xf]
        %v2348 = vld [vmem:[#allocation11 + $0x38] sm:$0xf]
        %v2349 = vld [vmem:[#allocation11 + $0x3c] sm:$0xf]
        %v2350 = vld [vmem:[#allocation13] sm:$0x1]
        %v2351 = vpack.c.bf16 %v2319, %v2318
        %v2352 = vpack.c.bf16 %v2321, %v2320
        %v2353 = vpack.c.bf16 %v2323, %v2322
        %v2354 = vpack.c.bf16 %v2325, %v2324
        %v2355 = vpack.c.bf16 %v2327, %v2326
        %v2356 = vpack.c.bf16 %v2329, %v2328
        %v2357 = vpack.c.bf16 %v2331, %v2330
        %v2358 = vpack.c.bf16 %v2333, %v2332
        %v2360 = vlaneseq
        %v2361 = vshrl.u32 %v2360, 7
        %v2362 = vsub.s32 0, %v2361
        %v2363 = vrot.slane %v2350, %v2362
        %v2381 = vunpack.c.l.b16 %v2334
        %v2382 = vunpack.c.l.b16 %v2335
        %v2383 = vunpack.c.l.b16 %v2336
        %v2384 = vunpack.c.l.b16 %v2337
        %v2385 = vunpack.c.l.b16 %v2338
        %v2386 = vunpack.c.l.b16 %v2339
        %v2387 = vunpack.c.l.b16 %v2340
        %v2388 = vunpack.c.l.b16 %v2341
        %v2389 = vunpack.c.l.b16 %v2342
        %v2390 = vunpack.c.l.b16 %v2343
        %v2391 = vunpack.c.l.b16 %v2344
        %v2392 = vunpack.c.l.b16 %v2345
        %v2393 = vunpack.c.l.b16 %v2346
        %v2394 = vunpack.c.l.b16 %v2347
        %v2395 = vunpack.c.l.b16 %v2348
        %v2396 = vunpack.c.l.b16 %v2349
        %v2397 = vpack.c.b16 %v2382, %v2381
        %v2398 = vpack.c.b16 %v2384, %v2383
        %v2399 = vpack.c.b16 %v2386, %v2385
        %v2400 = vpack.c.b16 %v2388, %v2387
        %v2401 = vpack.c.b16 %v2390, %v2389
        %v2402 = vpack.c.b16 %v2392, %v2391
        %v2403 = vpack.c.b16 %v2394, %v2393
        %v2404 = vpack.c.b16 %v2396, %v2395
        %2413 = vmatprep.subr.bf16.mxu0 0
        %2414 = vmatpush1.bf16.msra.mxu0 %v2397
        %2415 = vmatprep.subr.bf16.mxu0 0
        %2416 = vmatpush1.bf16.msra.mxu0 %v2398
        %2417 = vmatprep.subr.bf16.mxu0 0
        %2418 = vmatpush1.bf16.msra.mxu0 %v2399
        %2419 = vmatprep.subr.bf16.mxu0 0
        %2420 = vmatpush1.bf16.msra.mxu0 %v2400
        %2421 = vmatprep.subr.bf16.mxu0 0
        %2422 = vmatpush1.bf16.msra.mxu0 %v2401
        %2423 = vmatprep.subr.bf16.mxu0 0
        %2424 = vmatpush1.bf16.msra.mxu0 %v2402
        %2425 = vmatprep.subr.bf16.mxu0 0
        %2426 = vmatpush1.bf16.msra.mxu0 %v2403
        %2427 = vmatprep.subr.bf16.mxu0 0
        %2428 = vmatpush1.bf16.msra.mxu0 %v2404
        %2429 = vmatprep.subr.bf16.mxu0 0
        %2430 = vmatpush1.bf16.msra.mxu0 0
        %2431 = vmatprep.subr.bf16.mxu0 0
        %2432 = vmatpush1.bf16.msra.mxu0 0
        %2433 = vmatprep.subr.bf16.mxu0 0
        %2434 = vmatpush1.bf16.msra.mxu0 0
        %2435 = vmatprep.subr.bf16.mxu0 0
        %2436 = vmatpush1.bf16.msra.mxu0 0
        %2437 = vmatprep.subr.bf16.mxu0 0
        %2438 = vmatpush1.bf16.msra.mxu0 0
        %2439 = vmatprep.subr.bf16.mxu0 0
        %2440 = vmatpush1.bf16.msra.mxu0 0
        %2441 = vmatprep.subr.bf16.mxu0 0
        %2442 = vmatpush1.bf16.msra.mxu0 0
        %2443 = vmatprep.subr.bf16.mxu0 0
        %2444 = vmatpush1.bf16.msra.mxu0 0
        %2445 = vmatprep.mubr.bf16.mxu0 0
        %2446 = vmatmul.mubr.bf16.gmra.mrb[0].mxu0 %v2351
        %v2447 = vpop.f32.mrb[0].mxu0
        %v2448 = vadd.f32 %v2363, %v2447
        %v2449 = vpop.f32.mrb[0].mxu0
        %v2450 = vpop.f32.mrb[0].mxu0
        %v2451 = vadd.f32 %v2363, %v2450
        %v2452 = vpop.f32.mrb[0].mxu0
        %2453 = vmatprep.mubr.bf16.mxu0 0
        %2454 = vmatmul.mubr.bf16.gmra.mrb[0].mxu0 %v2352
        %v2455 = vpop.f32.mrb[0].mxu0
        %v2456 = vadd.f32 %v2363, %v2455
        %v2457 = vpop.f32.mrb[0].mxu0
        %v2458 = vpop.f32.mrb[0].mxu0
        %v2459 = vadd.f32 %v2363, %v2458
        %v2460 = vpop.f32.mrb[0].mxu0
        %2461 = vmatprep.mubr.bf16.mxu0 0
        %2462 = vmatmul.mubr.bf16.gmra.mrb[0].mxu0 %v2353
        %v2463 = vpop.f32.mrb[0].mxu0
        %v2464 = vadd.f32 %v2363, %v2463
        %v2465 = vpop.f32.mrb[0].mxu0
        %v2466 = vpop.f32.mrb[0].mxu0
        %v2467 = vadd.f32 %v2363, %v2466
        %v2468 = vpop.f32.mrb[0].mxu0
        %2469 = vmatprep.mubr.bf16.mxu0 0
        %2470 = vmatmul.mubr.bf16.gmra.mrb[0].mxu0 %v2354
        %v2471 = vpop.f32.mrb[0].mxu0
        %v2472 = vadd.f32 %v2363, %v2471
        %v2473 = vpop.f32.mrb[0].mxu0
        %v2474 = vpop.f32.mrb[0].mxu0
        %v2475 = vadd.f32 %v2363, %v2474
        %v2476 = vpop.f32.mrb[0].mxu0
        %2477 = vmatprep.mubr.bf16.mxu0 0
        %2478 = vmatmul.mubr.bf16.gmra.mrb[0].mxu0 %v2355
        %v2479 = vpop.f32.mrb[0].mxu0
        %v2480 = vadd.f32 %v2363, %v2479
        %v2481 = vpop.f32.mrb[0].mxu0
        %v2482 = vpop.f32.mrb[0].mxu0
        %v2483 = vadd.f32 %v2363, %v2482
        %v2484 = vpop.f32.mrb[0].mxu0
        %2485 = vmatprep.mubr.bf16.mxu0 0
        %2486 = vmatmul.mubr.bf16.gmra.mrb[0].mxu0 %v2356
        %v2487 = vpop.f32.mrb[0].mxu0
        %v2488 = vadd.f32 %v2363, %v2487
        %v2489 = vpop.f32.mrb[0].mxu0
        %v2490 = vpop.f32.mrb[0].mxu0
        %v2491 = vadd.f32 %v2363, %v2490
        %v2492 = vpop.f32.mrb[0].mxu0
        %2493 = vmatprep.mubr.bf16.mxu0 0
        %2494 = vmatmul.mubr.bf16.gmra.mrb[0].mxu0 %v2357
        %v2495 = vpop.f32.mrb[0].mxu0
        %v2496 = vadd.f32 %v2363, %v2495
        %v2497 = vpop.f32.mrb[0].mxu0
        %v2498 = vpop.f32.mrb[0].mxu0
        %v2499 = vadd.f32 %v2363, %v2498
        %v2500 = vpop.f32.mrb[0].mxu0
        %2501 = vmatprep.mubr.bf16.mxu0 0
        %2502 = vmatmul.mubr.bf16.gmra.mrb[0].mxu0 %v2358
        %v2503 = vpop.f32.mrb[0].mxu0
        %v2504 = vadd.f32 %v2363, %v2503
        %v2505 = vpop.f32.mrb[0].mxu0
        %v2506 = vpop.f32.mrb[0].mxu0
        %v2507 = vadd.f32 %v2363, %v2506
        %v2508 = vpop.f32.mrb[0].mxu0
        %2509 = vdwg.mxu0
        %v2510 = vmax.f32 %v2448, 0.0
        %v2511 = vmax.f32 %v2451, 0.0
        %v2512 = vmax.f32 %v2456, 0.0
        %v2513 = vmax.f32 %v2459, 0.0
        %v2514 = vmax.f32 %v2464, 0.0
        %v2515 = vmax.f32 %v2467, 0.0
        %v2516 = vmax.f32 %v2472, 0.0
        %v2517 = vmax.f32 %v2475, 0.0
        %v2518 = vmax.f32 %v2480, 0.0
        %v2519 = vmax.f32 %v2483, 0.0
        %v2520 = vmax.f32 %v2488, 0.0
        %v2521 = vmax.f32 %v2491, 0.0
        %v2522 = vmax.f32 %v2496, 0.0
        %v2523 = vmax.f32 %v2499, 0.0
        %v2524 = vmax.f32 %v2504, 0.0
        %v2525 = vmax.f32 %v2507, 0.0
        %v2526 = vld [vmem:[#allocation14] sm:$0xf]
        %v2527 = vld [vmem:[#allocation14 + $0x4] sm:$0xf]
        %v2528 = vld [vmem:[#allocation14 + $0x8] sm:$0xf]
        %v2529 = vld [vmem:[#allocation14 + $0xc] sm:$0xf]
        %v2530 = vld [vmem:[#allocation14 + $0x10] sm:$0xf]
        %v2531 = vld [vmem:[#allocation14 + $0x14] sm:$0xf]
        %v2532 = vld [vmem:[#allocation14 + $0x18] sm:$0xf]
        %v2533 = vld [vmem:[#allocation14 + $0x1c] sm:$0xf]
        %v2534 = vld [vmem:[#allocation14 + $0x20] sm:$0xf]
        %v2535 = vld [vmem:[#allocation14 + $0x24] sm:$0xf]
        %v2536 = vld [vmem:[#allocation14 + $0x28] sm:$0xf]
        %v2537 = vld [vmem:[#allocation14 + $0x2c] sm:$0xf]
        %v2538 = vld [vmem:[#allocation14 + $0x30] sm:$0xf]
        %v2539 = vld [vmem:[#allocation14 + $0x34] sm:$0xf]
        %v2540 = vld [vmem:[#allocation14 + $0x38] sm:$0xf]
        %v2541 = vld [vmem:[#allocation14 + $0x3c] sm:$0xf]
        %v2542 = vld [vmem:[#allocation16] sm:$0x1]
        %v2543 = vpack.c.bf16 %v2511, %v2510
        %v2544 = vpack.c.bf16 %v2513, %v2512
        %v2545 = vpack.c.bf16 %v2515, %v2514
        %v2546 = vpack.c.bf16 %v2517, %v2516
        %v2547 = vpack.c.bf16 %v2519, %v2518
        %v2548 = vpack.c.bf16 %v2521, %v2520
        %v2549 = vpack.c.bf16 %v2523, %v2522
        %v2550 = vpack.c.bf16 %v2525, %v2524
        %v2552 = vlaneseq
        %v2553 = vshrl.u32 %v2552, 7
        %v2554 = vsub.s32 0, %v2553
        %v2555 = vrot.slane %v2542, %v2554
        %v2573 = vunpack.c.l.b16 %v2526
        %v2574 = vunpack.c.l.b16 %v2527
        %v2575 = vunpack.c.l.b16 %v2528
        %v2576 = vunpack.c.l.b16 %v2529
        %v2577 = vunpack.c.l.b16 %v2530
        %v2578 = vunpack.c.l.b16 %v2531
        %v2579 = vunpack.c.l.b16 %v2532
        %v2580 = vunpack.c.l.b16 %v2533
        %v2581 = vunpack.c.l.b16 %v2534
        %v2582 = vunpack.c.l.b16 %v2535
        %v2583 = vunpack.c.l.b16 %v2536
        %v2584 = vunpack.c.l.b16 %v2537
        %v2585 = vunpack.c.l.b16 %v2538
        %v2586 = vunpack.c.l.b16 %v2539
        %v2587 = vunpack.c.l.b16 %v2540
        %v2588 = vunpack.c.l.b16 %v2541
        %v2589 = vpack.c.b16 %v2574, %v2573
        %v2590 = vpack.c.b16 %v2576, %v2575
        %v2591 = vpack.c.b16 %v2578, %v2577
        %v2592 = vpack.c.b16 %v2580, %v2579
        %v2593 = vpack.c.b16 %v2582, %v2581
        %v2594 = vpack.c.b16 %v2584, %v2583
        %v2595 = vpack.c.b16 %v2586, %v2585
        %v2596 = vpack.c.b16 %v2588, %v2587
        %2605 = vmatprep.subr.bf16.mxu0 0
        %2606 = vmatpush1.bf16.msra.mxu0 %v2589
        %2607 = vmatprep.subr.bf16.mxu0 0
        %2608 = vmatpush1.bf16.msra.mxu0 %v2590
        %2609 = vmatprep.subr.bf16.mxu0 0
        %2610 = vmatpush1.bf16.msra.mxu0 %v2591
        %2611 = vmatprep.subr.bf16.mxu0 0
        %2612 = vmatpush1.bf16.msra.mxu0 %v2592
        %2613 = vmatprep.subr.bf16.mxu0 0
        %2614 = vmatpush1.bf16.msra.mxu0 %v2593
        %2615 = vmatprep.subr.bf16.mxu0 0
        %2616 = vmatpush1.bf16.msra.mxu0 %v2594
        %2617 = vmatprep.subr.bf16.mxu0 0
        %2618 = vmatpush1.bf16.msra.mxu0 %v2595
        %2619 = vmatprep.subr.bf16.mxu0 0
        %2620 = vmatpush1.bf16.msra.mxu0 %v2596
        %2621 = vmatprep.subr.bf16.mxu0 0
        %2622 = vmatpush1.bf16.msra.mxu0 0
        %2623 = vmatprep.subr.bf16.mxu0 0
        %2624 = vmatpush1.bf16.msra.mxu0 0
        %2625 = vmatprep.subr.bf16.mxu0 0
        %2626 = vmatpush1.bf16.msra.mxu0 0
        %2627 = vmatprep.subr.bf16.mxu0 0
        %2628 = vmatpush1.bf16.msra.mxu0 0
        %2629 = vmatprep.subr.bf16.mxu0 0
        %2630 = vmatpush1.bf16.msra.mxu0 0
        %2631 = vmatprep.subr.bf16.mxu0 0
        %2632 = vmatpush1.bf16.msra.mxu0 0
        %2633 = vmatprep.subr.bf16.mxu0 0
        %2634 = vmatpush1.bf16.msra.mxu0 0
        %2635 = vmatprep.subr.bf16.mxu0 0
        %2636 = vmatpush1.bf16.msra.mxu0 0
        %2637 = vmatprep.mubr.bf16.mxu0 0
        %2638 = vmatmul.mubr.bf16.gmra.mrb[0].mxu0 %v2543
        %v2639 = vpop.f32.mrb[0].mxu0
        %v2640 = vadd.f32 %v2555, %v2639
        %v2641 = vpop.f32.mrb[0].mxu0
        %v2642 = vpop.f32.mrb[0].mxu0
        %v2643 = vadd.f32 %v2555, %v2642
        %v2644 = vpop.f32.mrb[0].mxu0
        %2645 = vmatprep.mubr.bf16.mxu0 0
        %2646 = vmatmul.mubr.bf16.gmra.mrb[0].mxu0 %v2544
        %v2647 = vpop.f32.mrb[0].mxu0
        %v2648 = vadd.f32 %v2555, %v2647
        %v2649 = vpop.f32.mrb[0].mxu0
        %v2650 = vpop.f32.mrb[0].mxu0
        %v2651 = vadd.f32 %v2555, %v2650
        %v2652 = vpop.f32.mrb[0].mxu0
        %2653 = vmatprep.mubr.bf16.mxu0 0
        %2654 = vmatmul.mubr.bf16.gmra.mrb[0].mxu0 %v2545
        %v2655 = vpop.f32.mrb[0].mxu0
        %v2656 = vadd.f32 %v2555, %v2655
        %v2657 = vpop.f32.mrb[0].mxu0
        %v2658 = vpop.f32.mrb[0].mxu0
        %v2659 = vadd.f32 %v2555, %v2658
        %v2660 = vpop.f32.mrb[0].mxu0
        %2661 = vmatprep.mubr.bf16.mxu0 0
        %2662 = vmatmul.mubr.bf16.gmra.mrb[0].mxu0 %v2546
        %v2663 = vpop.f32.mrb[0].mxu0
        %v2664 = vadd.f32 %v2555, %v2663
        %v2665 = vpop.f32.mrb[0].mxu0
        %v2666 = vpop.f32.mrb[0].mxu0
        %v2667 = vadd.f32 %v2555, %v2666
        %v2668 = vpop.f32.mrb[0].mxu0
        %2669 = vmatprep.mubr.bf16.mxu0 0
        %2670 = vmatmul.mubr.bf16.gmra.mrb[0].mxu0 %v2547
        %v2671 = vpop.f32.mrb[0].mxu0
        %v2672 = vadd.f32 %v2555, %v2671
        %v2673 = vpop.f32.mrb[0].mxu0
        %v2674 = vpop.f32.mrb[0].mxu0
        %v2675 = vadd.f32 %v2555, %v2674
        %v2676 = vpop.f32.mrb[0].mxu0
        %2677 = vmatprep.mubr.bf16.mxu0 0
        %2678 = vmatmul.mubr.bf16.gmra.mrb[0].mxu0 %v2548
        %v2679 = vpop.f32.mrb[0].mxu0
        %v2680 = vadd.f32 %v2555, %v2679
        %v2681 = vpop.f32.mrb[0].mxu0
        %v2682 = vpop.f32.mrb[0].mxu0
        %v2683 = vadd.f32 %v2555, %v2682
        %v2684 = vpop.f32.mrb[0].mxu0
        %2685 = vmatprep.mubr.bf16.mxu0 0
        %2686 = vmatmul.mubr.bf16.gmra.mrb[0].mxu0 %v2549
        %v2687 = vpop.f32.mrb[0].mxu0
        %v2688 = vadd.f32 %v2555, %v2687
        %v2689 = vpop.f32.mrb[0].mxu0
        %v2690 = vpop.f32.mrb[0].mxu0
        %v2691 = vadd.f32 %v2555, %v2690
        %v2692 = vpop.f32.mrb[0].mxu0
        %2693 = vmatprep.mubr.bf16.mxu0 0
        %2694 = vmatmul.mubr.bf16.gmra.mrb[0].mxu0 %v2550
        %v2695 = vpop.f32.mrb[0].mxu0
        %v2696 = vadd.f32 %v2555, %v2695
        %v2697 = vpop.f32.mrb[0].mxu0
        %v2698 = vpop.f32.mrb[0].mxu0
        %v2699 = vadd.f32 %v2555, %v2698
        %v2700 = vpop.f32.mrb[0].mxu0
        %2701 = vdwg.mxu0
        %v2702 = vmax.f32 %v2640, 0.0
        %v2703 = vmax.f32 %v2643, 0.0
        %v2704 = vmax.f32 %v2648, 0.0
        %v2705 = vmax.f32 %v2651, 0.0
        %v2706 = vmax.f32 %v2656, 0.0
        %v2707 = vmax.f32 %v2659, 0.0
        %v2708 = vmax.f32 %v2664, 0.0
        %v2709 = vmax.f32 %v2667, 0.0
        %v2710 = vmax.f32 %v2672, 0.0
        %v2711 = vmax.f32 %v2675, 0.0
        %v2712 = vmax.f32 %v2680, 0.0
        %v2713 = vmax.f32 %v2683, 0.0
        %v2714 = vmax.f32 %v2688, 0.0
        %v2715 = vmax.f32 %v2691, 0.0
        %v2716 = vmax.f32 %v2696, 0.0
        %v2717 = vmax.f32 %v2699, 0.0
        %v2718 = vld [vmem:[%s19] sm:$0xf]
        %v2719 = vld [vmem:[%s19 + $0x4] sm:$0xf]
        %v2720 = vld [vmem:[%s19 + $0x8] sm:$0xf]
        %v2721 = vld [vmem:[%s19 + $0xc] sm:$0xf]
        %v2722 = vld [vmem:[%s19 + $0x10] sm:$0xf]
        %v2723 = vld [vmem:[%s19 + $0x14] sm:$0xf]
        %v2724 = vld [vmem:[%s19 + $0x18] sm:$0xf]
        %v2725 = vld [vmem:[%s19 + $0x1c] sm:$0xf]
        %v2726 = vld [vmem:[%s19 + $0x20] sm:$0xf]
        %v2727 = vld [vmem:[%s19 + $0x24] sm:$0xf]
        %v2728 = vld [vmem:[%s19 + $0x28] sm:$0xf]
        %v2729 = vld [vmem:[%s19 + $0x2c] sm:$0xf]
        %v2730 = vld [vmem:[%s19 + $0x30] sm:$0xf]
        %v2731 = vld [vmem:[%s19 + $0x34] sm:$0xf]
        %v2732 = vld [vmem:[%s19 + $0x38] sm:$0xf]
        %v2733 = vld [vmem:[%s19 + $0x3c] sm:$0xf]
        %v2734 = vld [vmem:[%s20] sm:$0x1]
        %v2735 = vpack.c.bf16 %v2703, %v2702
        %v2736 = vpack.c.bf16 %v2705, %v2704
        %v2737 = vpack.c.bf16 %v2707, %v2706
        %v2738 = vpack.c.bf16 %v2709, %v2708
        %v2739 = vpack.c.bf16 %v2711, %v2710
        %v2740 = vpack.c.bf16 %v2713, %v2712
        %v2741 = vpack.c.bf16 %v2715, %v2714
        %v2742 = vpack.c.bf16 %v2717, %v2716
        %v2744 = vlaneseq
        %v2745 = vshrl.u32 %v2744, 7
        %v2746 = vsub.s32 0, %v2745
        %v2747 = vrot.slane %v2734, %v2746
        %v2765 = vunpack.c.l.b16 %v2718
        %v2766 = vunpack.c.l.b16 %v2719
        %v2767 = vunpack.c.l.b16 %v2720
        %v2768 = vunpack.c.l.b16 %v2721
        %v2769 = vunpack.c.l.b16 %v2722
        %v2770 = vunpack.c.l.b16 %v2723
        %v2771 = vunpack.c.l.b16 %v2724
        %v2772 = vunpack.c.l.b16 %v2725
        %v2773 = vunpack.c.l.b16 %v2726
        %v2774 = vunpack.c.l.b16 %v2727
        %v2775 = vunpack.c.l.b16 %v2728
        %v2776 = vunpack.c.l.b16 %v2729
        %v2777 = vunpack.c.l.b16 %v2730
        %v2778 = vunpack.c.l.b16 %v2731
        %v2779 = vunpack.c.l.b16 %v2732
        %v2780 = vunpack.c.l.b16 %v2733
        %v2781 = vpack.c.b16 %v2766, %v2765
        %v2782 = vpack.c.b16 %v2768, %v2767
        %v2783 = vpack.c.b16 %v2770, %v2769
        %v2784 = vpack.c.b16 %v2772, %v2771
        %v2785 = vpack.c.b16 %v2774, %v2773
        %v2786 = vpack.c.b16 %v2776, %v2775
        %v2787 = vpack.c.b16 %v2778, %v2777
        %v2788 = vpack.c.b16 %v2780, %v2779
        %2797 = vmatprep.subr.bf16.mxu0 0
        %2798 = vmatpush1.bf16.msra.mxu0 %v2781
        %2799 = vmatprep.subr.bf16.mxu0 0
        %2800 = vmatpush1.bf16.msra.mxu0 %v2782
        %2801 = vmatprep.subr.bf16.mxu0 0
        %2802 = vmatpush1.bf16.msra.mxu0 %v2783
        %2803 = vmatprep.subr.bf16.mxu0 0
        %2804 = vmatpush1.bf16.msra.mxu0 %v2784
        %2805 = vmatprep.subr.bf16.mxu0 0
        %2806 = vmatpush1.bf16.msra.mxu0 %v2785
        %2807 = vmatprep.subr.bf16.mxu0 0
        %2808 = vmatpush1.bf16.msra.mxu0 %v2786
        %2809 = vmatprep.subr.bf16.mxu0 0
        %2810 = vmatpush1.bf16.msra.mxu0 %v2787
        %2811 = vmatprep.subr.bf16.mxu0 0
        %2812 = vmatpush1.bf16.msra.mxu0 %v2788
        %2813 = vmatprep.subr.bf16.mxu0 0
        %2814 = vmatpush1.bf16.msra.mxu0 0
        %2815 = vmatprep.subr.bf16.mxu0 0
        %2816 = vmatpush1.bf16.msra.mxu0 0
        %2817 = vmatprep.subr.bf16.mxu0 0
        %2818 = vmatpush1.bf16.msra.mxu0 0
        %2819 = vmatprep.subr.bf16.mxu0 0
        %2820 = vmatpush1.bf16.msra.mxu0 0
        %2821 = vmatprep.subr.bf16.mxu0 0
        %2822 = vmatpush1.bf16.msra.mxu0 0
        %2823 = vmatprep.subr.bf16.mxu0 0
        %2824 = vmatpush1.bf16.msra.mxu0 0
        %2825 = vmatprep.subr.bf16.mxu0 0
        %2826 = vmatpush1.bf16.msra.mxu0 0
        %2827 = vmatprep.subr.bf16.mxu0 0
        %2828 = vmatpush1.bf16.msra.mxu0 0
        %2829 = vmatprep.mubr.bf16.mxu0 0
        %2830 = vmatmul.mubr.bf16.gmra.mrb[0].mxu0 %v2735
        %v2831 = vpop.f32.mrb[0].mxu0
        %v2832 = vadd.f32 %v2747, %v2831
        %v2833 = vpop.f32.mrb[0].mxu0
        %v2834 = vpop.f32.mrb[0].mxu0
        %v2835 = vadd.f32 %v2747, %v2834
        %v2836 = vpop.f32.mrb[0].mxu0
        %2837 = vmatprep.mubr.bf16.mxu0 0
        %2838 = vmatmul.mubr.bf16.gmra.mrb[0].mxu0 %v2736
        %v2839 = vpop.f32.mrb[0].mxu0
        %v2840 = vadd.f32 %v2747, %v2839
        %v2841 = vpop.f32.mrb[0].mxu0
        %v2842 = vpop.f32.mrb[0].mxu0
        %v2843 = vadd.f32 %v2747, %v2842
        %v2844 = vpop.f32.mrb[0].mxu0
        %2845 = vmatprep.mubr.bf16.mxu0 0
        %2846 = vmatmul.mubr.bf16.gmra.mrb[0].mxu0 %v2737
        %v2847 = vpop.f32.mrb[0].mxu0
        %v2848 = vadd.f32 %v2747, %v2847
        %v2849 = vpop.f32.mrb[0].mxu0
        %v2850 = vpop.f32.mrb[0].mxu0
        %v2851 = vadd.f32 %v2747, %v2850
        %v2852 = vpop.f32.mrb[0].mxu0
        %2853 = vmatprep.mubr.bf16.mxu0 0
        %2854 = vmatmul.mubr.bf16.gmra.mrb[0].mxu0 %v2738
        %v2855 = vpop.f32.mrb[0].mxu0
        %v2856 = vadd.f32 %v2747, %v2855
        %v2857 = vpop.f32.mrb[0].mxu0
        %v2858 = vpop.f32.mrb[0].mxu0
        %v2859 = vadd.f32 %v2747, %v2858
        %v2860 = vpop.f32.mrb[0].mxu0
        %2861 = vmatprep.mubr.bf16.mxu0 0
        %2862 = vmatmul.mubr.bf16.gmra.mrb[0].mxu0 %v2739
        %v2863 = vpop.f32.mrb[0].mxu0
        %v2864 = vadd.f32 %v2747, %v2863
        %v2865 = vpop.f32.mrb[0].mxu0
        %v2866 = vpop.f32.mrb[0].mxu0
        %v2867 = vadd.f32 %v2747, %v2866
        %v2868 = vpop.f32.mrb[0].mxu0
        %2869 = vmatprep.mubr.bf16.mxu0 0
        %2870 = vmatmul.mubr.bf16.gmra.mrb[0].mxu0 %v2740
        %v2871 = vpop.f32.mrb[0].mxu0
        %v2872 = vadd.f32 %v2747, %v2871
        %v2873 = vpop.f32.mrb[0].mxu0
        %v2874 = vpop.f32.mrb[0].mxu0
        %v2875 = vadd.f32 %v2747, %v2874
        %v2876 = vpop.f32.mrb[0].mxu0
        %2877 = vmatprep.mubr.bf16.mxu0 0
        %2878 = vmatmul.mubr.bf16.gmra.mrb[0].mxu0 %v2741
        %v2879 = vpop.f32.mrb[0].mxu0
        %v2880 = vadd.f32 %v2747, %v2879
        %v2881 = vpop.f32.mrb[0].mxu0
        %v2882 = vpop.f32.mrb[0].mxu0
        %v2883 = vadd.f32 %v2747, %v2882
        %v2884 = vpop.f32.mrb[0].mxu0
        %2885 = vmatprep.mubr.bf16.mxu0 0
        %2886 = vmatmul.mubr.bf16.gmra.mrb[0].mxu0 %v2742
        %v2887 = vpop.f32.mrb[0].mxu0
        %v2888 = vadd.f32 %v2747, %v2887
        %v2889 = vpop.f32.mrb[0].mxu0
        %v2890 = vpop.f32.mrb[0].mxu0
        %v2891 = vadd.f32 %v2747, %v2890
        %v2892 = vpop.f32.mrb[0].mxu0
        %2893 = vdwg.mxu0
        %v2894 = vadd.f32 %v2832, %v2318
        %v2895 = vadd.f32 %v2835, %v2319
        %v2896 = vadd.f32 %v2840, %v2320
        %v2897 = vadd.f32 %v2843, %v2321
        %v2898 = vadd.f32 %v2848, %v2322
        %v2899 = vadd.f32 %v2851, %v2323
        %v2900 = vadd.f32 %v2856, %v2324
        %v2901 = vadd.f32 %v2859, %v2325
        %v2902 = vadd.f32 %v2864, %v2326
        %v2903 = vadd.f32 %v2867, %v2327
        %v2904 = vadd.f32 %v2872, %v2328
        %v2905 = vadd.f32 %v2875, %v2329
        %v2906 = vadd.f32 %v2880, %v2330
        %v2907 = vadd.f32 %v2883, %v2331
        %v2908 = vadd.f32 %v2888, %v2332
        %v2909 = vadd.f32 %v2891, %v2333
        %v2910 = vmax.f32 %v2894, 0.0
        %v2911 = vmax.f32 %v2895, 0.0
        %v2912 = vmax.f32 %v2896, 0.0
        %v2913 = vmax.f32 %v2897, 0.0
        %v2914 = vmax.f32 %v2898, 0.0
        %v2915 = vmax.f32 %v2899, 0.0
        %v2916 = vmax.f32 %v2900, 0.0
        %v2917 = vmax.f32 %v2901, 0.0
        %v2918 = vmax.f32 %v2902, 0.0
        %v2919 = vmax.f32 %v2903, 0.0
        %v2920 = vmax.f32 %v2904, 0.0
        %v2921 = vmax.f32 %v2905, 0.0
        %v2922 = vmax.f32 %v2906, 0.0
        %v2923 = vmax.f32 %v2907, 0.0
        %v2924 = vmax.f32 %v2908, 0.0
        %v2925 = vmax.f32 %v2909, 0.0
        %v2926 = vld [vmem:[#allocation17] sm:$0xf]
        %v2927 = vld [vmem:[#allocation17 + $0x4] sm:$0xf]
        %v2928 = vld [vmem:[#allocation17 + $0x8] sm:$0xf]
        %v2929 = vld [vmem:[#allocation17 + $0xc] sm:$0xf]
        %v2930 = vld [vmem:[#allocation17 + $0x10] sm:$0xf]
        %v2931 = vld [vmem:[#allocation17 + $0x14] sm:$0xf]
        %v2932 = vld [vmem:[#allocation17 + $0x18] sm:$0xf]
        %v2933 = vld [vmem:[#allocation17 + $0x1c] sm:$0xf]
        %v2934 = vld [vmem:[#allocation17 + $0x20] sm:$0xf]
        %v2935 = vld [vmem:[#allocation17 + $0x24] sm:$0xf]
        %v2936 = vld [vmem:[#allocation17 + $0x28] sm:$0xf]
        %v2937 = vld [vmem:[#allocation17 + $0x2c] sm:$0xf]
        %v2938 = vld [vmem:[#allocation17 + $0x30] sm:$0xf]
        %v2939 = vld [vmem:[#allocation17 + $0x34] sm:$0xf]
        %v2940 = vld [vmem:[#allocation17 + $0x38] sm:$0xf]
        %v2941 = vld [vmem:[#allocation17 + $0x3c] sm:$0xf]
        %v2942 = vld [vmem:[%s22] sm:$0x1]
        %v2943 = vpack.c.bf16 %v2911, %v2910
        %v2944 = vpack.c.bf16 %v2913, %v2912
        %v2945 = vpack.c.bf16 %v2915, %v2914
        %v2946 = vpack.c.bf16 %v2917, %v2916
        %v2947 = vpack.c.bf16 %v2919, %v2918
        %v2948 = vpack.c.bf16 %v2921, %v2920
        %v2949 = vpack.c.bf16 %v2923, %v2922
        %v2950 = vpack.c.bf16 %v2925, %v2924
        %v2952 = vlaneseq
        %v2953 = vshrl.u32 %v2952, 7
        %v2954 = vsub.s32 0, %v2953
        %v2955 = vrot.slane %v2942, %v2954
        %v2973 = vunpack.c.l.b16 %v2926
        %v2974 = vunpack.c.l.b16 %v2927
        %v2975 = vunpack.c.l.b16 %v2928
        %v2976 = vunpack.c.l.b16 %v2929
        %v2977 = vunpack.c.l.b16 %v2930
        %v2978 = vunpack.c.l.b16 %v2931
        %v2979 = vunpack.c.l.b16 %v2932
        %v2980 = vunpack.c.l.b16 %v2933
        %v2981 = vunpack.c.l.b16 %v2934
        %v2982 = vunpack.c.l.b16 %v2935
        %v2983 = vunpack.c.l.b16 %v2936
        %v2984 = vunpack.c.l.b16 %v2937
        %v2985 = vunpack.c.l.b16 %v2938
        %v2986 = vunpack.c.l.b16 %v2939
        %v2987 = vunpack.c.l.b16 %v2940
        %v2988 = vunpack.c.l.b16 %v2941
        %v2989 = vpack.c.b16 %v2974, %v2973
        %v2990 = vpack.c.b16 %v2976, %v2975
        %v2991 = vpack.c.b16 %v2978, %v2977
        %v2992 = vpack.c.b16 %v2980, %v2979
        %v2993 = vpack.c.b16 %v2982, %v2981
        %v2994 = vpack.c.b16 %v2984, %v2983
        %v2995 = vpack.c.b16 %v2986, %v2985
        %v2996 = vpack.c.b16 %v2988, %v2987
        %3005 = vmatprep.subr.bf16.mxu0 0
        %3006 = vmatpush1.bf16.msra.mxu0 %v2989
        %3007 = vmatprep.subr.bf16.mxu0 0
        %3008 = vmatpush1.bf16.msra.mxu0 %v2990
        %3009 = vmatprep.subr.bf16.mxu0 0
        %3010 = vmatpush1.bf16.msra.mxu0 %v2991
        %3011 = vmatprep.subr.bf16.mxu0 0
        %3012 = vmatpush1.bf16.msra.mxu0 %v2992
        %3013 = vmatprep.subr.bf16.mxu0 0
        %3014 = vmatpush1.bf16.msra.mxu0 %v2993
        %3015 = vmatprep.subr.bf16.mxu0 0
        %3016 = vmatpush1.bf16.msra.mxu0 %v2994
        %3017 = vmatprep.subr.bf16.mxu0 0
        %3018 = vmatpush1.bf16.msra.mxu0 %v2995
        %3019 = vmatprep.subr.bf16.mxu0 0
        %3020 = vmatpush1.bf16.msra.mxu0 %v2996
        %3021 = vmatprep.subr.bf16.mxu0 0
        %3022 = vmatpush1.bf16.msra.mxu0 0
        %3023 = vmatprep.subr.bf16.mxu0 0
        %3024 = vmatpush1.bf16.msra.mxu0 0
        %3025 = vmatprep.subr.bf16.mxu0 0
        %3026 = vmatpush1.bf16.msra.mxu0 0
        %3027 = vmatprep.subr.bf16.mxu0 0
        %3028 = vmatpush1.bf16.msra.mxu0 0
        %3029 = vmatprep.subr.bf16.mxu0 0
        %3030 = vmatpush1.bf16.msra.mxu0 0
        %3031 = vmatprep.subr.bf16.mxu0 0
        %3032 = vmatpush1.bf16.msra.mxu0 0
        %3033 = vmatprep.subr.bf16.mxu0 0
        %3034 = vmatpush1.bf16.msra.mxu0 0
        %3035 = vmatprep.subr.bf16.mxu0 0
        %3036 = vmatpush1.bf16.msra.mxu0 0
        %3037 = vmatprep.mubr.bf16.mxu0 0
        %3038 = vmatmul.mubr.bf16.gmra.mrb[0].mxu0 %v2943
        %v3039 = vpop.f32.mrb[0].mxu0
        %v3040 = vadd.f32 %v2955, %v3039
        %v3041 = vpop.f32.mrb[0].mxu0
        %v3042 = vpop.f32.mrb[0].mxu0
        %v3043 = vadd.f32 %v2955, %v3042
        %v3044 = vpop.f32.mrb[0].mxu0
        %3045 = vmatprep.mubr.bf16.mxu0 0
        %3046 = vmatmul.mubr.bf16.gmra.mrb[0].mxu0 %v2944
        %v3047 = vpop.f32.mrb[0].mxu0
        %v3048 = vadd.f32 %v2955, %v3047
        %v3049 = vpop.f32.mrb[0].mxu0
        %v3050 = vpop.f32.mrb[0].mxu0
        %v3051 = vadd.f32 %v2955, %v3050
        %v3052 = vpop.f32.mrb[0].mxu0
        %3053 = vmatprep.mubr.bf16.mxu0 0
        %3054 = vmatmul.mubr.bf16.gmra.mrb[0].mxu0 %v2945
        %v3055 = vpop.f32.mrb[0].mxu0
        %v3056 = vadd.f32 %v2955, %v3055
        %v3057 = vpop.f32.mrb[0].mxu0
        %v3058 = vpop.f32.mrb[0].mxu0
        %v3059 = vadd.f32 %v2955, %v3058
        %v3060 = vpop.f32.mrb[0].mxu0
        %3061 = vmatprep.mubr.bf16.mxu0 0
        %3062 = vmatmul.mubr.bf16.gmra.mrb[0].mxu0 %v2946
        %v3063 = vpop.f32.mrb[0].mxu0
        %v3064 = vadd.f32 %v2955, %v3063
        %v3065 = vpop.f32.mrb[0].mxu0
        %v3066 = vpop.f32.mrb[0].mxu0
        %v3067 = vadd.f32 %v2955, %v3066
        %v3068 = vpop.f32.mrb[0].mxu0
        %3069 = vmatprep.mubr.bf16.mxu0 0
        %3070 = vmatmul.mubr.bf16.gmra.mrb[0].mxu0 %v2947
        %v3071 = vpop.f32.mrb[0].mxu0
        %v3072 = vadd.f32 %v2955, %v3071
        %v3073 = vpop.f32.mrb[0].mxu0
        %v3074 = vpop.f32.mrb[0].mxu0
        %v3075 = vadd.f32 %v2955, %v3074
        %v3076 = vpop.f32.mrb[0].mxu0
        %3077 = vmatprep.mubr.bf16.mxu0 0
        %3078 = vmatmul.mubr.bf16.gmra.mrb[0].mxu0 %v2948
        %v3079 = vpop.f32.mrb[0].mxu0
        %v3080 = vadd.f32 %v2955, %v3079
        %v3081 = vpop.f32.mrb[0].mxu0
        %v3082 = vpop.f32.mrb[0].mxu0
        %v3083 = vadd.f32 %v2955, %v3082
        %v3084 = vpop.f32.mrb[0].mxu0
        %3085 = vmatprep.mubr.bf16.mxu0 0
        %3086 = vmatmul.mubr.bf16.gmra.mrb[0].mxu0 %v2949
        %v3087 = vpop.f32.mrb[0].mxu0
        %v3088 = vadd.f32 %v2955, %v3087
        %v3089 = vpop.f32.mrb[0].mxu0
        %v3090 = vpop.f32.mrb[0].mxu0
        %v3091 = vadd.f32 %v2955, %v3090
        %v3092 = vpop.f32.mrb[0].mxu0
        %3093 = vmatprep.mubr.bf16.mxu0 0
        %3094 = vmatmul.mubr.bf16.gmra.mrb[0].mxu0 %v2950
        %v3095 = vpop.f32.mrb[0].mxu0
        %v3096 = vadd.f32 %v2955, %v3095
        %v3097 = vpop.f32.mrb[0].mxu0
        %v3098 = vpop.f32.mrb[0].mxu0
        %v3099 = vadd.f32 %v2955, %v3098
        %v3100 = vpop.f32.mrb[0].mxu0
        %3101 = vdwg.mxu0
        %vm3102 = vcmp.gt.f32.partialorder %v3040, 0.0
        %vm3103 = vcmp.gt.f32.partialorder %v3043, 0.0
        %vm3104 = vcmp.gt.f32.partialorder %v3048, 0.0
        %vm3105 = vcmp.gt.f32.partialorder %v3051, 0.0
        %vm3106 = vcmp.gt.f32.partialorder %v3056, 0.0
        %vm3107 = vcmp.gt.f32.partialorder %v3059, 0.0
        %vm3108 = vcmp.gt.f32.partialorder %v3064, 0.0
        %vm3109 = vcmp.gt.f32.partialorder %v3067, 0.0
        %vm3110 = vcmp.gt.f32.partialorder %v3072, 0.0
        %vm3111 = vcmp.gt.f32.partialorder %v3075, 0.0
        %vm3112 = vcmp.gt.f32.partialorder %v3080, 0.0
        %vm3113 = vcmp.gt.f32.partialorder %v3083, 0.0
        %vm3114 = vcmp.gt.f32.partialorder %v3088, 0.0
        %vm3115 = vcmp.gt.f32.partialorder %v3091, 0.0
        %vm3116 = vcmp.gt.f32.partialorder %v3096, 0.0
        %vm3117 = vcmp.gt.f32.partialorder %v3099, 0.0
        %v3118 = vmul.f32 %v3040, 0.1
        %v3119 = vmul.f32 %v3043, 0.1
        %v3120 = vmul.f32 %v3048, 0.1
        %v3121 = vmul.f32 %v3051, 0.1
        %v3122 = vmul.f32 %v3056, 0.1
        %v3123 = vmul.f32 %v3059, 0.1
        %v3124 = vmul.f32 %v3064, 0.1
        %v3125 = vmul.f32 %v3067, 0.1
        %v3126 = vmul.f32 %v3072, 0.1
        %v3127 = vmul.f32 %v3075, 0.1
        %v3128 = vmul.f32 %v3080, 0.1
        %v3129 = vmul.f32 %v3083, 0.1
        %v3130 = vmul.f32 %v3088, 0.1
        %v3131 = vmul.f32 %v3091, 0.1
        %v3132 = vmul.f32 %v3096, 0.1
        %v3133 = vmul.f32 %v3099, 0.1
        %v3134 = vsel %vm3102, %v3040, %v3118
        %v3135 = vsel %vm3103, %v3043, %v3119
        %v3136 = vsel %vm3104, %v3048, %v3120
        %v3137 = vsel %vm3105, %v3051, %v3121
        %v3138 = vsel %vm3106, %v3056, %v3122
        %v3139 = vsel %vm3107, %v3059, %v3123
        %v3140 = vsel %vm3108, %v3064, %v3124
        %v3141 = vsel %vm3109, %v3067, %v3125
        %v3142 = vsel %vm3110, %v3072, %v3126
        %v3143 = vsel %vm3111, %v3075, %v3127
        %v3144 = vsel %vm3112, %v3080, %v3128
        %v3145 = vsel %vm3113, %v3083, %v3129
        %v3146 = vsel %vm3114, %v3088, %v3130
        %v3147 = vsel %vm3115, %v3091, %v3131
        %v3148 = vsel %vm3116, %v3096, %v3132
        %v3149 = vsel %vm3117, %v3099, %v3133
        %v3150 = vld [vmem:[#allocation19] sm:$0xf]
        %v3151 = vld [vmem:[#allocation19 + $0x4] sm:$0xf]
        %v3152 = vld [vmem:[#allocation19 + $0x8] sm:$0xf]
        %v3153 = vld [vmem:[#allocation19 + $0xc] sm:$0xf]
        %v3154 = vld [vmem:[#allocation19 + $0x10] sm:$0xf]
        %v3155 = vld [vmem:[#allocation19 + $0x14] sm:$0xf]
        %v3156 = vld [vmem:[#allocation19 + $0x18] sm:$0xf]
        %v3157 = vld [vmem:[#allocation19 + $0x1c] sm:$0xf]
        %v3158 = vld [vmem:[#allocation19 + $0x20] sm:$0xf]
        %v3159 = vld [vmem:[#allocation19 + $0x24] sm:$0xf]
        %v3160 = vld [vmem:[#allocation19 + $0x28] sm:$0xf]
        %v3161 = vld [vmem:[#allocation19 + $0x2c] sm:$0xf]
        %v3162 = vld [vmem:[#allocation19 + $0x30] sm:$0xf]
        %v3163 = vld [vmem:[#allocation19 + $0x34] sm:$0xf]
        %v3164 = vld [vmem:[#allocation19 + $0x38] sm:$0xf]
        %v3165 = vld [vmem:[#allocation19 + $0x3c] sm:$0xf]
        %v3166 = vld [vmem:[%s24] sm:$0x1]
        %v3167 = vpack.c.bf16 %v3135, %v3134
        %v3168 = vpack.c.bf16 %v3137, %v3136
        %v3169 = vpack.c.bf16 %v3139, %v3138
        %v3170 = vpack.c.bf16 %v3141, %v3140
        %v3171 = vpack.c.bf16 %v3143, %v3142
        %v3172 = vpack.c.bf16 %v3145, %v3144
        %v3173 = vpack.c.bf16 %v3147, %v3146
        %v3174 = vpack.c.bf16 %v3149, %v3148
        %v3176 = vlaneseq
        %v3177 = vshrl.u32 %v3176, 7
        %v3178 = vsub.s32 0, %v3177
        %v3179 = vrot.slane %v3166, %v3178
        %v3197 = vunpack.c.l.b16 %v3150
        %v3198 = vunpack.c.l.b16 %v3151
        %v3199 = vunpack.c.l.b16 %v3152
        %v3200 = vunpack.c.l.b16 %v3153
        %v3201 = vunpack.c.l.b16 %v3154
        %v3202 = vunpack.c.l.b16 %v3155
        %v3203 = vunpack.c.l.b16 %v3156
        %v3204 = vunpack.c.l.b16 %v3157
        %v3205 = vunpack.c.l.b16 %v3158
        %v3206 = vunpack.c.l.b16 %v3159
        %v3207 = vunpack.c.l.b16 %v3160
        %v3208 = vunpack.c.l.b16 %v3161
        %v3209 = vunpack.c.l.b16 %v3162
        %v3210 = vunpack.c.l.b16 %v3163
        %v3211 = vunpack.c.l.b16 %v3164
        %v3212 = vunpack.c.l.b16 %v3165
        %v3213 = vpack.c.b16 %v3198, %v3197
        %v3214 = vpack.c.b16 %v3200, %v3199
        %v3215 = vpack.c.b16 %v3202, %v3201
        %v3216 = vpack.c.b16 %v3204, %v3203
        %v3217 = vpack.c.b16 %v3206, %v3205
        %v3218 = vpack.c.b16 %v3208, %v3207
        %v3219 = vpack.c.b16 %v3210, %v3209
        %v3220 = vpack.c.b16 %v3212, %v3211
        %3229 = vmatprep.subr.bf16.mxu0 0
        %3230 = vmatpush1.bf16.msra.mxu0 %v3213
        %3231 = vmatprep.subr.bf16.mxu0 0
        %3232 = vmatpush1.bf16.msra.mxu0 %v3214
        %3233 = vmatprep.subr.bf16.mxu0 0
        %3234 = vmatpush1.bf16.msra.mxu0 %v3215
        %3235 = vmatprep.subr.bf16.mxu0 0
        %3236 = vmatpush1.bf16.msra.mxu0 %v3216
        %3237 = vmatprep.subr.bf16.mxu0 0
        %3238 = vmatpush1.bf16.msra.mxu0 %v3217
        %3239 = vmatprep.subr.bf16.mxu0 0
        %3240 = vmatpush1.bf16.msra.mxu0 %v3218
        %3241 = vmatprep.subr.bf16.mxu0 0
        %3242 = vmatpush1.bf16.msra.mxu0 %v3219
        %3243 = vmatprep.subr.bf16.mxu0 0
        %3244 = vmatpush1.bf16.msra.mxu0 %v3220
        %3245 = vmatprep.subr.bf16.mxu0 0
        %3246 = vmatpush1.bf16.msra.mxu0 0
        %3247 = vmatprep.subr.bf16.mxu0 0
        %3248 = vmatpush1.bf16.msra.mxu0 0
        %3249 = vmatprep.subr.bf16.mxu0 0
        %3250 = vmatpush1.bf16.msra.mxu0 0
        %3251 = vmatprep.subr.bf16.mxu0 0
        %3252 = vmatpush1.bf16.msra.mxu0 0
        %3253 = vmatprep.subr.bf16.mxu0 0
        %3254 = vmatpush1.bf16.msra.mxu0 0
        %3255 = vmatprep.subr.bf16.mxu0 0
        %3256 = vmatpush1.bf16.msra.mxu0 0
        %3257 = vmatprep.subr.bf16.mxu0 0
        %3258 = vmatpush1.bf16.msra.mxu0 0
        %3259 = vmatprep.subr.bf16.mxu0 0
        %3260 = vmatpush1.bf16.msra.mxu0 0
        %3261 = vmatprep.mubr.bf16.mxu0 0
        %3262 = vmatmul.mubr.bf16.gmra.mrb[0].mxu0 %v3167
        %v3263 = vpop.f32.mrb[0].mxu0
        %v3264 = vadd.f32 %v3179, %v3263
        %v3265 = vpop.f32.mrb[0].mxu0
        %v3266 = vpop.f32.mrb[0].mxu0
        %v3267 = vadd.f32 %v3179, %v3266
        %v3268 = vpop.f32.mrb[0].mxu0
        %3269 = vmatprep.mubr.bf16.mxu0 0
        %3270 = vmatmul.mubr.bf16.gmra.mrb[0].mxu0 %v3168
        %v3271 = vpop.f32.mrb[0].mxu0
        %v3272 = vadd.f32 %v3179, %v3271
        %v3273 = vpop.f32.mrb[0].mxu0
        %v3274 = vpop.f32.mrb[0].mxu0
        %v3275 = vadd.f32 %v3179, %v3274
        %v3276 = vpop.f32.mrb[0].mxu0
        %3277 = vmatprep.mubr.bf16.mxu0 0
        %3278 = vmatmul.mubr.bf16.gmra.mrb[0].mxu0 %v3169
        %v3279 = vpop.f32.mrb[0].mxu0
        %v3280 = vadd.f32 %v3179, %v3279
        %v3281 = vpop.f32.mrb[0].mxu0
        %v3282 = vpop.f32.mrb[0].mxu0
        %v3283 = vadd.f32 %v3179, %v3282
        %v3284 = vpop.f32.mrb[0].mxu0
        %3285 = vmatprep.mubr.bf16.mxu0 0
        %3286 = vmatmul.mubr.bf16.gmra.mrb[0].mxu0 %v3170
        %v3287 = vpop.f32.mrb[0].mxu0
        %v3288 = vadd.f32 %v3179, %v3287
        %v3289 = vpop.f32.mrb[0].mxu0
        %v3290 = vpop.f32.mrb[0].mxu0
        %v3291 = vadd.f32 %v3179, %v3290
        %v3292 = vpop.f32.mrb[0].mxu0
        %3293 = vmatprep.mubr.bf16.mxu0 0
        %3294 = vmatmul.mubr.bf16.gmra.mrb[0].mxu0 %v3171
        %v3295 = vpop.f32.mrb[0].mxu0
        %v3296 = vadd.f32 %v3179, %v3295
        %v3297 = vpop.f32.mrb[0].mxu0
        %v3298 = vpop.f32.mrb[0].mxu0
        %v3299 = vadd.f32 %v3179, %v3298
        %v3300 = vpop.f32.mrb[0].mxu0
        %3301 = vmatprep.mubr.bf16.mxu0 0
        %3302 = vmatmul.mubr.bf16.gmra.mrb[0].mxu0 %v3172
        %v3303 = vpop.f32.mrb[0].mxu0
        %v3304 = vadd.f32 %v3179, %v3303
        %v3305 = vpop.f32.mrb[0].mxu0
        %v3306 = vpop.f32.mrb[0].mxu0
        %v3307 = vadd.f32 %v3179, %v3306
        %v3308 = vpop.f32.mrb[0].mxu0
        %3309 = vmatprep.mubr.bf16.mxu0 0
        %3310 = vmatmul.mubr.bf16.gmra.mrb[0].mxu0 %v3173
        %v3311 = vpop.f32.mrb[0].mxu0
        %v3312 = vadd.f32 %v3179, %v3311
        %v3313 = vpop.f32.mrb[0].mxu0
        %v3314 = vpop.f32.mrb[0].mxu0
        %v3315 = vadd.f32 %v3179, %v3314
        %v3316 = vpop.f32.mrb[0].mxu0
        %3317 = vmatprep.mubr.bf16.mxu0 0
        %3318 = vmatmul.mubr.bf16.gmra.mrb[0].mxu0 %v3174
        %v3319 = vpop.f32.mrb[0].mxu0
        %v3320 = vadd.f32 %v3179, %v3319
        %v3321 = vpop.f32.mrb[0].mxu0
        %v3322 = vpop.f32.mrb[0].mxu0
        %v3323 = vadd.f32 %v3179, %v3322
        %v3324 = vpop.f32.mrb[0].mxu0
        %3325 = vdwg.mxu0
        %3326 = vst [vmem:[%s908] sm:$0xff] %v3264
        %3327 = vst [vmem:[%s908 + $0x8] sm:$0xff] %v3267
        %3328 = vst [vmem:[%s908 + $0x10] sm:$0xff] %v3272
        %3329 = vst [vmem:[%s908 + $0x18] sm:$0xff] %v3275
        %3330 = vst [vmem:[%s908 + $0x20] sm:$0xff] %v3280
        %3331 = vst [vmem:[%s908 + $0x28] sm:$0xff] %v3283
        %3332 = vst [vmem:[%s908 + $0x30] sm:$0xff] %v3288
        %3333 = vst [vmem:[%s908 + $0x38] sm:$0xff] %v3291
        %3334 = vst [vmem:[%s908 + $0x40] sm:$0xff] %v3296
        %3335 = vst [vmem:[%s908 + $0x48] sm:$0xff] %v3299
        %3336 = vst [vmem:[%s908 + $0x50] sm:$0xff] %v3304
        %3337 = vst [vmem:[%s908 + $0x58] sm:$0xff] %v3307
        %3338 = vst [vmem:[%s908 + $0x60] sm:$0xff] %v3312
        %3339 = vst [vmem:[%s908 + $0x68] sm:$0xff] %v3315
        %3340 = vst [vmem:[%s908 + $0x70] sm:$0xff] %v3320
        %3341 = vst [vmem:[%s908 + $0x78] sm:$0xff] %v3323
        %s3342 = sand.u32 %s583, 1
        %s3343 = scalar_lea.sflag [#allocation4], %s3342
        %s3344 = sand.u32 %s583, 1
        %s3345 = smul.addr %s3344, 128
        %s3346 = scalar_lea.vmem [#allocation20], %s3345
        // Predicated region
        $region165: #{tpu_custom_call.1} parent=119 // pred_check
          %p3347 = pneg %p593
        $region166: #{tpu_custom_call.1} parent=119 // pred_check_branch
          %3349 = sbr.rel (%p3347) target = $region168
        $region167: #{tpu_custom_call.1} parent=119 // pred_region
          %s3350 = smul.u32 16, %s45
          %s3352 = ssub.s32 2048, 2048
          %3353 = vsyncadd %s3343, %s3352
          %s3354 = smul.addr %s3350, 128
          %s3355 = scalar_lea.hbm %s25, %s3354
          %s3356 = sshll.u32 %s3346, 4
          %s3357 = int_to_ptr.vmem [resolvable:$true] %s3356
          %3362 = dma.vmem_to_hbm [thread:$0]  %s3357, 2048, %s3355, %s3343, 128, 128, 8
        $region168: #{tpu_custom_call.1} parent=119 // pred_fallthru
          _
      $region120: #{tpu_custom_call.1} parent=5 // pred_fallthru
        _
      %p3363 = scmp.le.s32.totalorder 2, %s40
      // Predicated region
      $region169: #{tpu_custom_call.1} parent=5 // pred_check
        %p3364 = pneg %p3363
      $region170: #{tpu_custom_call.1} parent=5 // pred_check_branch
        %3366 = sbr.rel (%p3364) target = $region172
      $region171: #{tpu_custom_call.1} parent=5 // pred_region
        %s3367 = ssub.s32 %s40, 2
        // Predicated region
        $region173: #{tpu_custom_call.1} parent=171 // pred_check
          %p3368 = pneg %p599
        $region174: #{tpu_custom_call.1} parent=171 // pred_check_branch
          %3370 = sbr.rel (%p3368) target = $region176
        $region175: #{tpu_custom_call.1} parent=171 // pred_region
          %s3371 = sand.u32 %s584, 1
          %s3372 = scalar_lea.sflag [#allocation4], %s3371
          %s3373 = sand.u32 %s584, 1
          %s3374 = smul.addr %s3373, 128
          %s3375 = scalar_lea.vmem [#allocation20], %s3374
          %3376 = dma.done %s3372, 2048
        $region176: #{tpu_custom_call.1} parent=171 // pred_fallthru
          _
      $region172: #{tpu_custom_call.1} parent=5 // pred_fallthru
        _
    $region6: #{tpu_custom_call.1} parent=1 // loop_footer
      %s44 = sadd.s32 1, %s40
    $region7: #{tpu_custom_call.1} parent=1 // loop_footer_branch
      %39 = sbr.rel target = $region3
    $region8: #{tpu_custom_call.1} parent=1 // loop_exit
      _
    %3377 = vsyncpa [#allocation3], 1
    %s3378 = scalar_lea.sflag [#allocation3], 1
    %3379 = vsyncpa %s3378, 1
    %3380 = vsyncpa [#allocation6], 1
    %3381 = vsyncpa [#allocation9], 1
    %3382 = vsyncpa [#allocation12], 1
    %3383 = vsyncpa [#allocation15], 1
    %3384 = vsyncpa [#allocation18], 1
    %3385 = vsyncpa [#allocation4], 1
    %s3386 = scalar_lea.sflag [#allocation4], 1
    %3387 = vsyncpa %s3386, 1

</llo_original>
